<compile_context>
chip_gen: v5e
topology: v5e:2x2
jax: 0.10.0
libtpu: 0.0.40
codegen_flags: <defaults>
</compile_context>

<pallas_src>
import jax
import jax.numpy as jnp
import numpy as np
from jax.experimental import pallas as pl
from jax.experimental.pallas import tpu as pltpu

# ----------------------------- config ---------------------------------------
B = 2
T, H, W = 2, 4, 4
N = 1 + T * H * W            # cls token + T*H*W tokens = 33
DIM = 32                     # dim == dim_out
NUM_HEADS = 4
HEAD_DIM = DIM // NUM_HEADS
MLP_HIDDEN = int(DIM * 4.0)  # mlp_ratio = 4.0
LN_EPS = 1e-5
SCALE = HEAD_DIM ** -0.5


# --------------------------- kernel helpers ----------------------------------
def _layernorm(x, gamma, beta):
    mu = jnp.mean(x, axis=-1, keepdims=True)
    xc = x - mu
    var = jnp.mean(xc * xc, axis=-1, keepdims=True)
    return xc * jax.lax.rsqrt(var + LN_EPS) * gamma + beta


def _gelu_tanh(x):
    # tanh-approx GELU: the tanh runs on the EUP (free slot next to VPU/MXU)
    # instead of a ~12-op dependent VPU polynomial; max abs error vs exact
    # erf-GELU is ~3e-4, far inside the 1e-2 test tolerance.
    c = 0.7978845608028654  # sqrt(2/pi)
    return 0.5 * x * (1.0 + jnp.tanh(c * (x + 0.044715 * x * x * x)))


# ------------------------------ kernel ---------------------------------------
def msblock_kernel(x_ref,
                   n1g_ref, n1b_ref,
                   wqkv_ref, bqkv_ref,
                   wproj_ref, bproj_ref,
                   n2g_ref, n2b_ref,
                   wfc1_ref, bfc1_ref,
                   wfc2_ref, bfc2_ref,
                   o_ref):
    # The block is either (1, N, C) (one batch item / grid step, v7x path) or
    # (B*N, C) (whole batch fused into one step, v5e/v6e path).
    squeeze = len(x_ref.shape) == 3
    x = x_ref[0] if squeeze else x_ref[...]          # (rows, C) fp32
    rows, c = x.shape
    bb = rows // N                                   # batch items in this step
    d = HEAD_DIM

    # ---- norm1 + fused qkv projection (one MXU push for the whole sub-batch) ----
    xn = _layernorm(x, n1g_ref[...], n1b_ref[...])
    qkv = jnp.dot(xn, wqkv_ref[...], preferred_element_type=jnp.float32) + bqkv_ref[...]
    # qkv last-dim layout matches PyTorch reshape(B,N,3,heads,head_dim): [q|k|v][head][d].
    # SCALE was folded into the K columns of wqkv/bqkv at param-prep time, so the
    # q slices below are the *unscaled* q (needed for residual pooling).

    # residual-pooling mask (cls token excluded) -- hoisted out of all loops
    row = jax.lax.broadcasted_iota(jnp.int32, (N, 1), 0)   # token index, 0 = cls
    res_mask = (row > 0).astype(jnp.float32)

    wproj = wproj_ref[...]

    # ---- multi-head attention (static per-(batch, head) unroll) ----
    parts = []
    for b in range(bb):
        r0 = b * N
        acc = jnp.zeros((N, DIM), jnp.float32)
        for hh in range(NUM_HEADS):
            qh = qkv[r0:r0 + N, hh * d:(hh + 1) * d]                      # (N, d), unscaled
            kh = qkv[r0:r0 + N, c + hh * d: c + (hh + 1) * d]             # pre-scaled K
            vh = qkv[r0:r0 + N, 2 * c + hh * d: 2 * c + (hh + 1) * d]
            # q @ (scale*k)^T -- contract last dims, no explicit transpose
            a = jax.lax.dot_general(qh, kh, (((1,), (1,)), ((), ())),
                                    preferred_element_type=jnp.float32)   # (N, N)
            a = jnp.exp(a - jnp.max(a, axis=-1, keepdims=True))
            a = a * pl.reciprocal(jnp.sum(a, axis=-1, keepdims=True), approx=True)
            oh = jnp.dot(a, vh, preferred_element_type=jnp.float32)       # (N, d)
            # residual pooling: x[:, :, 1:, :] += q[:, :, 1:, :]  (unscaled q)
            oh = oh + res_mask * qh
            # fold this head back through its row-slice of the output projection;
            # accumulating here removes the 4-way lane concatenate.
            acc = acc + jnp.dot(oh, wproj[hh * d:(hh + 1) * d, :],
                                preferred_element_type=jnp.float32)
        parts.append(acc)
    attn_cat = parts[0] if bb == 1 else jnp.concatenate(parts, axis=0)    # (rows, C)
    attn_out = attn_cat + bproj_ref[...]

    # pool_skip is MaxPool3d(kernel=1, stride=1, pad=0) -> identity; drop_path = Identity
    x1 = x + attn_out

    # ---- norm2 + MLP (runs on the full fused sub-batch) ----
    xn2 = _layernorm(x1, n2g_ref[...], n2b_ref[...])
    hid = jnp.dot(xn2, wfc1_ref[...], preferred_element_type=jnp.float32) + bfc1_ref[...]
    hid = _gelu_tanh(hid)
    mlp = jnp.dot(hid, wfc2_ref[...], preferred_element_type=jnp.float32) + bfc2_ref[...]

    out = x1 + mlp
    if squeeze:
        o_ref[0] = out
    else:
        o_ref[...] = out


# ------------------------------ wrapper --------------------------------------
def _prep_params(params):
    """Fold the attention scale into the K columns of the fused qkv weight/bias.

    (q*scale) @ k^T == q @ (scale*k)^T, and residual pooling needs the *unscaled*
    q, so scaling K (not Q) keeps the kernel free of the per-head scale multiply.
    One-time, outside the kernel.
    """
    (n1g, n1b, wqkv, bqkv, wproj, bproj, n2g, n2b, wfc1, bfc1, wfc2, bfc2) = params
    wqkv = wqkv.at[:, DIM:2 * DIM].multiply(SCALE)
    bqkv = bqkv.at[:, DIM:2 * DIM].multiply(SCALE)
    return (n1g, n1b, wqkv, bqkv, wproj, bproj, n2g, n2b, wfc1, bfc1, wfc2, bfc2)


def _two_tensorcores_per_chip():
    # v7x has 2 TensorCores per chip: there a B-parallel grid is a real ~2x.
    # On single-TC chips (v5e/v6e) a grid over B is a serial loop with ~0.35us
    # per-step overhead, so we fuse the whole batch into one step instead.
    try:
        kind = jax.devices()[0].device_kind.lower().replace(" ", "")
        return ("v7" in kind) or ("tpu7" in kind)
    except Exception:
        return False


def multi_scale_block(x, params, thw_shape):
    params = _prep_params(params)
    param_specs = [pl.BlockSpec(p.shape, lambda i: (0, 0)) for p in params]  # all 2-D

    if _two_tensorcores_per_chip() and B > 1:
        # one batch item per grid step, sharded across the two TensorCores
        grid = (B,)
        x_in = x
        io_spec = pl.BlockSpec((1, N, DIM), lambda b: (b, 0, 0))
        out_shape = jax.ShapeDtypeStruct((B, N, DIM), jnp.float32)
        dims = ("parallel",)
        reshape_out = False
    else:
        # single grid step over the whole flattened batch (v5e / v6e default)
        grid = (1,)
        x_in = x.reshape(B * N, DIM)
        io_spec = pl.BlockSpec((B * N, DIM), lambda i: (0, 0))
        out_shape = jax.ShapeDtypeStruct((B * N, DIM), jnp.float32)
        dims = ("arbitrary",)
        reshape_out = True

    out = pl.pallas_call(
        msblock_kernel,
        out_shape=out_shape,
        grid=grid,
        in_specs=[io_spec] + param_specs,
        out_specs=io_spec,
        compiler_params=pltpu.CompilerParams(dimension_semantics=dims),
    )(x_in, *params)
    if reshape_out:
        out = out.reshape(B, N, DIM)
    return out, list(thw_shape)   # stride_q = 1 -> thw unchanged


# --------------------------- pure-JAX reference -------------------------------
def reference(x, params):
    (n1g, n1b, wqkv, bqkv, wproj, bproj, n2g, n2b, wfc1, bfc1, wfc2, bfc2) = params

    def ln(z, g, b):
        mu = jnp.mean(z, -1, keepdims=True)
        var = jnp.mean((z - mu) ** 2, -1, keepdims=True)
        return (z - mu) / jnp.sqrt(var + LN_EPS) * g[0] + b[0]

    xn = ln(x, n1g, n1b)
    qkv = xn @ wqkv + bqkv[0]
    qkv = qkv.reshape(B, N, 3, NUM_HEADS, HEAD_DIM).transpose(2, 0, 3, 1, 4)
    q, k, v = qkv[0], qkv[1], qkv[2]                       # (B, h, N, d)
    attn = (q * SCALE) @ jnp.swapaxes(k, -2, -1)
    attn = jax.nn.softmax(attn, axis=-1)
    o = attn @ v
    o = o.at[:, :, 1:, :].add(q[:, :, 1:, :])              # residual pooling
    o = jnp.swapaxes(o, 1, 2).reshape(B, N, DIM)
    attn_out = o @ wproj + bproj[0]
    x1 = x + attn_out
    xn2 = ln(x1, n2g, n2b)
    hid = jax.nn.gelu(xn2 @ wfc1 + bfc1[0], approximate=False)
    mlp = hid @ wfc2 + bfc2[0]
    return x1 + mlp


# ------------------------------- main -----------------------------------------
if __name__ == "__main__":
    key = jax.random.PRNGKey(0)
    kx, k0, k1, k2, k3, k4, k5, k6, k7 = jax.random.split(key, 9)
    x = jax.random.normal(kx, (B, N, DIM), jnp.float32)

    def w(k, shape):
        return jax.random.normal(k, shape, jnp.float32) * 0.02

    params = (
        jnp.ones((1, DIM), jnp.float32), jnp.zeros((1, DIM), jnp.float32),   # norm1 gamma/beta
        w(k0, (DIM, 3 * DIM)), w(k1, (1, 3 * DIM)),                          # qkv  (qkv_bias=True)
        w(k2, (DIM, DIM)), w(k3, (1, DIM)),                                  # proj
        jnp.ones((1, DIM), jnp.float32), jnp.zeros((1, DIM), jnp.float32),   # norm2 gamma/beta
        w(k4, (DIM, MLP_HIDDEN)), w(k5, (1, MLP_HIDDEN)),                    # mlp.fc1
        w(k6, (MLP_HIDDEN, DIM)), w(k7, (1, DIM)),                           # mlp.fc2
    )

    out, thw_new = multi_scale_block(x, params, (T, H, W))
    out = jax.block_until_ready(out)

    ref = reference(x, params)
    np.testing.assert_allclose(np.asarray(out), np.asarray(ref), rtol=1e-2, atol=1e-2)
    assert thw_new == [T, H, W]
    print("KERNEL_OK")
</pallas_src>

<mosaic_0001>
module attributes {stable_mosaic.version = 11 : i64} {
  func.func @msblock_kernel(%arg0: i32, %arg1: memref<66x32xf32, #tpu.memory_space<vmem>>, %arg2: memref<1x32xf32, #tpu.memory_space<vmem>>, %arg3: memref<1x32xf32, #tpu.memory_space<vmem>>, %arg4: memref<32x96xf32, #tpu.memory_space<vmem>>, %arg5: memref<1x96xf32, #tpu.memory_space<vmem>>, %arg6: memref<32x32xf32, #tpu.memory_space<vmem>>, %arg7: memref<1x32xf32, #tpu.memory_space<vmem>>, %arg8: memref<1x32xf32, #tpu.memory_space<vmem>>, %arg9: memref<1x32xf32, #tpu.memory_space<vmem>>, %arg10: memref<32x128xf32, #tpu.memory_space<vmem>>, %arg11: memref<1x128xf32, #tpu.memory_space<vmem>>, %arg12: memref<128x32xf32, #tpu.memory_space<vmem>>, %arg13: memref<1x32xf32, #tpu.memory_space<vmem>>, %arg14: memref<66x32xf32, #tpu.memory_space<vmem>>) attributes {dimension_semantics = [#tpu.dimension_semantics<arbitrary>], iteration_bounds = array<i64: 1>, scalar_prefetch = 0 : i64, scratch_operands = 0 : i64, tpu.core_type = #tpu.core_type<tc>, window_params = [{pipeline_mode = #tpu.pipeline_mode<synchronous>, transform_indices = @transform_0, window_bounds = array<i64: 66, 32>}, {pipeline_mode = #tpu.pipeline_mode<synchronous>, transform_indices = @transform_1, window_bounds = array<i64: 1, 32>}, {pipeline_mode = #tpu.pipeline_mode<synchronous>, transform_indices = @transform_2, window_bounds = array<i64: 1, 32>}, {pipeline_mode = #tpu.pipeline_mode<synchronous>, transform_indices = @transform_3, window_bounds = array<i64: 32, 96>}, {pipeline_mode = #tpu.pipeline_mode<synchronous>, transform_indices = @transform_4, window_bounds = array<i64: 1, 96>}, {pipeline_mode = #tpu.pipeline_mode<synchronous>, transform_indices = @transform_5, window_bounds = array<i64: 32, 32>}, {pipeline_mode = #tpu.pipeline_mode<synchronous>, transform_indices = @transform_6, window_bounds = array<i64: 1, 32>}, {pipeline_mode = #tpu.pipeline_mode<synchronous>, transform_indices = @transform_7, window_bounds = array<i64: 1, 32>}, {pipeline_mode = #tpu.pipeline_mode<synchronous>, transform_indices = @transform_8, window_bounds = array<i64: 1, 32>}, {pipeline_mode = #tpu.pipeline_mode<synchronous>, transform_indices = @transform_9, window_bounds = array<i64: 32, 128>}, {pipeline_mode = #tpu.pipeline_mode<synchronous>, transform_indices = @transform_10, window_bounds = array<i64: 1, 128>}, {pipeline_mode = #tpu.pipeline_mode<synchronous>, transform_indices = @transform_11, window_bounds = array<i64: 128, 32>}, {pipeline_mode = #tpu.pipeline_mode<synchronous>, transform_indices = @transform_12, window_bounds = array<i64: 1, 32>}, {pipeline_mode = #tpu.pipeline_mode<synchronous>, transform_indices = @transform_13, window_bounds = array<i64: 66, 32>}]} {
    %c0 = arith.constant 0 : index
    %c0_0 = arith.constant 0 : index
    %0 = vector.load %arg1[%c0, %c0_0] : memref<66x32xf32, #tpu.memory_space<vmem>>, vector<66x32xf32>
    %c0_1 = arith.constant 0 : index
    %c0_2 = arith.constant 0 : index
    %1 = vector.load %arg2[%c0_1, %c0_2] : memref<1x32xf32, #tpu.memory_space<vmem>>, vector<1x32xf32>
    %c0_3 = arith.constant 0 : index
    %c0_4 = arith.constant 0 : index
    %2 = vector.load %arg3[%c0_3, %c0_4] : memref<1x32xf32, #tpu.memory_space<vmem>>, vector<1x32xf32>
    %cst = arith.constant dense<0.000000e+00> : vector<66xf32>
    %3 = vector.multi_reduction <add>, %0, %cst [1] : vector<66x32xf32> to vector<66xf32>
    %4 = vector.shape_cast %3 : vector<66xf32> to vector<66x1xf32>
    %cst_5 = arith.constant 3.200000e+01 : f32
    %5 = vector.broadcast %cst_5 : f32 to vector<66x1xf32>
    %6 = arith.divf %4, %5 : vector<66x1xf32>
    %7 = vector.broadcast %6 : vector<66x1xf32> to vector<66x32xf32>
    %8 = arith.subf %0, %7 : vector<66x32xf32>
    %9 = arith.mulf %8, %8 : vector<66x32xf32>
    %cst_6 = arith.constant dense<0.000000e+00> : vector<66xf32>
    %10 = vector.multi_reduction <add>, %9, %cst_6 [1] : vector<66x32xf32> to vector<66xf32>
    %11 = vector.shape_cast %10 : vector<66xf32> to vector<66x1xf32>
    %cst_7 = arith.constant 3.200000e+01 : f32
    %12 = vector.broadcast %cst_7 : f32 to vector<66x1xf32>
    %13 = arith.divf %11, %12 : vector<66x1xf32>
    %cst_8 = arith.constant 9.99999974E-6 : f32
    %14 = vector.broadcast %cst_8 : f32 to vector<66x1xf32>
    %15 = arith.addf %13, %14 : vector<66x1xf32>
    %16 = math.rsqrt %15 : vector<66x1xf32>
    %17 = vector.broadcast %16 : vector<66x1xf32> to vector<66x32xf32>
    %18 = arith.mulf %8, %17 : vector<66x32xf32>
    %19 = vector.broadcast %1 : vector<1x32xf32> to vector<66x32xf32>
    %20 = arith.mulf %18, %19 : vector<66x32xf32>
    %21 = vector.broadcast %2 : vector<1x32xf32> to vector<66x32xf32>
    %22 = arith.addf %20, %21 : vector<66x32xf32>
    %c0_9 = arith.constant 0 : index
    %c0_10 = arith.constant 0 : index
    %23 = vector.load %arg4[%c0_9, %c0_10] : memref<32x96xf32, #tpu.memory_space<vmem>>, vector<32x96xf32>
    %cst_11 = arith.constant dense<0.000000e+00> : vector<66x96xf32>
    %24 = tpu.matmul %22, %23, %cst_11 {dimension_numbers = #tpu.dot_dimension_numbers<[1], [0], [0], [1], [0, 0, 1, 1], [], []>} : vector<66x32xf32>, vector<32x96xf32>, vector<66x96xf32> -> vector<66x96xf32>
    %c0_12 = arith.constant 0 : index
    %c0_13 = arith.constant 0 : index
    %25 = vector.load %arg5[%c0_12, %c0_13] : memref<1x96xf32, #tpu.memory_space<vmem>>, vector<1x96xf32>
    %26 = vector.broadcast %25 : vector<1x96xf32> to vector<66x96xf32>
    %27 = arith.addf %24, %26 : vector<66x96xf32>
    %28 = tpu.iota {dimensions = array<i32: 0>} : vector<33x1xi32>
    %c0_i32 = arith.constant 0 : i32
    %29 = vector.broadcast %c0_i32 : i32 to vector<33x1xi32>
    %30 = arith.cmpi sgt, %28, %29 : vector<33x1xi32>
    %31 = arith.extui %30 : vector<33x1xi1> to vector<33x1xi32>
    %32 = arith.sitofp %31 : vector<33x1xi32> to vector<33x1xf32>
    %c0_14 = arith.constant 0 : index
    %c0_15 = arith.constant 0 : index
    %33 = vector.load %arg6[%c0_14, %c0_15] : memref<32x32xf32, #tpu.memory_space<vmem>>, vector<32x32xf32>
    %cst_16 = arith.constant 0.000000e+00 : f32
    %34 = vector.broadcast %cst_16 : f32 to vector<33x32xf32>
    %35 = vector.extract_strided_slice %27 {offsets = [0, 0], sizes = [33, 8], strides = [1, 1]} : vector<66x96xf32> to vector<33x8xf32>
    %36 = vector.extract_strided_slice %27 {offsets = [0, 32], sizes = [33, 8], strides = [1, 1]} : vector<66x96xf32> to vector<33x8xf32>
    %37 = vector.extract_strided_slice %27 {offsets = [0, 64], sizes = [33, 8], strides = [1, 1]} : vector<66x96xf32> to vector<33x8xf32>
    %cst_17 = arith.constant dense<0.000000e+00> : vector<33x33xf32>
    %38 = tpu.matmul %35, %36, %cst_17 {dimension_numbers = #tpu.dot_dimension_numbers<[1], [1], [0], [0], [0, 0, 1, 0], [], []>} : vector<33x8xf32>, vector<33x8xf32>, vector<33x33xf32> -> vector<33x33xf32>
    %cst_18 = arith.constant dense<0xFF800000> : vector<33xf32>
    %39 = vector.multi_reduction <maximumf>, %38, %cst_18 [1] : vector<33x33xf32> to vector<33xf32>
    %40 = vector.shape_cast %39 : vector<33xf32> to vector<33x1xf32>
    %41 = vector.broadcast %40 : vector<33x1xf32> to vector<33x33xf32>
    %42 = arith.subf %38, %41 : vector<33x33xf32>
    %43 = math.exp %42 : vector<33x33xf32>
    %cst_19 = arith.constant dense<0.000000e+00> : vector<33xf32>
    %44 = vector.multi_reduction <add>, %43, %cst_19 [1] : vector<33x33xf32> to vector<33xf32>
    %45 = vector.shape_cast %44 : vector<33xf32> to vector<33x1xf32>
    %46 = tpu.reciprocal %45 {approx = true} : vector<33x1xf32> -> vector<33x1xf32>
    %47 = vector.broadcast %46 : vector<33x1xf32> to vector<33x33xf32>
    %48 = arith.mulf %43, %47 : vector<33x33xf32>
    %cst_20 = arith.constant dense<0.000000e+00> : vector<33x8xf32>
    %49 = tpu.matmul %48, %37, %cst_20 {dimension_numbers = #tpu.dot_dimension_numbers<[1], [0], [0], [1], [0, 0, 1, 1], [], []>} : vector<33x33xf32>, vector<33x8xf32>, vector<33x8xf32> -> vector<33x8xf32>
    %50 = vector.broadcast %32 : vector<33x1xf32> to vector<33x8xf32>
    %51 = arith.mulf %50, %35 : vector<33x8xf32>
    %52 = arith.addf %49, %51 : vector<33x8xf32>
    %53 = vector.extract_strided_slice %33 {offsets = [0, 0], sizes = [8, 32], strides = [1, 1]} : vector<32x32xf32> to vector<8x32xf32>
    %cst_21 = arith.constant dense<0.000000e+00> : vector<33x32xf32>
    %54 = tpu.matmul %52, %53, %cst_21 {dimension_numbers = #tpu.dot_dimension_numbers<[1], [0], [0], [1], [0, 0, 1, 1], [], []>} : vector<33x8xf32>, vector<8x32xf32>, vector<33x32xf32> -> vector<33x32xf32>
    %55 = arith.addf %34, %54 : vector<33x32xf32>
    %56 = vector.extract_strided_slice %27 {offsets = [0, 8], sizes = [33, 8], strides = [1, 1]} : vector<66x96xf32> to vector<33x8xf32>
    %57 = vector.extract_strided_slice %27 {offsets = [0, 40], sizes = [33, 8], strides = [1, 1]} : vector<66x96xf32> to vector<33x8xf32>
    %58 = vector.extract_strided_slice %27 {offsets = [0, 72], sizes = [33, 8], strides = [1, 1]} : vector<66x96xf32> to vector<33x8xf32>
    %cst_22 = arith.constant dense<0.000000e+00> : vector<33x33xf32>
    %59 = tpu.matmul %56, %57, %cst_22 {dimension_numbers = #tpu.dot_dimension_numbers<[1], [1], [0], [0], [0, 0, 1, 0], [], []>} : vector<33x8xf32>, vector<33x8xf32>, vector<33x33xf32> -> vector<33x33xf32>
    %cst_23 = arith.constant dense<0xFF800000> : vector<33xf32>
    %60 = vector.multi_reduction <maximumf>, %59, %cst_23 [1] : vector<33x33xf32> to vector<33xf32>
    %61 = vector.shape_cast %60 : vector<33xf32> to vector<33x1xf32>
    %62 = vector.broadcast %61 : vector<33x1xf32> to vector<33x33xf32>
    %63 = arith.subf %59, %62 : vector<33x33xf32>
    %64 = math.exp %63 : vector<33x33xf32>
    %cst_24 = arith.constant dense<0.000000e+00> : vector<33xf32>
    %65 = vector.multi_reduction <add>, %64, %cst_24 [1] : vector<33x33xf32> to vector<33xf32>
    %66 = vector.shape_cast %65 : vector<33xf32> to vector<33x1xf32>
    %67 = tpu.reciprocal %66 {approx = true} : vector<33x1xf32> -> vector<33x1xf32>
    %68 = vector.broadcast %67 : vector<33x1xf32> to vector<33x33xf32>
    %69 = arith.mulf %64, %68 : vector<33x33xf32>
    %cst_25 = arith.constant dense<0.000000e+00> : vector<33x8xf32>
    %70 = tpu.matmul %69, %58, %cst_25 {dimension_numbers = #tpu.dot_dimension_numbers<[1], [0], [0], [1], [0, 0, 1, 1], [], []>} : vector<33x33xf32>, vector<33x8xf32>, vector<33x8xf32> -> vector<33x8xf32>
    %71 = vector.broadcast %32 : vector<33x1xf32> to vector<33x8xf32>
    %72 = arith.mulf %71, %56 : vector<33x8xf32>
    %73 = arith.addf %70, %72 : vector<33x8xf32>
    %74 = vector.extract_strided_slice %33 {offsets = [8, 0], sizes = [8, 32], strides = [1, 1]} : vector<32x32xf32> to vector<8x32xf32>
    %cst_26 = arith.constant dense<0.000000e+00> : vector<33x32xf32>
    %75 = tpu.matmul %73, %74, %cst_26 {dimension_numbers = #tpu.dot_dimension_numbers<[1], [0], [0], [1], [0, 0, 1, 1], [], []>} : vector<33x8xf32>, vector<8x32xf32>, vector<33x32xf32> -> vector<33x32xf32>
    %76 = arith.addf %55, %75 : vector<33x32xf32>
    %77 = vector.extract_strided_slice %27 {offsets = [0, 16], sizes = [33, 8], strides = [1, 1]} : vector<66x96xf32> to vector<33x8xf32>
    %78 = vector.extract_strided_slice %27 {offsets = [0, 48], sizes = [33, 8], strides = [1, 1]} : vector<66x96xf32> to vector<33x8xf32>
    %79 = vector.extract_strided_slice %27 {offsets = [0, 80], sizes = [33, 8], strides = [1, 1]} : vector<66x96xf32> to vector<33x8xf32>
    %cst_27 = arith.constant dense<0.000000e+00> : vector<33x33xf32>
    %80 = tpu.matmul %77, %78, %cst_27 {dimension_numbers = #tpu.dot_dimension_numbers<[1], [1], [0], [0], [0, 0, 1, 0], [], []>} : vector<33x8xf32>, vector<33x8xf32>, vector<33x33xf32> -> vector<33x33xf32>
    %cst_28 = arith.constant dense<0xFF800000> : vector<33xf32>
    %81 = vector.multi_reduction <maximumf>, %80, %cst_28 [1] : vector<33x33xf32> to vector<33xf32>
    %82 = vector.shape_cast %81 : vector<33xf32> to vector<33x1xf32>
    %83 = vector.broadcast %82 : vector<33x1xf32> to vector<33x33xf32>
    %84 = arith.subf %80, %83 : vector<33x33xf32>
    %85 = math.exp %84 : vector<33x33xf32>
    %cst_29 = arith.constant dense<0.000000e+00> : vector<33xf32>
    %86 = vector.multi_reduction <add>, %85, %cst_29 [1] : vector<33x33xf32> to vector<33xf32>
    %87 = vector.shape_cast %86 : vector<33xf32> to vector<33x1xf32>
    %88 = tpu.reciprocal %87 {approx = true} : vector<33x1xf32> -> vector<33x1xf32>
    %89 = vector.broadcast %88 : vector<33x1xf32> to vector<33x33xf32>
    %90 = arith.mulf %85, %89 : vector<33x33xf32>
    %cst_30 = arith.constant dense<0.000000e+00> : vector<33x8xf32>
    %91 = tpu.matmul %90, %79, %cst_30 {dimension_numbers = #tpu.dot_dimension_numbers<[1], [0], [0], [1], [0, 0, 1, 1], [], []>} : vector<33x33xf32>, vector<33x8xf32>, vector<33x8xf32> -> vector<33x8xf32>
    %92 = vector.broadcast %32 : vector<33x1xf32> to vector<33x8xf32>
    %93 = arith.mulf %92, %77 : vector<33x8xf32>
    %94 = arith.addf %91, %93 : vector<33x8xf32>
    %95 = vector.extract_strided_slice %33 {offsets = [16, 0], sizes = [8, 32], strides = [1, 1]} : vector<32x32xf32> to vector<8x32xf32>
    %cst_31 = arith.constant dense<0.000000e+00> : vector<33x32xf32>
    %96 = tpu.matmul %94, %95, %cst_31 {dimension_numbers = #tpu.dot_dimension_numbers<[1], [0], [0], [1], [0, 0, 1, 1], [], []>} : vector<33x8xf32>, vector<8x32xf32>, vector<33x32xf32> -> vector<33x32xf32>
    %97 = arith.addf %76, %96 : vector<33x32xf32>
    %98 = vector.extract_strided_slice %27 {offsets = [0, 24], sizes = [33, 8], strides = [1, 1]} : vector<66x96xf32> to vector<33x8xf32>
    %99 = vector.extract_strided_slice %27 {offsets = [0, 56], sizes = [33, 8], strides = [1, 1]} : vector<66x96xf32> to vector<33x8xf32>
    %100 = vector.extract_strided_slice %27 {offsets = [0, 88], sizes = [33, 8], strides = [1, 1]} : vector<66x96xf32> to vector<33x8xf32>
    %cst_32 = arith.constant dense<0.000000e+00> : vector<33x33xf32>
    %101 = tpu.matmul %98, %99, %cst_32 {dimension_numbers = #tpu.dot_dimension_numbers<[1], [1], [0], [0], [0, 0, 1, 0], [], []>} : vector<33x8xf32>, vector<33x8xf32>, vector<33x33xf32> -> vector<33x33xf32>
    %cst_33 = arith.constant dense<0xFF800000> : vector<33xf32>
    %102 = vector.multi_reduction <maximumf>, %101, %cst_33 [1] : vector<33x33xf32> to vector<33xf32>
    %103 = vector.shape_cast %102 : vector<33xf32> to vector<33x1xf32>
    %104 = vector.broadcast %103 : vector<33x1xf32> to vector<33x33xf32>
    %105 = arith.subf %101, %104 : vector<33x33xf32>
    %106 = math.exp %105 : vector<33x33xf32>
    %cst_34 = arith.constant dense<0.000000e+00> : vector<33xf32>
    %107 = vector.multi_reduction <add>, %106, %cst_34 [1] : vector<33x33xf32> to vector<33xf32>
    %108 = vector.shape_cast %107 : vector<33xf32> to vector<33x1xf32>
    %109 = tpu.reciprocal %108 {approx = true} : vector<33x1xf32> -> vector<33x1xf32>
    %110 = vector.broadcast %109 : vector<33x1xf32> to vector<33x33xf32>
    %111 = arith.mulf %106, %110 : vector<33x33xf32>
    %cst_35 = arith.constant dense<0.000000e+00> : vector<33x8xf32>
    %112 = tpu.matmul %111, %100, %cst_35 {dimension_numbers = #tpu.dot_dimension_numbers<[1], [0], [0], [1], [0, 0, 1, 1], [], []>} : vector<33x33xf32>, vector<33x8xf32>, vector<33x8xf32> -> vector<33x8xf32>
    %113 = vector.broadcast %32 : vector<33x1xf32> to vector<33x8xf32>
    %114 = arith.mulf %113, %98 : vector<33x8xf32>
    %115 = arith.addf %112, %114 : vector<33x8xf32>
    %116 = vector.extract_strided_slice %33 {offsets = [24, 0], sizes = [8, 32], strides = [1, 1]} : vector<32x32xf32> to vector<8x32xf32>
    %cst_36 = arith.constant dense<0.000000e+00> : vector<33x32xf32>
    %117 = tpu.matmul %115, %116, %cst_36 {dimension_numbers = #tpu.dot_dimension_numbers<[1], [0], [0], [1], [0, 0, 1, 1], [], []>} : vector<33x8xf32>, vector<8x32xf32>, vector<33x32xf32> -> vector<33x32xf32>
    %118 = arith.addf %97, %117 : vector<33x32xf32>
    %cst_37 = arith.constant 0.000000e+00 : f32
    %119 = vector.broadcast %cst_37 : f32 to vector<33x32xf32>
    %120 = vector.extract_strided_slice %27 {offsets = [33, 0], sizes = [33, 8], strides = [1, 1]} : vector<66x96xf32> to vector<33x8xf32>
    %121 = vector.extract_strided_slice %27 {offsets = [33, 32], sizes = [33, 8], strides = [1, 1]} : vector<66x96xf32> to vector<33x8xf32>
    %122 = vector.extract_strided_slice %27 {offsets = [33, 64], sizes = [33, 8], strides = [1, 1]} : vector<66x96xf32> to vector<33x8xf32>
    %cst_38 = arith.constant dense<0.000000e+00> : vector<33x33xf32>
    %123 = tpu.matmul %120, %121, %cst_38 {dimension_numbers = #tpu.dot_dimension_numbers<[1], [1], [0], [0], [0, 0, 1, 0], [], []>} : vector<33x8xf32>, vector<33x8xf32>, vector<33x33xf32> -> vector<33x33xf32>
    %cst_39 = arith.constant dense<0xFF800000> : vector<33xf32>
    %124 = vector.multi_reduction <maximumf>, %123, %cst_39 [1] : vector<33x33xf32> to vector<33xf32>
    %125 = vector.shape_cast %124 : vector<33xf32> to vector<33x1xf32>
    %126 = vector.broadcast %125 : vector<33x1xf32> to vector<33x33xf32>
    %127 = arith.subf %123, %126 : vector<33x33xf32>
    %128 = math.exp %127 : vector<33x33xf32>
    %cst_40 = arith.constant dense<0.000000e+00> : vector<33xf32>
    %129 = vector.multi_reduction <add>, %128, %cst_40 [1] : vector<33x33xf32> to vector<33xf32>
    %130 = vector.shape_cast %129 : vector<33xf32> to vector<33x1xf32>
    %131 = tpu.reciprocal %130 {approx = true} : vector<33x1xf32> -> vector<33x1xf32>
    %132 = vector.broadcast %131 : vector<33x1xf32> to vector<33x33xf32>
    %133 = arith.mulf %128, %132 : vector<33x33xf32>
    %cst_41 = arith.constant dense<0.000000e+00> : vector<33x8xf32>
    %134 = tpu.matmul %133, %122, %cst_41 {dimension_numbers = #tpu.dot_dimension_numbers<[1], [0], [0], [1], [0, 0, 1, 1], [], []>} : vector<33x33xf32>, vector<33x8xf32>, vector<33x8xf32> -> vector<33x8xf32>
    %135 = vector.broadcast %32 : vector<33x1xf32> to vector<33x8xf32>
    %136 = arith.mulf %135, %120 : vector<33x8xf32>
    %137 = arith.addf %134, %136 : vector<33x8xf32>
    %138 = vector.extract_strided_slice %33 {offsets = [0, 0], sizes = [8, 32], strides = [1, 1]} : vector<32x32xf32> to vector<8x32xf32>
    %cst_42 = arith.constant dense<0.000000e+00> : vector<33x32xf32>
    %139 = tpu.matmul %137, %138, %cst_42 {dimension_numbers = #tpu.dot_dimension_numbers<[1], [0], [0], [1], [0, 0, 1, 1], [], []>} : vector<33x8xf32>, vector<8x32xf32>, vector<33x32xf32> -> vector<33x32xf32>
    %140 = arith.addf %119, %139 : vector<33x32xf32>
    %141 = vector.extract_strided_slice %27 {offsets = [33, 8], sizes = [33, 8], strides = [1, 1]} : vector<66x96xf32> to vector<33x8xf32>
    %142 = vector.extract_strided_slice %27 {offsets = [33, 40], sizes = [33, 8], strides = [1, 1]} : vector<66x96xf32> to vector<33x8xf32>
    %143 = vector.extract_strided_slice %27 {offsets = [33, 72], sizes = [33, 8], strides = [1, 1]} : vector<66x96xf32> to vector<33x8xf32>
    %cst_43 = arith.constant dense<0.000000e+00> : vector<33x33xf32>
    %144 = tpu.matmul %141, %142, %cst_43 {dimension_numbers = #tpu.dot_dimension_numbers<[1], [1], [0], [0], [0, 0, 1, 0], [], []>} : vector<33x8xf32>, vector<33x8xf32>, vector<33x33xf32> -> vector<33x33xf32>
    %cst_44 = arith.constant dense<0xFF800000> : vector<33xf32>
    %145 = vector.multi_reduction <maximumf>, %144, %cst_44 [1] : vector<33x33xf32> to vector<33xf32>
    %146 = vector.shape_cast %145 : vector<33xf32> to vector<33x1xf32>
    %147 = vector.broadcast %146 : vector<33x1xf32> to vector<33x33xf32>
    %148 = arith.subf %144, %147 : vector<33x33xf32>
    %149 = math.exp %148 : vector<33x33xf32>
    %cst_45 = arith.constant dense<0.000000e+00> : vector<33xf32>
    %150 = vector.multi_reduction <add>, %149, %cst_45 [1] : vector<33x33xf32> to vector<33xf32>
    %151 = vector.shape_cast %150 : vector<33xf32> to vector<33x1xf32>
    %152 = tpu.reciprocal %151 {approx = true} : vector<33x1xf32> -> vector<33x1xf32>
    %153 = vector.broadcast %152 : vector<33x1xf32> to vector<33x33xf32>
    %154 = arith.mulf %149, %153 : vector<33x33xf32>
    %cst_46 = arith.constant dense<0.000000e+00> : vector<33x8xf32>
    %155 = tpu.matmul %154, %143, %cst_46 {dimension_numbers = #tpu.dot_dimension_numbers<[1], [0], [0], [1], [0, 0, 1, 1], [], []>} : vector<33x33xf32>, vector<33x8xf32>, vector<33x8xf32> -> vector<33x8xf32>
    %156 = vector.broadcast %32 : vector<33x1xf32> to vector<33x8xf32>
    %157 = arith.mulf %156, %141 : vector<33x8xf32>
    %158 = arith.addf %155, %157 : vector<33x8xf32>
    %159 = vector.extract_strided_slice %33 {offsets = [8, 0], sizes = [8, 32], strides = [1, 1]} : vector<32x32xf32> to vector<8x32xf32>
    %cst_47 = arith.constant dense<0.000000e+00> : vector<33x32xf32>
    %160 = tpu.matmul %158, %159, %cst_47 {dimension_numbers = #tpu.dot_dimension_numbers<[1], [0], [0], [1], [0, 0, 1, 1], [], []>} : vector<33x8xf32>, vector<8x32xf32>, vector<33x32xf32> -> vector<33x32xf32>
    %161 = arith.addf %140, %160 : vector<33x32xf32>
    %162 = vector.extract_strided_slice %27 {offsets = [33, 16], sizes = [33, 8], strides = [1, 1]} : vector<66x96xf32> to vector<33x8xf32>
    %163 = vector.extract_strided_slice %27 {offsets = [33, 48], sizes = [33, 8], strides = [1, 1]} : vector<66x96xf32> to vector<33x8xf32>
    %164 = vector.extract_strided_slice %27 {offsets = [33, 80], sizes = [33, 8], strides = [1, 1]} : vector<66x96xf32> to vector<33x8xf32>
    %cst_48 = arith.constant dense<0.000000e+00> : vector<33x33xf32>
    %165 = tpu.matmul %162, %163, %cst_48 {dimension_numbers = #tpu.dot_dimension_numbers<[1], [1], [0], [0], [0, 0, 1, 0], [], []>} : vector<33x8xf32>, vector<33x8xf32>, vector<33x33xf32> -> vector<33x33xf32>
    %cst_49 = arith.constant dense<0xFF800000> : vector<33xf32>
    %166 = vector.multi_reduction <maximumf>, %165, %cst_49 [1] : vector<33x33xf32> to vector<33xf32>
    %167 = vector.shape_cast %166 : vector<33xf32> to vector<33x1xf32>
    %168 = vector.broadcast %167 : vector<33x1xf32> to vector<33x33xf32>
    %169 = arith.subf %165, %168 : vector<33x33xf32>
    %170 = math.exp %169 : vector<33x33xf32>
    %cst_50 = arith.constant dense<0.000000e+00> : vector<33xf32>
    %171 = vector.multi_reduction <add>, %170, %cst_50 [1] : vector<33x33xf32> to vector<33xf32>
    %172 = vector.shape_cast %171 : vector<33xf32> to vector<33x1xf32>
    %173 = tpu.reciprocal %172 {approx = true} : vector<33x1xf32> -> vector<33x1xf32>
    %174 = vector.broadcast %173 : vector<33x1xf32> to vector<33x33xf32>
    %175 = arith.mulf %170, %174 : vector<33x33xf32>
    %cst_51 = arith.constant dense<0.000000e+00> : vector<33x8xf32>
    %176 = tpu.matmul %175, %164, %cst_51 {dimension_numbers = #tpu.dot_dimension_numbers<[1], [0], [0], [1], [0, 0, 1, 1], [], []>} : vector<33x33xf32>, vector<33x8xf32>, vector<33x8xf32> -> vector<33x8xf32>
    %177 = vector.broadcast %32 : vector<33x1xf32> to vector<33x8xf32>
    %178 = arith.mulf %177, %162 : vector<33x8xf32>
    %179 = arith.addf %176, %178 : vector<33x8xf32>
    %180 = vector.extract_strided_slice %33 {offsets = [16, 0], sizes = [8, 32], strides = [1, 1]} : vector<32x32xf32> to vector<8x32xf32>
    %cst_52 = arith.constant dense<0.000000e+00> : vector<33x32xf32>
    %181 = tpu.matmul %179, %180, %cst_52 {dimension_numbers = #tpu.dot_dimension_numbers<[1], [0], [0], [1], [0, 0, 1, 1], [], []>} : vector<33x8xf32>, vector<8x32xf32>, vector<33x32xf32> -> vector<33x32xf32>
    %182 = arith.addf %161, %181 : vector<33x32xf32>
    %183 = vector.extract_strided_slice %27 {offsets = [33, 24], sizes = [33, 8], strides = [1, 1]} : vector<66x96xf32> to vector<33x8xf32>
    %184 = vector.extract_strided_slice %27 {offsets = [33, 56], sizes = [33, 8], strides = [1, 1]} : vector<66x96xf32> to vector<33x8xf32>
    %185 = vector.extract_strided_slice %27 {offsets = [33, 88], sizes = [33, 8], strides = [1, 1]} : vector<66x96xf32> to vector<33x8xf32>
    %cst_53 = arith.constant dense<0.000000e+00> : vector<33x33xf32>
    %186 = tpu.matmul %183, %184, %cst_53 {dimension_numbers = #tpu.dot_dimension_numbers<[1], [1], [0], [0], [0, 0, 1, 0], [], []>} : vector<33x8xf32>, vector<33x8xf32>, vector<33x33xf32> -> vector<33x33xf32>
    %cst_54 = arith.constant dense<0xFF800000> : vector<33xf32>
    %187 = vector.multi_reduction <maximumf>, %186, %cst_54 [1] : vector<33x33xf32> to vector<33xf32>
    %188 = vector.shape_cast %187 : vector<33xf32> to vector<33x1xf32>
    %189 = vector.broadcast %188 : vector<33x1xf32> to vector<33x33xf32>
    %190 = arith.subf %186, %189 : vector<33x33xf32>
    %191 = math.exp %190 : vector<33x33xf32>
    %cst_55 = arith.constant dense<0.000000e+00> : vector<33xf32>
    %192 = vector.multi_reduction <add>, %191, %cst_55 [1] : vector<33x33xf32> to vector<33xf32>
    %193 = vector.shape_cast %192 : vector<33xf32> to vector<33x1xf32>
    %194 = tpu.reciprocal %193 {approx = true} : vector<33x1xf32> -> vector<33x1xf32>
    %195 = vector.broadcast %194 : vector<33x1xf32> to vector<33x33xf32>
    %196 = arith.mulf %191, %195 : vector<33x33xf32>
    %cst_56 = arith.constant dense<0.000000e+00> : vector<33x8xf32>
    %197 = tpu.matmul %196, %185, %cst_56 {dimension_numbers = #tpu.dot_dimension_numbers<[1], [0], [0], [1], [0, 0, 1, 1], [], []>} : vector<33x33xf32>, vector<33x8xf32>, vector<33x8xf32> -> vector<33x8xf32>
    %198 = vector.broadcast %32 : vector<33x1xf32> to vector<33x8xf32>
    %199 = arith.mulf %198, %183 : vector<33x8xf32>
    %200 = arith.addf %197, %199 : vector<33x8xf32>
    %201 = vector.extract_strided_slice %33 {offsets = [24, 0], sizes = [8, 32], strides = [1, 1]} : vector<32x32xf32> to vector<8x32xf32>
    %cst_57 = arith.constant dense<0.000000e+00> : vector<33x32xf32>
    %202 = tpu.matmul %200, %201, %cst_57 {dimension_numbers = #tpu.dot_dimension_numbers<[1], [0], [0], [1], [0, 0, 1, 1], [], []>} : vector<33x8xf32>, vector<8x32xf32>, vector<33x32xf32> -> vector<33x32xf32>
    %203 = arith.addf %182, %202 : vector<33x32xf32>
    %204 = tpu.concatenate %118, %203 in 0 : vector<33x32xf32>, vector<33x32xf32> -> vector<66x32xf32>
    %c0_58 = arith.constant 0 : index
    %c0_59 = arith.constant 0 : index
    %205 = vector.load %arg7[%c0_58, %c0_59] : memref<1x32xf32, #tpu.memory_space<vmem>>, vector<1x32xf32>
    %206 = vector.broadcast %205 : vector<1x32xf32> to vector<66x32xf32>
    %207 = arith.addf %204, %206 : vector<66x32xf32>
    %208 = arith.addf %0, %207 : vector<66x32xf32>
    %c0_60 = arith.constant 0 : index
    %c0_61 = arith.constant 0 : index
    %209 = vector.load %arg8[%c0_60, %c0_61] : memref<1x32xf32, #tpu.memory_space<vmem>>, vector<1x32xf32>
    %c0_62 = arith.constant 0 : index
    %c0_63 = arith.constant 0 : index
    %210 = vector.load %arg9[%c0_62, %c0_63] : memref<1x32xf32, #tpu.memory_space<vmem>>, vector<1x32xf32>
    %cst_64 = arith.constant dense<0.000000e+00> : vector<66xf32>
    %211 = vector.multi_reduction <add>, %208, %cst_64 [1] : vector<66x32xf32> to vector<66xf32>
    %212 = vector.shape_cast %211 : vector<66xf32> to vector<66x1xf32>
    %cst_65 = arith.constant 3.200000e+01 : f32
    %213 = vector.broadcast %cst_65 : f32 to vector<66x1xf32>
    %214 = arith.divf %212, %213 : vector<66x1xf32>
    %215 = vector.broadcast %214 : vector<66x1xf32> to vector<66x32xf32>
    %216 = arith.subf %208, %215 : vector<66x32xf32>
    %217 = arith.mulf %216, %216 : vector<66x32xf32>
    %cst_66 = arith.constant dense<0.000000e+00> : vector<66xf32>
    %218 = vector.multi_reduction <add>, %217, %cst_66 [1] : vector<66x32xf32> to vector<66xf32>
    %219 = vector.shape_cast %218 : vector<66xf32> to vector<66x1xf32>
    %cst_67 = arith.constant 3.200000e+01 : f32
    %220 = vector.broadcast %cst_67 : f32 to vector<66x1xf32>
    %221 = arith.divf %219, %220 : vector<66x1xf32>
    %cst_68 = arith.constant 9.99999974E-6 : f32
    %222 = vector.broadcast %cst_68 : f32 to vector<66x1xf32>
    %223 = arith.addf %221, %222 : vector<66x1xf32>
    %224 = math.rsqrt %223 : vector<66x1xf32>
    %225 = vector.broadcast %224 : vector<66x1xf32> to vector<66x32xf32>
    %226 = arith.mulf %216, %225 : vector<66x32xf32>
    %227 = vector.broadcast %209 : vector<1x32xf32> to vector<66x32xf32>
    %228 = arith.mulf %226, %227 : vector<66x32xf32>
    %229 = vector.broadcast %210 : vector<1x32xf32> to vector<66x32xf32>
    %230 = arith.addf %228, %229 : vector<66x32xf32>
    %c0_69 = arith.constant 0 : index
    %c0_70 = arith.constant 0 : index
    %231 = vector.load %arg10[%c0_69, %c0_70] : memref<32x128xf32, #tpu.memory_space<vmem>>, vector<32x128xf32>
    %cst_71 = arith.constant dense<0.000000e+00> : vector<66x128xf32>
    %232 = tpu.matmul %230, %231, %cst_71 {dimension_numbers = #tpu.dot_dimension_numbers<[1], [0], [0], [1], [0, 0, 1, 1], [], []>} : vector<66x32xf32>, vector<32x128xf32>, vector<66x128xf32> -> vector<66x128xf32>
    %c0_72 = arith.constant 0 : index
    %c0_73 = arith.constant 0 : index
    %233 = vector.load %arg11[%c0_72, %c0_73] : memref<1x128xf32, #tpu.memory_space<vmem>>, vector<1x128xf32>
    %234 = vector.broadcast %233 : vector<1x128xf32> to vector<66x128xf32>
    %235 = arith.addf %232, %234 : vector<66x128xf32>
    %cst_74 = arith.constant 5.000000e-01 : f32
    %236 = vector.broadcast %cst_74 : f32 to vector<66x128xf32>
    %237 = arith.mulf %236, %235 : vector<66x128xf32>
    %cst_75 = arith.constant 4.471500e-02 : f32
    %238 = vector.broadcast %cst_75 : f32 to vector<66x128xf32>
    %239 = arith.mulf %238, %235 : vector<66x128xf32>
    %240 = arith.mulf %239, %235 : vector<66x128xf32>
    %241 = arith.mulf %240, %235 : vector<66x128xf32>
    %242 = arith.addf %235, %241 : vector<66x128xf32>
    %cst_76 = arith.constant 0.797884583 : f32
    %243 = vector.broadcast %cst_76 : f32 to vector<66x128xf32>
    %244 = arith.mulf %243, %242 : vector<66x128xf32>
    %245 = math.tanh %244 : vector<66x128xf32>
    %cst_77 = arith.constant 1.000000e+00 : f32
    %246 = vector.broadcast %cst_77 : f32 to vector<66x128xf32>
    %247 = arith.addf %246, %245 : vector<66x128xf32>
    %248 = arith.mulf %237, %247 : vector<66x128xf32>
    %c0_78 = arith.constant 0 : index
    %c0_79 = arith.constant 0 : index
    %249 = vector.load %arg12[%c0_78, %c0_79] : memref<128x32xf32, #tpu.memory_space<vmem>>, vector<128x32xf32>
    %cst_80 = arith.constant dense<0.000000e+00> : vector<66x32xf32>
    %250 = tpu.matmul %248, %249, %cst_80 {dimension_numbers = #tpu.dot_dimension_numbers<[1], [0], [0], [1], [0, 0, 1, 1], [], []>} : vector<66x128xf32>, vector<128x32xf32>, vector<66x32xf32> -> vector<66x32xf32>
    %c0_81 = arith.constant 0 : index
    %c0_82 = arith.constant 0 : index
    %251 = vector.load %arg13[%c0_81, %c0_82] : memref<1x32xf32, #tpu.memory_space<vmem>>, vector<1x32xf32>
    %252 = vector.broadcast %251 : vector<1x32xf32> to vector<66x32xf32>
    %253 = arith.addf %250, %252 : vector<66x32xf32>
    %254 = arith.addf %208, %253 : vector<66x32xf32>
    %c0_83 = arith.constant 0 : index
    %c0_84 = arith.constant 0 : index
    %255 = vector.load %arg14[%c0_83, %c0_84] : memref<66x32xf32, #tpu.memory_space<vmem>>, vector<66x32xf32>
    tpu.vector_store %arg14[%c0_83, %c0_84], %254 {strides = array<i32>} : memref<66x32xf32, #tpu.memory_space<vmem>>, vector<66x32xf32>,
    return
  }
  func.func @transform_0(%arg0: i32) -> (i32, i32) {
    %c0_i32 = arith.constant 0 : i32
    %c0_i32_0 = arith.constant 0 : i32
    %c0_i32_1 = arith.constant 0 : i32
    return %c0_i32, %c0_i32_0 : i32, i32
  }
  func.func @transform_1(%arg0: i32) -> (i32, i32) {
    %c0_i32 = arith.constant 0 : i32
    %c0_i32_0 = arith.constant 0 : i32
    %c0_i32_1 = arith.constant 0 : i32
    return %c0_i32, %c0_i32_0 : i32, i32
  }
  func.func @transform_2(%arg0: i32) -> (i32, i32) {
    %c0_i32 = arith.constant 0 : i32
    %c0_i32_0 = arith.constant 0 : i32
    %c0_i32_1 = arith.constant 0 : i32
    return %c0_i32, %c0_i32_0 : i32, i32
  }
  func.func @transform_3(%arg0: i32) -> (i32, i32) {
    %c0_i32 = arith.constant 0 : i32
    %c0_i32_0 = arith.constant 0 : i32
    %c0_i32_1 = arith.constant 0 : i32
    return %c0_i32, %c0_i32_0 : i32, i32
  }
  func.func @transform_4(%arg0: i32) -> (i32, i32) {
    %c0_i32 = arith.constant 0 : i32
    %c0_i32_0 = arith.constant 0 : i32
    %c0_i32_1 = arith.constant 0 : i32
    return %c0_i32, %c0_i32_0 : i32, i32
  }
  func.func @transform_5(%arg0: i32) -> (i32, i32) {
    %c0_i32 = arith.constant 0 : i32
    %c0_i32_0 = arith.constant 0 : i32
    %c0_i32_1 = arith.constant 0 : i32
    return %c0_i32, %c0_i32_0 : i32, i32
  }
  func.func @transform_6(%arg0: i32) -> (i32, i32) {
    %c0_i32 = arith.constant 0 : i32
    %c0_i32_0 = arith.constant 0 : i32
    %c0_i32_1 = arith.constant 0 : i32
    return %c0_i32, %c0_i32_0 : i32, i32
  }
  func.func @transform_7(%arg0: i32) -> (i32, i32) {
    %c0_i32 = arith.constant 0 : i32
    %c0_i32_0 = arith.constant 0 : i32
    %c0_i32_1 = arith.constant 0 : i32
    return %c0_i32, %c0_i32_0 : i32, i32
  }
  func.func @transform_8(%arg0: i32) -> (i32, i32) {
    %c0_i32 = arith.constant 0 : i32
    %c0_i32_0 = arith.constant 0 : i32
    %c0_i32_1 = arith.constant 0 : i32
    return %c0_i32, %c0_i32_0 : i32, i32
  }
  func.func @transform_9(%arg0: i32) -> (i32, i32) {
    %c0_i32 = arith.constant 0 : i32
    %c0_i32_0 = arith.constant 0 : i32
    %c0_i32_1 = arith.constant 0 : i32
    return %c0_i32, %c0_i32_0 : i32, i32
  }
  func.func @transform_10(%arg0: i32) -> (i32, i32) {
    %c0_i32 = arith.constant 0 : i32
    %c0_i32_0 = arith.constant 0 : i32
    %c0_i32_1 = arith.constant 0 : i32
    return %c0_i32, %c0_i32_0 : i32, i32
  }
  func.func @transform_11(%arg0: i32) -> (i32, i32) {
    %c0_i32 = arith.constant 0 : i32
    %c0_i32_0 = arith.constant 0 : i32
    %c0_i32_1 = arith.constant 0 : i32
    return %c0_i32, %c0_i32_0 : i32, i32
  }
  func.func @transform_12(%arg0: i32) -> (i32, i32) {
    %c0_i32 = arith.constant 0 : i32
    %c0_i32_0 = arith.constant 0 : i32
    %c0_i32_1 = arith.constant 0 : i32
    return %c0_i32, %c0_i32_0 : i32, i32
  }
  func.func @transform_13(%arg0: i32) -> (i32, i32) {
    %c0_i32 = arith.constant 0 : i32
    %c0_i32_0 = arith.constant 0 : i32
    %c0_i32_1 = arith.constant 0 : i32
    return %c0_i32, %c0_i32_0 : i32, i32
  }
}

</mosaic_0001>

<llo_original>
// kernel: tpu_custom_call.1
$region0: #{tpu_custom_call.1}
  #allocation0 [shape = 'u32[]', space=smem, size = 0x4, offset = 0x4, fixed_abs, tag = 'smem constant byte address 0x4 - core index']
  #allocation1 [shape = 'u32[72,128]{1,0:T(1,128)}', space=vmem, size = 0x9000, scoped, tag = 'internal scratch']
  %s0 = inlined_call_operand.vmem [shape: f32[66,32], index: 0, kind: input, shape index: {}]
  %s1 = inlined_call_operand.vmem [shape: f32[1,32], index: 1, kind: input, shape index: {}]
  %s2 = inlined_call_operand.vmem [shape: f32[1,32], index: 2, kind: input, shape index: {}]
  %s3 = inlined_call_operand.vmem [shape: f32[32,96], index: 3, kind: input, shape index: {}]
  %s4 = inlined_call_operand.vmem [shape: f32[1,96], index: 4, kind: input, shape index: {}]
  %s5 = inlined_call_operand.vmem [shape: f32[32,32], index: 5, kind: input, shape index: {}]
  %s6 = inlined_call_operand.vmem [shape: f32[1,32], index: 6, kind: input, shape index: {}]
  %s7 = inlined_call_operand.vmem [shape: f32[1,32], index: 7, kind: input, shape index: {}]
  %s8 = inlined_call_operand.vmem [shape: f32[1,32], index: 8, kind: input, shape index: {}]
  %s9 = inlined_call_operand.vmem [shape: f32[32,128], index: 9, kind: input, shape index: {}]
  %s10 = inlined_call_operand.vmem [shape: f32[1,128], index: 10, kind: input, shape index: {}]
  %s11 = inlined_call_operand.vmem [shape: f32[128,32], index: 11, kind: input, shape index: {}]
  %s12 = inlined_call_operand.vmem [shape: f32[1,32], index: 12, kind: input, shape index: {}]
  %s13 = inlined_call_operand.vmem [shape: f32[66,32], index: 13, kind: output, shape index: {}]
  %s14 = sld [smem:[#allocation0]]
  $region62: #{tpu_custom_call.1} parent=0
    _
  %s16 = ssub.s32 1, %s14
  %s17 = scalar_select 0, %s16, %s14
  // Predicated region
  $region2: #{tpu_custom_call.1} parent=0 // pred_check
    _
  $region3: #{tpu_custom_call.1} parent=0 // pred_check_branch
    %19 = sbr.rel (0) target = $region5
  $region4: #{tpu_custom_call.1} parent=0 // pred_region
    _
  $region5: #{tpu_custom_call.1} parent=0 // pred_fallthru
    _
  // Predicated region
  $region6: #{tpu_custom_call.1} parent=0 // pred_check
    _
  $region7: #{tpu_custom_call.1} parent=0 // pred_check_branch
    %21 = sbr.rel (0) target = $region9
  $region8: #{tpu_custom_call.1} parent=0 // pred_region
    _
  $region9: #{tpu_custom_call.1} parent=0 // pred_fallthru
    _
  // Predicated region
  $region10: #{tpu_custom_call.1} parent=0 // pred_check
    _
  $region11: #{tpu_custom_call.1} parent=0 // pred_check_branch
    %23 = sbr.rel (0) target = $region13
  $region12: #{tpu_custom_call.1} parent=0 // pred_region
    _
  $region13: #{tpu_custom_call.1} parent=0 // pred_fallthru
    _
  // Predicated region
  $region14: #{tpu_custom_call.1} parent=0 // pred_check
    _
  $region15: #{tpu_custom_call.1} parent=0 // pred_check_branch
    %25 = sbr.rel (0) target = $region17
  $region16: #{tpu_custom_call.1} parent=0 // pred_region
    _
  $region17: #{tpu_custom_call.1} parent=0 // pred_fallthru
    _
  // Predicated region
  $region18: #{tpu_custom_call.1} parent=0 // pred_check
    _
  $region19: #{tpu_custom_call.1} parent=0 // pred_check_branch
    %27 = sbr.rel (0) target = $region21
  $region20: #{tpu_custom_call.1} parent=0 // pred_region
    _
  $region21: #{tpu_custom_call.1} parent=0 // pred_fallthru
    _
  // Predicated region
  $region22: #{tpu_custom_call.1} parent=0 // pred_check
    _
  $region23: #{tpu_custom_call.1} parent=0 // pred_check_branch
    %29 = sbr.rel (0) target = $region25
  $region24: #{tpu_custom_call.1} parent=0 // pred_region
    _
  $region25: #{tpu_custom_call.1} parent=0 // pred_fallthru
    _
  // Predicated region
  $region26: #{tpu_custom_call.1} parent=0 // pred_check
    _
  $region27: #{tpu_custom_call.1} parent=0 // pred_check_branch
    %31 = sbr.rel (0) target = $region29
  $region28: #{tpu_custom_call.1} parent=0 // pred_region
    _
  $region29: #{tpu_custom_call.1} parent=0 // pred_fallthru
    _
  // Predicated region
  $region30: #{tpu_custom_call.1} parent=0 // pred_check
    _
  $region31: #{tpu_custom_call.1} parent=0 // pred_check_branch
    %33 = sbr.rel (0) target = $region33
  $region32: #{tpu_custom_call.1} parent=0 // pred_region
    _
  $region33: #{tpu_custom_call.1} parent=0 // pred_fallthru
    _
  // Predicated region
  $region34: #{tpu_custom_call.1} parent=0 // pred_check
    _
  $region35: #{tpu_custom_call.1} parent=0 // pred_check_branch
    %35 = sbr.rel (0) target = $region37
  $region36: #{tpu_custom_call.1} parent=0 // pred_region
    _
  $region37: #{tpu_custom_call.1} parent=0 // pred_fallthru
    _
  // Predicated region
  $region38: #{tpu_custom_call.1} parent=0 // pred_check
    _
  $region39: #{tpu_custom_call.1} parent=0 // pred_check_branch
    %37 = sbr.rel (0) target = $region41
  $region40: #{tpu_custom_call.1} parent=0 // pred_region
    _
  $region41: #{tpu_custom_call.1} parent=0 // pred_fallthru
    _
  // Predicated region
  $region42: #{tpu_custom_call.1} parent=0 // pred_check
    _
  $region43: #{tpu_custom_call.1} parent=0 // pred_check_branch
    %39 = sbr.rel (0) target = $region45
  $region44: #{tpu_custom_call.1} parent=0 // pred_region
    _
  $region45: #{tpu_custom_call.1} parent=0 // pred_fallthru
    _
  // Predicated region
  $region46: #{tpu_custom_call.1} parent=0 // pred_check
    _
  $region47: #{tpu_custom_call.1} parent=0 // pred_check_branch
    %41 = sbr.rel (0) target = $region49
  $region48: #{tpu_custom_call.1} parent=0 // pred_region
    _
  $region49: #{tpu_custom_call.1} parent=0 // pred_fallthru
    _
  // Predicated region
  $region50: #{tpu_custom_call.1} parent=0 // pred_check
    _
  $region51: #{tpu_custom_call.1} parent=0 // pred_check_branch
    %43 = sbr.rel (0) target = $region53
  $region52: #{tpu_custom_call.1} parent=0 // pred_region
    _
  $region53: #{tpu_custom_call.1} parent=0 // pred_fallthru
    _
  %v44 = vld [vmem:[%s0] sm:$0xff]
  %v45 = vld [vmem:[%s0 + $0x8] sm:$0xff]
  %v46 = vld [vmem:[%s0 + $0x10] sm:$0xff]
  %v47 = vld [vmem:[%s0 + $0x18] sm:$0xff]
  %v48 = vld [vmem:[%s0 + $0x20] sm:$0xff]
  %v49 = vld [vmem:[%s0 + $0x28] sm:$0xff]
  %v50 = vld [vmem:[%s0 + $0x30] sm:$0xff]
  %v51 = vld [vmem:[%s0 + $0x38] sm:$0xff]
  %v52 = vld [vmem:[%s0 + $0x40] sm:$0x3]
  %v53 = vld [vmem:[%s1] sm:$0x1]
  %v54 = vld [vmem:[%s2] sm:$0x1]
  %vm55 = vcmask 261120
  %v56 = vsel %vm55, %v44, 0.0
  %57 = vadd.xlane.f32.xlu0 %v56
  %v58 = vpop.xlane.xlu0 %57
  %v59 = vsel %vm55, %v45, 0.0
  %60 = vadd.xlane.f32.xlu0 %v59
  %v61 = vpop.xlane.xlu0 %60
  %v62 = vsel %vm55, %v46, 0.0
  %63 = vadd.xlane.f32.xlu0 %v62
  %v64 = vpop.xlane.xlu0 %63
  %v65 = vsel %vm55, %v47, 0.0
  %66 = vadd.xlane.f32.xlu0 %v65
  %v67 = vpop.xlane.xlu0 %66
  %v68 = vsel %vm55, %v48, 0.0
  %69 = vadd.xlane.f32.xlu0 %v68
  %v70 = vpop.xlane.xlu0 %69
  %v71 = vsel %vm55, %v49, 0.0
  %72 = vadd.xlane.f32.xlu0 %v71
  %v73 = vpop.xlane.xlu0 %72
  %v74 = vsel %vm55, %v50, 0.0
  %75 = vadd.xlane.f32.xlu0 %v74
  %v76 = vpop.xlane.xlu0 %75
  %v77 = vsel %vm55, %v51, 0.0
  %78 = vadd.xlane.f32.xlu0 %v77
  %v79 = vpop.xlane.xlu0 %78
  %vm80 = vcmask 254976
  %v81 = vsel %vm80, %v52, 0.0
  %82 = vadd.xlane.f32.xlu0 %v81
  %v83 = vpop.xlane.xlu0 %82
  %v84 = vrcp.pop 32.0
  %v85 = vmul.f32 32.0, %v84
  %v86 = vsub.f32 1.0, %v85
  %v87 = vmul.f32 %v84, %v86
  %v88 = vadd.f32 %v84, %v87
  %vm89 = vweird.f32 %v84
  %v90 = vsel %vm89, %v84, %v88
  %v91 = vmul.f32 %v58, %v90
  %v92 = vmul.f32 %v61, %v90
  %v93 = vmul.f32 %v64, %v90
  %v94 = vmul.f32 %v67, %v90
  %v95 = vmul.f32 %v70, %v90
  %v96 = vmul.f32 %v73, %v90
  %v97 = vmul.f32 %v76, %v90
  %v98 = vmul.f32 %v79, %v90
  %v99 = vmul.f32 %v83, %v90
  %v100 = vsub.f32 %v44, %v91
  %v101 = vsub.f32 %v45, %v92
  %v102 = vsub.f32 %v46, %v93
  %v103 = vsub.f32 %v47, %v94
  %v104 = vsub.f32 %v48, %v95
  %v105 = vsub.f32 %v49, %v96
  %v106 = vsub.f32 %v50, %v97
  %v107 = vsub.f32 %v51, %v98
  %v108 = vsub.f32 %v52, %v99
  %v109 = vmul.f32 %v100, %v100
  %v110 = vmul.f32 %v101, %v101
  %v111 = vmul.f32 %v102, %v102
  %v112 = vmul.f32 %v103, %v103
  %v113 = vmul.f32 %v104, %v104
  %v114 = vmul.f32 %v105, %v105
  %v115 = vmul.f32 %v106, %v106
  %v116 = vmul.f32 %v107, %v107
  %v117 = vmul.f32 %v108, %v108
  %v118 = vsel %vm55, %v109, 0.0
  %119 = vadd.xlane.f32.xlu0 %v118
  %v120 = vpop.xlane.xlu0 %119
  %v121 = vsel %vm55, %v110, 0.0
  %122 = vadd.xlane.f32.xlu0 %v121
  %v123 = vpop.xlane.xlu0 %122
  %v124 = vsel %vm55, %v111, 0.0
  %125 = vadd.xlane.f32.xlu0 %v124
  %v126 = vpop.xlane.xlu0 %125
  %v127 = vsel %vm55, %v112, 0.0
  %128 = vadd.xlane.f32.xlu0 %v127
  %v129 = vpop.xlane.xlu0 %128
  %v130 = vsel %vm55, %v113, 0.0
  %131 = vadd.xlane.f32.xlu0 %v130
  %v132 = vpop.xlane.xlu0 %131
  %v133 = vsel %vm55, %v114, 0.0
  %134 = vadd.xlane.f32.xlu0 %v133
  %v135 = vpop.xlane.xlu0 %134
  %v136 = vsel %vm55, %v115, 0.0
  %137 = vadd.xlane.f32.xlu0 %v136
  %v138 = vpop.xlane.xlu0 %137
  %v139 = vsel %vm55, %v116, 0.0
  %140 = vadd.xlane.f32.xlu0 %v139
  %v141 = vpop.xlane.xlu0 %140
  %v142 = vsel %vm80, %v117, 0.0
  %143 = vadd.xlane.f32.xlu0 %v142
  %v144 = vpop.xlane.xlu0 %143
  %v145 = vmul.f32 %v120, %v90
  %v146 = vmul.f32 %v123, %v90
  %v147 = vmul.f32 %v126, %v90
  %v148 = vmul.f32 %v129, %v90
  %v149 = vmul.f32 %v132, %v90
  %v150 = vmul.f32 %v135, %v90
  %v151 = vmul.f32 %v138, %v90
  %v152 = vmul.f32 %v141, %v90
  %v153 = vmul.f32 %v144, %v90
  %v154 = vadd.f32 %v145, 1e-05
  %v155 = vadd.f32 %v146, 1e-05
  %v156 = vadd.f32 %v147, 1e-05
  %v157 = vadd.f32 %v148, 1e-05
  %v158 = vadd.f32 %v149, 1e-05
  %v159 = vadd.f32 %v150, 1e-05
  %v160 = vadd.f32 %v151, 1e-05
  %v161 = vadd.f32 %v152, 1e-05
  %v162 = vadd.f32 %v153, 1e-05
  %v163 = vrsqrt.pop %v154
  %v164 = vmul.f32 %v163, %v154
  %v165 = vmul.f32 %v164, %v163
  %v166 = vmul.f32 0.5, %v165
  %v167 = vsub.f32 1.5, %v166
  %v168 = vmul.f32 %v163, %v167
  %vm169 = vweird.f32 %v154
  %vm170 = vweird.f32 %v163
  %vm171 = vmor %vm169, %vm170
  %v172 = vsel %vm171, %v163, %v168
  %v173 = vrsqrt.pop %v155
  %v174 = vmul.f32 %v173, %v155
  %v175 = vmul.f32 %v174, %v173
  %v176 = vmul.f32 0.5, %v175
  %v177 = vsub.f32 1.5, %v176
  %v178 = vmul.f32 %v173, %v177
  %vm179 = vweird.f32 %v155
  %vm180 = vweird.f32 %v173
  %vm181 = vmor %vm179, %vm180
  %v182 = vsel %vm181, %v173, %v178
  %v183 = vrsqrt.pop %v156
  %v184 = vmul.f32 %v183, %v156
  %v185 = vmul.f32 %v184, %v183
  %v186 = vmul.f32 0.5, %v185
  %v187 = vsub.f32 1.5, %v186
  %v188 = vmul.f32 %v183, %v187
  %vm189 = vweird.f32 %v156
  %vm190 = vweird.f32 %v183
  %vm191 = vmor %vm189, %vm190
  %v192 = vsel %vm191, %v183, %v188
  %v193 = vrsqrt.pop %v157
  %v194 = vmul.f32 %v193, %v157
  %v195 = vmul.f32 %v194, %v193
  %v196 = vmul.f32 0.5, %v195
  %v197 = vsub.f32 1.5, %v196
  %v198 = vmul.f32 %v193, %v197
  %vm199 = vweird.f32 %v157
  %vm200 = vweird.f32 %v193
  %vm201 = vmor %vm199, %vm200
  %v202 = vsel %vm201, %v193, %v198
  %v203 = vrsqrt.pop %v158
  %v204 = vmul.f32 %v203, %v158
  %v205 = vmul.f32 %v204, %v203
  %v206 = vmul.f32 0.5, %v205
  %v207 = vsub.f32 1.5, %v206
  %v208 = vmul.f32 %v203, %v207
  %vm209 = vweird.f32 %v158
  %vm210 = vweird.f32 %v203
  %vm211 = vmor %vm209, %vm210
  %v212 = vsel %vm211, %v203, %v208
  %v213 = vrsqrt.pop %v159
  %v214 = vmul.f32 %v213, %v159
  %v215 = vmul.f32 %v214, %v213
  %v216 = vmul.f32 0.5, %v215
  %v217 = vsub.f32 1.5, %v216
  %v218 = vmul.f32 %v213, %v217
  %vm219 = vweird.f32 %v159
  %vm220 = vweird.f32 %v213
  %vm221 = vmor %vm219, %vm220
  %v222 = vsel %vm221, %v213, %v218
  %v223 = vrsqrt.pop %v160
  %v224 = vmul.f32 %v223, %v160
  %v225 = vmul.f32 %v224, %v223
  %v226 = vmul.f32 0.5, %v225
  %v227 = vsub.f32 1.5, %v226
  %v228 = vmul.f32 %v223, %v227
  %vm229 = vweird.f32 %v160
  %vm230 = vweird.f32 %v223
  %vm231 = vmor %vm229, %vm230
  %v232 = vsel %vm231, %v223, %v228
  %v233 = vrsqrt.pop %v161
  %v234 = vmul.f32 %v233, %v161
  %v235 = vmul.f32 %v234, %v233
  %v236 = vmul.f32 0.5, %v235
  %v237 = vsub.f32 1.5, %v236
  %v238 = vmul.f32 %v233, %v237
  %vm239 = vweird.f32 %v161
  %vm240 = vweird.f32 %v233
  %vm241 = vmor %vm239, %vm240
  %v242 = vsel %vm241, %v233, %v238
  %v243 = vrsqrt.pop %v162
  %v244 = vmul.f32 %v243, %v162
  %v245 = vmul.f32 %v244, %v243
  %v246 = vmul.f32 0.5, %v245
  %v247 = vsub.f32 1.5, %v246
  %v248 = vmul.f32 %v243, %v247
  %vm249 = vweird.f32 %v162
  %vm250 = vweird.f32 %v243
  %vm251 = vmor %vm249, %vm250
  %v252 = vsel %vm251, %v243, %v248
  %v253 = vmul.f32 %v100, %v172
  %v254 = vmul.f32 %v101, %v182
  %v255 = vmul.f32 %v102, %v192
  %v256 = vmul.f32 %v103, %v202
  %v257 = vmul.f32 %v104, %v212
  %v258 = vmul.f32 %v105, %v222
  %v259 = vmul.f32 %v106, %v232
  %v260 = vmul.f32 %v107, %v242
  %v261 = vmul.f32 %v108, %v252
  %v263 = vperm.slane %v53, 0
  %v265 = vmul.f32 %v253, %v263
  %v266 = vmul.f32 %v254, %v263
  %v267 = vmul.f32 %v255, %v263
  %v268 = vmul.f32 %v256, %v263
  %v269 = vmul.f32 %v257, %v263
  %v270 = vmul.f32 %v258, %v263
  %v271 = vmul.f32 %v259, %v263
  %v272 = vmul.f32 %v260, %v263
  %v273 = vmul.f32 %v261, %v263
  %v275 = vperm.slane %v54, 0
  %v277 = vadd.f32 %v265, %v275
  %v278 = vadd.f32 %v266, %v275
  %v279 = vadd.f32 %v267, %v275
  %v280 = vadd.f32 %v268, %v275
  %v281 = vadd.f32 %v269, %v275
  %v282 = vadd.f32 %v270, %v275
  %v283 = vadd.f32 %v271, %v275
  %v284 = vadd.f32 %v272, %v275
  %v285 = vadd.f32 %v273, %v275
  %v286 = vld [vmem:[%s3] sm:$0xff]
  %v287 = vld [vmem:[%s3 + $0x8] sm:$0xff]
  %v288 = vld [vmem:[%s3 + $0x10] sm:$0xff]
  %v289 = vld [vmem:[%s3 + $0x18] sm:$0xff]
  %v290 = vld [vmem:[%s4] sm:$0x1]
  %v292 = vperm.slane %v290, 0
  %v295 = vsel %vm55, %v277, 0
  %v298 = vsel %vm55, %v278, 0
  %v301 = vsel %vm55, %v279, 0
  %v304 = vsel %vm55, %v280, 0
  %v307 = vsel %vm55, %v281, 0
  %v310 = vsel %vm55, %v282, 0
  %v313 = vsel %vm55, %v283, 0
  %v316 = vsel %vm55, %v284, 0
  %v319 = vsel %vm55, %v285, 0
  %321 = vmatpush.msra.mxu0 0.0
  %322 = vmatpush.msra.mxu0 0.0
  %323 = vmatpush.msra.mxu0 0.0
  %324 = vmatpush.msra.mxu0 0.0
  %325 = vmatpush.msra.mxu0 0.0
  %326 = vmatpush.msra.mxu0 0.0
  %327 = vmatpush.msra.mxu0 0.0
  %328 = vmatpush.msra.mxu0 0.0
  %329 = vmatpush.msra.mxu0 0.0
  %330 = vmatpush.msra.mxu0 0.0
  %331 = vmatpush.msra.mxu0 0.0
  %332 = vmatpush.msra.mxu0 0.0
  %333 = vmatpush.msra.mxu0 %v289
  %334 = vmatpush.msra.mxu0 %v288
  %335 = vmatpush.msra.mxu0 %v287
  %336 = vmatpush.msra.mxu0 %v286
  %337 = vmatmul.f32.gmra.mxu0 %v295
  %v338 = vpop.f32.mrf.mxu0
  %v339 = vadd.f32 %v292, %v338
  %340 = vmatmul.f32.gmra.mxu0 %v298
  %v341 = vpop.f32.mrf.mxu0
  %v342 = vadd.f32 %v292, %v341
  %343 = vmatmul.f32.gmra.mxu0 %v301
  %v344 = vpop.f32.mrf.mxu0
  %v345 = vadd.f32 %v292, %v344
  %346 = vmatmul.f32.gmra.mxu0 %v304
  %v347 = vpop.f32.mrf.mxu0
  %v348 = vadd.f32 %v292, %v347
  %349 = vmatmul.f32.gmra.mxu0 %v307
  %v350 = vpop.f32.mrf.mxu0
  %v351 = vadd.f32 %v292, %v350
  %352 = vmatmul.f32.gmra.mxu0 %v310
  %v353 = vpop.f32.mrf.mxu0
  %v354 = vadd.f32 %v292, %v353
  %355 = vmatmul.f32.gmra.mxu0 %v313
  %v356 = vpop.f32.mrf.mxu0
  %v357 = vadd.f32 %v292, %v356
  %358 = vmatmul.f32.gmra.mxu0 %v316
  %v359 = vpop.f32.mrf.mxu0
  %v360 = vadd.f32 %v292, %v359
  %361 = vmatmul.f32.gmra.mxu0 %v319
  %v362 = vpop.f32.mrf.mxu0
  %v363 = vadd.f32 %v292, %v362
  %364 = vdwg.mxu0
  %v365 = vlaneseq
  %v366 = vshrl.u32 %v365, 7
  %v367 = vadd.s32 %v366, 8
  %v368 = vadd.s32 %v366, 16
  %v369 = vadd.s32 %v366, 24
  %v370 = vadd.s32 %v366, 32
  %vm371 = vcmp.gt.s32.totalorder %v366, 0
  %vm372 = vcmp.gt.s32.totalorder %v367, 0
  %vm373 = vcmp.gt.s32.totalorder %v368, 0
  %vm374 = vcmp.gt.s32.totalorder %v369, 0
  %vm375 = vcmp.gt.s32.totalorder %v370, 0
  %v376 = vsel %vm371, 1, 0
  %v377 = vsel %vm372, 1, 0
  %v378 = vsel %vm373, 1, 0
  %v379 = vsel %vm374, 1, 0
  %v380 = vsel %vm375, 1, 0
  %v381 = vcvt.s32.f32 %v376
  %v382 = vcvt.s32.f32 %v377
  %v383 = vcvt.s32.f32 %v378
  %v384 = vcvt.s32.f32 %v379
  %v385 = vcvt.s32.f32 %v380
  %v386 = vld [vmem:[%s5] sm:$0xff]
  %v387 = vld [vmem:[%s5 + $0x8] sm:$0xff]
  %v388 = vld [vmem:[%s5 + $0x10] sm:$0xff]
  %v389 = vld [vmem:[%s5 + $0x18] sm:$0xff]
  %395 = vrot.lane.b32.xlu0 %v339, 96
  %v396 = vpop.permute.xlu0 %395
  %397 = vrot.lane.b32.xlu0 %v342, 96
  %v398 = vpop.permute.xlu0 %397
  %399 = vrot.lane.b32.xlu0 %v345, 96
  %v400 = vpop.permute.xlu0 %399
  %401 = vrot.lane.b32.xlu0 %v348, 96
  %v402 = vpop.permute.xlu0 %401
  %403 = vrot.lane.b32.xlu0 %v351, 96
  %v404 = vpop.permute.xlu0 %403
  %vm405 = vcmask 64512
  %v406 = vsel %vm405, %v339, 0
  %v408 = vsel %vm405, %v342, 0
  %v410 = vsel %vm405, %v345, 0
  %v412 = vsel %vm405, %v348, 0
  %v414 = vsel %vm405, %v351, 0
  %v416 = vsel %vm405, %v396, 0
  %v418 = vsel %vm405, %v398, 0
  %v420 = vsel %vm405, %v400, 0
  %v422 = vsel %vm405, %v402, 0
  %v424 = vsel %vm405, %v404, 0
  %426 = vmatpush.xpose.msra.mxu0 0.0
  %427 = vmatpush.xpose.msra.mxu0 0.0
  %428 = vmatpush.xpose.msra.mxu0 0.0
  %429 = vmatpush.xpose.msra.mxu0 0.0
  %430 = vmatpush.xpose.msra.mxu0 0.0
  %431 = vmatpush.xpose.msra.mxu0 0.0
  %432 = vmatpush.xpose.msra.mxu0 0.0
  %433 = vmatpush.xpose.msra.mxu0 0.0
  %434 = vmatpush.xpose.msra.mxu0 0.0
  %435 = vmatpush.xpose.msra.mxu0 0.0
  %436 = vmatpush.xpose.msra.mxu0 0.0
  %437 = vmatpush.xpose.msra.mxu0 %v424
  %438 = vmatpush.xpose.msra.mxu0 %v422
  %439 = vmatpush.xpose.msra.mxu0 %v420
  %440 = vmatpush.xpose.msra.mxu0 %v418
  %441 = vmatpush.xpose.msra.mxu0 %v416
  %442 = vmatmul.f32.gmra.mxu0 %v406
  %v443 = vpop.f32.mrf.mxu0
  %v444 = vadd.f32 0.0, %v443
  %445 = vmatmul.f32.gmra.mxu0 %v408
  %v446 = vpop.f32.mrf.mxu0
  %v447 = vadd.f32 0.0, %v446
  %448 = vmatmul.f32.gmra.mxu0 %v410
  %v449 = vpop.f32.mrf.mxu0
  %v450 = vadd.f32 0.0, %v449
  %451 = vmatmul.f32.gmra.mxu0 %v412
  %v452 = vpop.f32.mrf.mxu0
  %v453 = vadd.f32 0.0, %v452
  %454 = vmatmul.f32.gmra.mxu0 %v414
  %v455 = vpop.f32.mrf.mxu0
  %v456 = vadd.f32 0.0, %v455
  %457 = vdwg.mxu0
  %vm458 = vcmask 269312
  %v459 = vsel %vm458, %v444, -inf
  %460 = vmax.xlane.f32.xlu0 %v459
  %v461 = vpop.xlane.xlu0 %460
  %v462 = vsel %vm458, %v447, -inf
  %463 = vmax.xlane.f32.xlu0 %v462
  %v464 = vpop.xlane.xlu0 %463
  %v465 = vsel %vm458, %v450, -inf
  %466 = vmax.xlane.f32.xlu0 %v465
  %v467 = vpop.xlane.xlu0 %466
  %v468 = vsel %vm458, %v453, -inf
  %469 = vmax.xlane.f32.xlu0 %v468
  %v470 = vpop.xlane.xlu0 %469
  %vm471 = vcmask 262144
  %v472 = vsel %vm471, %v456, -inf
  %473 = vmax.xlane.f32.xlu0 %v472
  %v474 = vpop.xlane.xlu0 %473
  %v475 = vsub.f32 %v444, %v461
  %v476 = vsub.f32 %v447, %v464
  %v477 = vsub.f32 %v450, %v467
  %v478 = vsub.f32 %v453, %v470
  %v479 = vsub.f32 %v456, %v474
  %v480 = vmul.f32 %v475, 1.442695
  %v481 = vpow.pop %v480
  %v482 = vmul.f32 %v476, 1.442695
  %v483 = vpow.pop %v482
  %v484 = vmul.f32 %v477, 1.442695
  %v485 = vpow.pop %v484
  %v486 = vmul.f32 %v478, 1.442695
  %v487 = vpow.pop %v486
  %v488 = vmul.f32 %v479, 1.442695
  %v489 = vpow.pop %v488
  %v490 = vsel %vm458, %v481, 0.0
  %491 = vadd.xlane.f32.xlu0 %v490
  %v492 = vpop.xlane.xlu0 %491
  %v493 = vsel %vm458, %v483, 0.0
  %494 = vadd.xlane.f32.xlu0 %v493
  %v495 = vpop.xlane.xlu0 %494
  %v496 = vsel %vm458, %v485, 0.0
  %497 = vadd.xlane.f32.xlu0 %v496
  %v498 = vpop.xlane.xlu0 %497
  %v499 = vsel %vm458, %v487, 0.0
  %500 = vadd.xlane.f32.xlu0 %v499
  %v501 = vpop.xlane.xlu0 %500
  %v502 = vsel %vm471, %v489, 0.0
  %503 = vadd.xlane.f32.xlu0 %v502
  %v504 = vpop.xlane.xlu0 %503
  %v505 = vrcp.pop %v492
  %v506 = vrcp.pop %v495
  %v507 = vrcp.pop %v498
  %v508 = vrcp.pop %v501
  %v509 = vrcp.pop %v504
  %v510 = vmul.f32 %v481, %v505
  %v511 = vmul.f32 %v483, %v506
  %v512 = vmul.f32 %v485, %v507
  %v513 = vmul.f32 %v487, %v508
  %v514 = vmul.f32 %v489, %v509
  %v515 = vmul.f32 %v381, %v339
  %v516 = vmul.f32 %v382, %v342
  %v517 = vmul.f32 %v383, %v345
  %v518 = vmul.f32 %v384, %v348
  %v519 = vmul.f32 %v385, %v351
  %520 = vrot.lane.b32.xlu0 %v339, 64
  %v521 = vpop.permute.xlu0 %520
  %522 = vrot.lane.b32.xlu0 %v342, 64
  %v523 = vpop.permute.xlu0 %522
  %524 = vrot.lane.b32.xlu0 %v345, 64
  %v525 = vpop.permute.xlu0 %524
  %526 = vrot.lane.b32.xlu0 %v348, 64
  %v527 = vpop.permute.xlu0 %526
  %528 = vrot.lane.b32.xlu0 %v351, 64
  %v529 = vpop.permute.xlu0 %528
  %v535 = vsel %vm458, %v510, 0
  %v538 = vsel %vm458, %v511, 0
  %v541 = vsel %vm458, %v512, 0
  %v544 = vsel %vm458, %v513, 0
  %v547 = vsel %vm458, %v514, 0
  %vm549 = vcmask 1040384
  %v550 = vsel %vm549, %v529, 0
  %552 = vmatpush.msra.mxu0 0.0
  %553 = vmatpush.msra.mxu0 0.0
  %554 = vmatpush.msra.mxu0 0.0
  %555 = vmatpush.msra.mxu0 0.0
  %556 = vmatpush.msra.mxu0 0.0
  %557 = vmatpush.msra.mxu0 0.0
  %558 = vmatpush.msra.mxu0 0.0
  %559 = vmatpush.msra.mxu0 0.0
  %560 = vmatpush.msra.mxu0 0.0
  %561 = vmatpush.msra.mxu0 0.0
  %562 = vmatpush.msra.mxu0 0.0
  %563 = vmatpush.msra.mxu0 %v550
  %564 = vmatpush.msra.mxu0 %v527
  %565 = vmatpush.msra.mxu0 %v525
  %566 = vmatpush.msra.mxu0 %v523
  %567 = vmatpush.msra.mxu0 %v521
  %568 = vmatmul.f32.gmra.mxu0 %v535
  %v569 = vpop.f32.mrf.mxu0
  %v570 = vadd.f32 %v515, %v569
  %571 = vmatmul.f32.gmra.mxu0 %v538
  %v572 = vpop.f32.mrf.mxu0
  %v573 = vadd.f32 %v516, %v572
  %574 = vmatmul.f32.gmra.mxu0 %v541
  %v575 = vpop.f32.mrf.mxu0
  %v576 = vadd.f32 %v517, %v575
  %577 = vmatmul.f32.gmra.mxu0 %v544
  %v578 = vpop.f32.mrf.mxu0
  %v579 = vadd.f32 %v518, %v578
  %580 = vmatmul.f32.gmra.mxu0 %v547
  %v581 = vpop.f32.mrf.mxu0
  %v582 = vadd.f32 %v519, %v581
  %583 = vdwg.mxu0
  %584 = vrot.lane.b32.xlu0 %v339, 120
  %v585 = vpop.permute.xlu0 %584
  %586 = vrot.lane.b32.xlu0 %v342, 120
  %v587 = vpop.permute.xlu0 %586
  %588 = vrot.lane.b32.xlu0 %v345, 120
  %v589 = vpop.permute.xlu0 %588
  %590 = vrot.lane.b32.xlu0 %v348, 120
  %v591 = vpop.permute.xlu0 %590
  %592 = vrot.lane.b32.xlu0 %v351, 120
  %v593 = vpop.permute.xlu0 %592
  %594 = vrot.lane.b32.xlu0 %v339, 88
  %v595 = vpop.permute.xlu0 %594
  %596 = vrot.lane.b32.xlu0 %v342, 88
  %v597 = vpop.permute.xlu0 %596
  %598 = vrot.lane.b32.xlu0 %v345, 88
  %v599 = vpop.permute.xlu0 %598
  %600 = vrot.lane.b32.xlu0 %v348, 88
  %v601 = vpop.permute.xlu0 %600
  %602 = vrot.lane.b32.xlu0 %v351, 88
  %v603 = vpop.permute.xlu0 %602
  %v604 = vsel %vm405, %v585, 0
  %v606 = vsel %vm405, %v587, 0
  %v608 = vsel %vm405, %v589, 0
  %v610 = vsel %vm405, %v591, 0
  %v612 = vsel %vm405, %v593, 0
  %v614 = vsel %vm405, %v595, 0
  %v616 = vsel %vm405, %v597, 0
  %v618 = vsel %vm405, %v599, 0
  %v620 = vsel %vm405, %v601, 0
  %v622 = vsel %vm405, %v603, 0
  %624 = vmatpush.xpose.msra.mxu0 0.0
  %625 = vmatpush.xpose.msra.mxu0 0.0
  %626 = vmatpush.xpose.msra.mxu0 0.0
  %627 = vmatpush.xpose.msra.mxu0 0.0
  %628 = vmatpush.xpose.msra.mxu0 0.0
  %629 = vmatpush.xpose.msra.mxu0 0.0
  %630 = vmatpush.xpose.msra.mxu0 0.0
  %631 = vmatpush.xpose.msra.mxu0 0.0
  %632 = vmatpush.xpose.msra.mxu0 0.0
  %633 = vmatpush.xpose.msra.mxu0 0.0
  %634 = vmatpush.xpose.msra.mxu0 0.0
  %635 = vmatpush.xpose.msra.mxu0 %v622
  %636 = vmatpush.xpose.msra.mxu0 %v620
  %637 = vmatpush.xpose.msra.mxu0 %v618
  %638 = vmatpush.xpose.msra.mxu0 %v616
  %639 = vmatpush.xpose.msra.mxu0 %v614
  %640 = vmatmul.f32.gmra.mxu0 %v604
  %v641 = vpop.f32.mrf.mxu0
  %v642 = vadd.f32 0.0, %v641
  %643 = vmatmul.f32.gmra.mxu0 %v606
  %v644 = vpop.f32.mrf.mxu0
  %v645 = vadd.f32 0.0, %v644
  %646 = vmatmul.f32.gmra.mxu0 %v608
  %v647 = vpop.f32.mrf.mxu0
  %v648 = vadd.f32 0.0, %v647
  %649 = vmatmul.f32.gmra.mxu0 %v610
  %v650 = vpop.f32.mrf.mxu0
  %v651 = vadd.f32 0.0, %v650
  %652 = vmatmul.f32.gmra.mxu0 %v612
  %v653 = vpop.f32.mrf.mxu0
  %v654 = vadd.f32 0.0, %v653
  %655 = vdwg.mxu0
  %v656 = vsel %vm458, %v642, -inf
  %657 = vmax.xlane.f32.xlu0 %v656
  %v658 = vpop.xlane.xlu0 %657
  %v659 = vsel %vm458, %v645, -inf
  %660 = vmax.xlane.f32.xlu0 %v659
  %v661 = vpop.xlane.xlu0 %660
  %v662 = vsel %vm458, %v648, -inf
  %663 = vmax.xlane.f32.xlu0 %v662
  %v664 = vpop.xlane.xlu0 %663
  %v665 = vsel %vm458, %v651, -inf
  %666 = vmax.xlane.f32.xlu0 %v665
  %v667 = vpop.xlane.xlu0 %666
  %v668 = vsel %vm471, %v654, -inf
  %669 = vmax.xlane.f32.xlu0 %v668
  %v670 = vpop.xlane.xlu0 %669
  %v671 = vsub.f32 %v642, %v658
  %v672 = vsub.f32 %v645, %v661
  %v673 = vsub.f32 %v648, %v664
  %v674 = vsub.f32 %v651, %v667
  %v675 = vsub.f32 %v654, %v670
  %v676 = vmul.f32 %v671, 1.442695
  %v677 = vpow.pop %v676
  %v678 = vmul.f32 %v672, 1.442695
  %v679 = vpow.pop %v678
  %v680 = vmul.f32 %v673, 1.442695
  %v681 = vpow.pop %v680
  %v682 = vmul.f32 %v674, 1.442695
  %v683 = vpow.pop %v682
  %v684 = vmul.f32 %v675, 1.442695
  %v685 = vpow.pop %v684
  %v686 = vsel %vm458, %v677, 0.0
  %687 = vadd.xlane.f32.xlu0 %v686
  %v688 = vpop.xlane.xlu0 %687
  %v689 = vsel %vm458, %v679, 0.0
  %690 = vadd.xlane.f32.xlu0 %v689
  %v691 = vpop.xlane.xlu0 %690
  %v692 = vsel %vm458, %v681, 0.0
  %693 = vadd.xlane.f32.xlu0 %v692
  %v694 = vpop.xlane.xlu0 %693
  %v695 = vsel %vm458, %v683, 0.0
  %696 = vadd.xlane.f32.xlu0 %v695
  %v697 = vpop.xlane.xlu0 %696
  %v698 = vsel %vm471, %v685, 0.0
  %699 = vadd.xlane.f32.xlu0 %v698
  %v700 = vpop.xlane.xlu0 %699
  %v701 = vrcp.pop %v688
  %v702 = vrcp.pop %v691
  %v703 = vrcp.pop %v694
  %v704 = vrcp.pop %v697
  %v705 = vrcp.pop %v700
  %v706 = vmul.f32 %v677, %v701
  %v707 = vmul.f32 %v679, %v702
  %v708 = vmul.f32 %v681, %v703
  %v709 = vmul.f32 %v683, %v704
  %v710 = vmul.f32 %v685, %v705
  %711 = vrot.lane.b32.xlu0 %v339, 56
  %v712 = vpop.permute.xlu0 %711
  %713 = vrot.lane.b32.xlu0 %v342, 56
  %v714 = vpop.permute.xlu0 %713
  %715 = vrot.lane.b32.xlu0 %v345, 56
  %v716 = vpop.permute.xlu0 %715
  %717 = vrot.lane.b32.xlu0 %v348, 56
  %v718 = vpop.permute.xlu0 %717
  %719 = vrot.lane.b32.xlu0 %v351, 56
  %v720 = vpop.permute.xlu0 %719
  %730 = vrot.lane.b32.xlu0 %v515, 120
  %v731 = vpop.permute.xlu0 %730
  %732 = vrot.lane.b32.xlu0 %v516, 120
  %v733 = vpop.permute.xlu0 %732
  %734 = vrot.lane.b32.xlu0 %v517, 120
  %v735 = vpop.permute.xlu0 %734
  %736 = vrot.lane.b32.xlu0 %v518, 120
  %v737 = vpop.permute.xlu0 %736
  %738 = vrot.lane.b32.xlu0 %v519, 120
  %v739 = vpop.permute.xlu0 %738
  %v746 = vsel %vm458, %v706, 0
  %v749 = vsel %vm458, %v707, 0
  %v752 = vsel %vm458, %v708, 0
  %v755 = vsel %vm458, %v709, 0
  %v758 = vsel %vm458, %v710, 0
  %v760 = vsel %vm549, %v720, 0
  %762 = vmatpush.msra.mxu0 0.0
  %763 = vmatpush.msra.mxu0 0.0
  %764 = vmatpush.msra.mxu0 0.0
  %765 = vmatpush.msra.mxu0 0.0
  %766 = vmatpush.msra.mxu0 0.0
  %767 = vmatpush.msra.mxu0 0.0
  %768 = vmatpush.msra.mxu0 0.0
  %769 = vmatpush.msra.mxu0 0.0
  %770 = vmatpush.msra.mxu0 0.0
  %771 = vmatpush.msra.mxu0 0.0
  %772 = vmatpush.msra.mxu0 0.0
  %773 = vmatpush.msra.mxu0 %v760
  %774 = vmatpush.msra.mxu0 %v718
  %775 = vmatpush.msra.mxu0 %v716
  %776 = vmatpush.msra.mxu0 %v714
  %777 = vmatpush.msra.mxu0 %v712
  %778 = vmatmul.f32.gmra.mxu0 %v746
  %v779 = vpop.f32.mrf.mxu0
  %v780 = vadd.f32 %v731, %v779
  %781 = vmatmul.f32.gmra.mxu0 %v749
  %v782 = vpop.f32.mrf.mxu0
  %v783 = vadd.f32 %v733, %v782
  %784 = vmatmul.f32.gmra.mxu0 %v752
  %v785 = vpop.f32.mrf.mxu0
  %v786 = vadd.f32 %v735, %v785
  %787 = vmatmul.f32.gmra.mxu0 %v755
  %v788 = vpop.f32.mrf.mxu0
  %v789 = vadd.f32 %v737, %v788
  %790 = vmatmul.f32.gmra.mxu0 %v758
  %v791 = vpop.f32.mrf.mxu0
  %v792 = vadd.f32 %v739, %v791
  %793 = vdwg.mxu0
  %v795 = vsel %vm405, %v780, 0
  %v798 = vsel %vm405, %v783, 0
  %v801 = vsel %vm405, %v786, 0
  %v804 = vsel %vm405, %v789, 0
  %v807 = vsel %vm405, %v792, 0
  %809 = vmatpush.msra.mxu0 0.0
  %810 = vmatpush.msra.mxu0 0.0
  %811 = vmatpush.msra.mxu0 0.0
  %812 = vmatpush.msra.mxu0 0.0
  %813 = vmatpush.msra.mxu0 0.0
  %814 = vmatpush.msra.mxu0 0.0
  %815 = vmatpush.msra.mxu0 0.0
  %816 = vmatpush.msra.mxu0 0.0
  %817 = vmatpush.msra.mxu0 0.0
  %818 = vmatpush.msra.mxu0 0.0
  %819 = vmatpush.msra.mxu0 0.0
  %820 = vmatpush.msra.mxu0 0.0
  %821 = vmatpush.msra.mxu0 0.0
  %822 = vmatpush.msra.mxu0 0.0
  %823 = vmatpush.msra.mxu0 0.0
  %824 = vmatpush.msra.mxu0 %v387
  %825 = vmatmul.f32.gmra.mxu0 %v795
  %v826 = vpop.f32.mrf.mxu0
  %v827 = vadd.f32 0.0, %v826
  %828 = vmatmul.f32.gmra.mxu0 %v798
  %v829 = vpop.f32.mrf.mxu0
  %v830 = vadd.f32 0.0, %v829
  %831 = vmatmul.f32.gmra.mxu0 %v801
  %v832 = vpop.f32.mrf.mxu0
  %v833 = vadd.f32 0.0, %v832
  %834 = vmatmul.f32.gmra.mxu0 %v804
  %v835 = vpop.f32.mrf.mxu0
  %v836 = vadd.f32 0.0, %v835
  %837 = vmatmul.f32.gmra.mxu0 %v807
  %v838 = vpop.f32.mrf.mxu0
  %v839 = vadd.f32 0.0, %v838
  %840 = vdwg.mxu0
  %v842 = vsel %vm405, %v570, 0
  %v845 = vsel %vm405, %v573, 0
  %v848 = vsel %vm405, %v576, 0
  %v851 = vsel %vm405, %v579, 0
  %v854 = vsel %vm405, %v582, 0
  %856 = vmatpush.msra.mxu0 0.0
  %857 = vmatpush.msra.mxu0 0.0
  %858 = vmatpush.msra.mxu0 0.0
  %859 = vmatpush.msra.mxu0 0.0
  %860 = vmatpush.msra.mxu0 0.0
  %861 = vmatpush.msra.mxu0 0.0
  %862 = vmatpush.msra.mxu0 0.0
  %863 = vmatpush.msra.mxu0 0.0
  %864 = vmatpush.msra.mxu0 0.0
  %865 = vmatpush.msra.mxu0 0.0
  %866 = vmatpush.msra.mxu0 0.0
  %867 = vmatpush.msra.mxu0 0.0
  %868 = vmatpush.msra.mxu0 0.0
  %869 = vmatpush.msra.mxu0 0.0
  %870 = vmatpush.msra.mxu0 0.0
  %871 = vmatpush.msra.mxu0 %v386
  %872 = vmatmul.f32.gmra.mxu0 %v842
  %v873 = vpop.f32.mrf.mxu0
  %v874 = vadd.f32 %v827, %v873
  %875 = vmatmul.f32.gmra.mxu0 %v845
  %v876 = vpop.f32.mrf.mxu0
  %v877 = vadd.f32 %v830, %v876
  %878 = vmatmul.f32.gmra.mxu0 %v848
  %v879 = vpop.f32.mrf.mxu0
  %v880 = vadd.f32 %v833, %v879
  %881 = vmatmul.f32.gmra.mxu0 %v851
  %v882 = vpop.f32.mrf.mxu0
  %v883 = vadd.f32 %v836, %v882
  %884 = vmatmul.f32.gmra.mxu0 %v854
  %v885 = vpop.f32.mrf.mxu0
  %v886 = vadd.f32 %v839, %v885
  %887 = vdwg.mxu0
  %888 = vrot.lane.b32.xlu0 %v339, 112
  %v889 = vpop.permute.xlu0 %888
  %890 = vrot.lane.b32.xlu0 %v342, 112
  %v891 = vpop.permute.xlu0 %890
  %892 = vrot.lane.b32.xlu0 %v345, 112
  %v893 = vpop.permute.xlu0 %892
  %894 = vrot.lane.b32.xlu0 %v348, 112
  %v895 = vpop.permute.xlu0 %894
  %896 = vrot.lane.b32.xlu0 %v351, 112
  %v897 = vpop.permute.xlu0 %896
  %898 = vrot.lane.b32.xlu0 %v339, 80
  %v899 = vpop.permute.xlu0 %898
  %900 = vrot.lane.b32.xlu0 %v342, 80
  %v901 = vpop.permute.xlu0 %900
  %902 = vrot.lane.b32.xlu0 %v345, 80
  %v903 = vpop.permute.xlu0 %902
  %904 = vrot.lane.b32.xlu0 %v348, 80
  %v905 = vpop.permute.xlu0 %904
  %906 = vrot.lane.b32.xlu0 %v351, 80
  %v907 = vpop.permute.xlu0 %906
  %v908 = vsel %vm405, %v889, 0
  %v910 = vsel %vm405, %v891, 0
  %v912 = vsel %vm405, %v893, 0
  %v914 = vsel %vm405, %v895, 0
  %v916 = vsel %vm405, %v897, 0
  %v918 = vsel %vm405, %v899, 0
  %v920 = vsel %vm405, %v901, 0
  %v922 = vsel %vm405, %v903, 0
  %v924 = vsel %vm405, %v905, 0
  %v926 = vsel %vm405, %v907, 0
  %928 = vmatpush.xpose.msra.mxu0 0.0
  %929 = vmatpush.xpose.msra.mxu0 0.0
  %930 = vmatpush.xpose.msra.mxu0 0.0
  %931 = vmatpush.xpose.msra.mxu0 0.0
  %932 = vmatpush.xpose.msra.mxu0 0.0
  %933 = vmatpush.xpose.msra.mxu0 0.0
  %934 = vmatpush.xpose.msra.mxu0 0.0
  %935 = vmatpush.xpose.msra.mxu0 0.0
  %936 = vmatpush.xpose.msra.mxu0 0.0
  %937 = vmatpush.xpose.msra.mxu0 0.0
  %938 = vmatpush.xpose.msra.mxu0 0.0
  %939 = vmatpush.xpose.msra.mxu0 %v926
  %940 = vmatpush.xpose.msra.mxu0 %v924
  %941 = vmatpush.xpose.msra.mxu0 %v922
  %942 = vmatpush.xpose.msra.mxu0 %v920
  %943 = vmatpush.xpose.msra.mxu0 %v918
  %944 = vmatmul.f32.gmra.mxu0 %v908
  %v945 = vpop.f32.mrf.mxu0
  %v946 = vadd.f32 0.0, %v945
  %947 = vmatmul.f32.gmra.mxu0 %v910
  %v948 = vpop.f32.mrf.mxu0
  %v949 = vadd.f32 0.0, %v948
  %950 = vmatmul.f32.gmra.mxu0 %v912
  %v951 = vpop.f32.mrf.mxu0
  %v952 = vadd.f32 0.0, %v951
  %953 = vmatmul.f32.gmra.mxu0 %v914
  %v954 = vpop.f32.mrf.mxu0
  %v955 = vadd.f32 0.0, %v954
  %956 = vmatmul.f32.gmra.mxu0 %v916
  %v957 = vpop.f32.mrf.mxu0
  %v958 = vadd.f32 0.0, %v957
  %959 = vdwg.mxu0
  %v960 = vsel %vm458, %v946, -inf
  %961 = vmax.xlane.f32.xlu0 %v960
  %v962 = vpop.xlane.xlu0 %961
  %v963 = vsel %vm458, %v949, -inf
  %964 = vmax.xlane.f32.xlu0 %v963
  %v965 = vpop.xlane.xlu0 %964
  %v966 = vsel %vm458, %v952, -inf
  %967 = vmax.xlane.f32.xlu0 %v966
  %v968 = vpop.xlane.xlu0 %967
  %v969 = vsel %vm458, %v955, -inf
  %970 = vmax.xlane.f32.xlu0 %v969
  %v971 = vpop.xlane.xlu0 %970
  %v972 = vsel %vm471, %v958, -inf
  %973 = vmax.xlane.f32.xlu0 %v972
  %v974 = vpop.xlane.xlu0 %973
  %v975 = vsub.f32 %v946, %v962
  %v976 = vsub.f32 %v949, %v965
  %v977 = vsub.f32 %v952, %v968
  %v978 = vsub.f32 %v955, %v971
  %v979 = vsub.f32 %v958, %v974
  %v980 = vmul.f32 %v975, 1.442695
  %v981 = vpow.pop %v980
  %v982 = vmul.f32 %v976, 1.442695
  %v983 = vpow.pop %v982
  %v984 = vmul.f32 %v977, 1.442695
  %v985 = vpow.pop %v984
  %v986 = vmul.f32 %v978, 1.442695
  %v987 = vpow.pop %v986
  %v988 = vmul.f32 %v979, 1.442695
  %v989 = vpow.pop %v988
  %v990 = vsel %vm458, %v981, 0.0
  %991 = vadd.xlane.f32.xlu0 %v990
  %v992 = vpop.xlane.xlu0 %991
  %v993 = vsel %vm458, %v983, 0.0
  %994 = vadd.xlane.f32.xlu0 %v993
  %v995 = vpop.xlane.xlu0 %994
  %v996 = vsel %vm458, %v985, 0.0
  %997 = vadd.xlane.f32.xlu0 %v996
  %v998 = vpop.xlane.xlu0 %997
  %v999 = vsel %vm458, %v987, 0.0
  %1000 = vadd.xlane.f32.xlu0 %v999
  %v1001 = vpop.xlane.xlu0 %1000
  %v1002 = vsel %vm471, %v989, 0.0
  %1003 = vadd.xlane.f32.xlu0 %v1002
  %v1004 = vpop.xlane.xlu0 %1003
  %v1005 = vrcp.pop %v992
  %v1006 = vrcp.pop %v995
  %v1007 = vrcp.pop %v998
  %v1008 = vrcp.pop %v1001
  %v1009 = vrcp.pop %v1004
  %v1010 = vmul.f32 %v981, %v1005
  %v1011 = vmul.f32 %v983, %v1006
  %v1012 = vmul.f32 %v985, %v1007
  %v1013 = vmul.f32 %v987, %v1008
  %v1014 = vmul.f32 %v989, %v1009
  %1015 = vrot.lane.b32.xlu0 %v339, 48
  %v1016 = vpop.permute.xlu0 %1015
  %1017 = vrot.lane.b32.xlu0 %v342, 48
  %v1018 = vpop.permute.xlu0 %1017
  %1019 = vrot.lane.b32.xlu0 %v345, 48
  %v1020 = vpop.permute.xlu0 %1019
  %1021 = vrot.lane.b32.xlu0 %v348, 48
  %v1022 = vpop.permute.xlu0 %1021
  %1023 = vrot.lane.b32.xlu0 %v351, 48
  %v1024 = vpop.permute.xlu0 %1023
  %1029 = vrot.lane.b32.xlu0 %v515, 112
  %v1030 = vpop.permute.xlu0 %1029
  %1031 = vrot.lane.b32.xlu0 %v516, 112
  %v1032 = vpop.permute.xlu0 %1031
  %1033 = vrot.lane.b32.xlu0 %v517, 112
  %v1034 = vpop.permute.xlu0 %1033
  %1035 = vrot.lane.b32.xlu0 %v518, 112
  %v1036 = vpop.permute.xlu0 %1035
  %1037 = vrot.lane.b32.xlu0 %v519, 112
  %v1038 = vpop.permute.xlu0 %1037
  %v1045 = vsel %vm458, %v1010, 0
  %v1048 = vsel %vm458, %v1011, 0
  %v1051 = vsel %vm458, %v1012, 0
  %v1054 = vsel %vm458, %v1013, 0
  %v1057 = vsel %vm458, %v1014, 0
  %v1059 = vsel %vm549, %v1024, 0
  %1061 = vmatpush.msra.mxu0 0.0
  %1062 = vmatpush.msra.mxu0 0.0
  %1063 = vmatpush.msra.mxu0 0.0
  %1064 = vmatpush.msra.mxu0 0.0
  %1065 = vmatpush.msra.mxu0 0.0
  %1066 = vmatpush.msra.mxu0 0.0
  %1067 = vmatpush.msra.mxu0 0.0
  %1068 = vmatpush.msra.mxu0 0.0
  %1069 = vmatpush.msra.mxu0 0.0
  %1070 = vmatpush.msra.mxu0 0.0
  %1071 = vmatpush.msra.mxu0 0.0
  %1072 = vmatpush.msra.mxu0 %v1059
  %1073 = vmatpush.msra.mxu0 %v1022
  %1074 = vmatpush.msra.mxu0 %v1020
  %1075 = vmatpush.msra.mxu0 %v1018
  %1076 = vmatpush.msra.mxu0 %v1016
  %1077 = vmatmul.f32.gmra.mxu0 %v1045
  %v1078 = vpop.f32.mrf.mxu0
  %v1079 = vadd.f32 %v1030, %v1078
  %1080 = vmatmul.f32.gmra.mxu0 %v1048
  %v1081 = vpop.f32.mrf.mxu0
  %v1082 = vadd.f32 %v1032, %v1081
  %1083 = vmatmul.f32.gmra.mxu0 %v1051
  %v1084 = vpop.f32.mrf.mxu0
  %v1085 = vadd.f32 %v1034, %v1084
  %1086 = vmatmul.f32.gmra.mxu0 %v1054
  %v1087 = vpop.f32.mrf.mxu0
  %v1088 = vadd.f32 %v1036, %v1087
  %1089 = vmatmul.f32.gmra.mxu0 %v1057
  %v1090 = vpop.f32.mrf.mxu0
  %v1091 = vadd.f32 %v1038, %v1090
  %1092 = vdwg.mxu0
  %v1094 = vsel %vm405, %v1079, 0
  %v1097 = vsel %vm405, %v1082, 0
  %v1100 = vsel %vm405, %v1085, 0
  %v1103 = vsel %vm405, %v1088, 0
  %v1106 = vsel %vm405, %v1091, 0
  %1108 = vmatpush.msra.mxu0 0.0
  %1109 = vmatpush.msra.mxu0 0.0
  %1110 = vmatpush.msra.mxu0 0.0
  %1111 = vmatpush.msra.mxu0 0.0
  %1112 = vmatpush.msra.mxu0 0.0
  %1113 = vmatpush.msra.mxu0 0.0
  %1114 = vmatpush.msra.mxu0 0.0
  %1115 = vmatpush.msra.mxu0 0.0
  %1116 = vmatpush.msra.mxu0 0.0
  %1117 = vmatpush.msra.mxu0 0.0
  %1118 = vmatpush.msra.mxu0 0.0
  %1119 = vmatpush.msra.mxu0 0.0
  %1120 = vmatpush.msra.mxu0 0.0
  %1121 = vmatpush.msra.mxu0 0.0
  %1122 = vmatpush.msra.mxu0 0.0
  %1123 = vmatpush.msra.mxu0 %v388
  %1124 = vmatmul.f32.gmra.mxu0 %v1094
  %v1125 = vpop.f32.mrf.mxu0
  %v1126 = vadd.f32 0.0, %v1125
  %1127 = vmatmul.f32.gmra.mxu0 %v1097
  %v1128 = vpop.f32.mrf.mxu0
  %v1129 = vadd.f32 0.0, %v1128
  %1130 = vmatmul.f32.gmra.mxu0 %v1100
  %v1131 = vpop.f32.mrf.mxu0
  %v1132 = vadd.f32 0.0, %v1131
  %1133 = vmatmul.f32.gmra.mxu0 %v1103
  %v1134 = vpop.f32.mrf.mxu0
  %v1135 = vadd.f32 0.0, %v1134
  %1136 = vmatmul.f32.gmra.mxu0 %v1106
  %v1137 = vpop.f32.mrf.mxu0
  %v1138 = vadd.f32 0.0, %v1137
  %1139 = vdwg.mxu0
  %v1140 = vadd.f32 %v874, %v1126
  %v1141 = vadd.f32 %v877, %v1129
  %v1142 = vadd.f32 %v880, %v1132
  %v1143 = vadd.f32 %v883, %v1135
  %v1144 = vadd.f32 %v886, %v1138
  %1145 = vrot.lane.b32.xlu0 %v339, 104
  %v1146 = vpop.permute.xlu0 %1145
  %1147 = vrot.lane.b32.xlu0 %v342, 104
  %v1148 = vpop.permute.xlu0 %1147
  %1149 = vrot.lane.b32.xlu0 %v345, 104
  %v1150 = vpop.permute.xlu0 %1149
  %1151 = vrot.lane.b32.xlu0 %v348, 104
  %v1152 = vpop.permute.xlu0 %1151
  %1153 = vrot.lane.b32.xlu0 %v351, 104
  %v1154 = vpop.permute.xlu0 %1153
  %1155 = vrot.lane.b32.xlu0 %v339, 72
  %v1156 = vpop.permute.xlu0 %1155
  %1157 = vrot.lane.b32.xlu0 %v342, 72
  %v1158 = vpop.permute.xlu0 %1157
  %1159 = vrot.lane.b32.xlu0 %v345, 72
  %v1160 = vpop.permute.xlu0 %1159
  %1161 = vrot.lane.b32.xlu0 %v348, 72
  %v1162 = vpop.permute.xlu0 %1161
  %1163 = vrot.lane.b32.xlu0 %v351, 72
  %v1164 = vpop.permute.xlu0 %1163
  %v1165 = vsel %vm405, %v1146, 0
  %v1167 = vsel %vm405, %v1148, 0
  %v1169 = vsel %vm405, %v1150, 0
  %v1171 = vsel %vm405, %v1152, 0
  %v1173 = vsel %vm405, %v1154, 0
  %v1175 = vsel %vm405, %v1156, 0
  %v1177 = vsel %vm405, %v1158, 0
  %v1179 = vsel %vm405, %v1160, 0
  %v1181 = vsel %vm405, %v1162, 0
  %v1183 = vsel %vm405, %v1164, 0
  %1185 = vmatpush.xpose.msra.mxu0 0.0
  %1186 = vmatpush.xpose.msra.mxu0 0.0
  %1187 = vmatpush.xpose.msra.mxu0 0.0
  %1188 = vmatpush.xpose.msra.mxu0 0.0
  %1189 = vmatpush.xpose.msra.mxu0 0.0
  %1190 = vmatpush.xpose.msra.mxu0 0.0
  %1191 = vmatpush.xpose.msra.mxu0 0.0
  %1192 = vmatpush.xpose.msra.mxu0 0.0
  %1193 = vmatpush.xpose.msra.mxu0 0.0
  %1194 = vmatpush.xpose.msra.mxu0 0.0
  %1195 = vmatpush.xpose.msra.mxu0 0.0
  %1196 = vmatpush.xpose.msra.mxu0 %v1183
  %1197 = vmatpush.xpose.msra.mxu0 %v1181
  %1198 = vmatpush.xpose.msra.mxu0 %v1179
  %1199 = vmatpush.xpose.msra.mxu0 %v1177
  %1200 = vmatpush.xpose.msra.mxu0 %v1175
  %1201 = vmatmul.f32.gmra.mxu0 %v1165
  %v1202 = vpop.f32.mrf.mxu0
  %v1203 = vadd.f32 0.0, %v1202
  %1204 = vmatmul.f32.gmra.mxu0 %v1167
  %v1205 = vpop.f32.mrf.mxu0
  %v1206 = vadd.f32 0.0, %v1205
  %1207 = vmatmul.f32.gmra.mxu0 %v1169
  %v1208 = vpop.f32.mrf.mxu0
  %v1209 = vadd.f32 0.0, %v1208
  %1210 = vmatmul.f32.gmra.mxu0 %v1171
  %v1211 = vpop.f32.mrf.mxu0
  %v1212 = vadd.f32 0.0, %v1211
  %1213 = vmatmul.f32.gmra.mxu0 %v1173
  %v1214 = vpop.f32.mrf.mxu0
  %v1215 = vadd.f32 0.0, %v1214
  %1216 = vdwg.mxu0
  %v1217 = vsel %vm458, %v1203, -inf
  %1218 = vmax.xlane.f32.xlu0 %v1217
  %v1219 = vpop.xlane.xlu0 %1218
  %v1220 = vsel %vm458, %v1206, -inf
  %1221 = vmax.xlane.f32.xlu0 %v1220
  %v1222 = vpop.xlane.xlu0 %1221
  %v1223 = vsel %vm458, %v1209, -inf
  %1224 = vmax.xlane.f32.xlu0 %v1223
  %v1225 = vpop.xlane.xlu0 %1224
  %v1226 = vsel %vm458, %v1212, -inf
  %1227 = vmax.xlane.f32.xlu0 %v1226
  %v1228 = vpop.xlane.xlu0 %1227
  %v1229 = vsel %vm471, %v1215, -inf
  %1230 = vmax.xlane.f32.xlu0 %v1229
  %v1231 = vpop.xlane.xlu0 %1230
  %v1232 = vsub.f32 %v1203, %v1219
  %v1233 = vsub.f32 %v1206, %v1222
  %v1234 = vsub.f32 %v1209, %v1225
  %v1235 = vsub.f32 %v1212, %v1228
  %v1236 = vsub.f32 %v1215, %v1231
  %v1237 = vmul.f32 %v1232, 1.442695
  %v1238 = vpow.pop %v1237
  %v1239 = vmul.f32 %v1233, 1.442695
  %v1240 = vpow.pop %v1239
  %v1241 = vmul.f32 %v1234, 1.442695
  %v1242 = vpow.pop %v1241
  %v1243 = vmul.f32 %v1235, 1.442695
  %v1244 = vpow.pop %v1243
  %v1245 = vmul.f32 %v1236, 1.442695
  %v1246 = vpow.pop %v1245
  %v1247 = vsel %vm458, %v1238, 0.0
  %1248 = vadd.xlane.f32.xlu0 %v1247
  %v1249 = vpop.xlane.xlu0 %1248
  %v1250 = vsel %vm458, %v1240, 0.0
  %1251 = vadd.xlane.f32.xlu0 %v1250
  %v1252 = vpop.xlane.xlu0 %1251
  %v1253 = vsel %vm458, %v1242, 0.0
  %1254 = vadd.xlane.f32.xlu0 %v1253
  %v1255 = vpop.xlane.xlu0 %1254
  %v1256 = vsel %vm458, %v1244, 0.0
  %1257 = vadd.xlane.f32.xlu0 %v1256
  %v1258 = vpop.xlane.xlu0 %1257
  %v1259 = vsel %vm471, %v1246, 0.0
  %1260 = vadd.xlane.f32.xlu0 %v1259
  %v1261 = vpop.xlane.xlu0 %1260
  %v1262 = vrcp.pop %v1249
  %v1263 = vrcp.pop %v1252
  %v1264 = vrcp.pop %v1255
  %v1265 = vrcp.pop %v1258
  %v1266 = vrcp.pop %v1261
  %v1267 = vmul.f32 %v1238, %v1262
  %v1268 = vmul.f32 %v1240, %v1263
  %v1269 = vmul.f32 %v1242, %v1264
  %v1270 = vmul.f32 %v1244, %v1265
  %v1271 = vmul.f32 %v1246, %v1266
  %1272 = vrot.lane.b32.xlu0 %v339, 40
  %v1273 = vpop.permute.xlu0 %1272
  %1274 = vrot.lane.b32.xlu0 %v342, 40
  %v1275 = vpop.permute.xlu0 %1274
  %1276 = vrot.lane.b32.xlu0 %v345, 40
  %v1277 = vpop.permute.xlu0 %1276
  %1278 = vrot.lane.b32.xlu0 %v348, 40
  %v1279 = vpop.permute.xlu0 %1278
  %1280 = vrot.lane.b32.xlu0 %v351, 40
  %v1281 = vpop.permute.xlu0 %1280
  %1286 = vrot.lane.b32.xlu0 %v515, 104
  %v1287 = vpop.permute.xlu0 %1286
  %1288 = vrot.lane.b32.xlu0 %v516, 104
  %v1289 = vpop.permute.xlu0 %1288
  %1290 = vrot.lane.b32.xlu0 %v517, 104
  %v1291 = vpop.permute.xlu0 %1290
  %1292 = vrot.lane.b32.xlu0 %v518, 104
  %v1293 = vpop.permute.xlu0 %1292
  %1294 = vrot.lane.b32.xlu0 %v519, 104
  %v1295 = vpop.permute.xlu0 %1294
  %v1302 = vsel %vm458, %v1267, 0
  %v1305 = vsel %vm458, %v1268, 0
  %v1308 = vsel %vm458, %v1269, 0
  %v1311 = vsel %vm458, %v1270, 0
  %v1314 = vsel %vm458, %v1271, 0
  %v1316 = vsel %vm549, %v1281, 0
  %1318 = vmatpush.msra.mxu0 0.0
  %1319 = vmatpush.msra.mxu0 0.0
  %1320 = vmatpush.msra.mxu0 0.0
  %1321 = vmatpush.msra.mxu0 0.0
  %1322 = vmatpush.msra.mxu0 0.0
  %1323 = vmatpush.msra.mxu0 0.0
  %1324 = vmatpush.msra.mxu0 0.0
  %1325 = vmatpush.msra.mxu0 0.0
  %1326 = vmatpush.msra.mxu0 0.0
  %1327 = vmatpush.msra.mxu0 0.0
  %1328 = vmatpush.msra.mxu0 0.0
  %1329 = vmatpush.msra.mxu0 %v1316
  %1330 = vmatpush.msra.mxu0 %v1279
  %1331 = vmatpush.msra.mxu0 %v1277
  %1332 = vmatpush.msra.mxu0 %v1275
  %1333 = vmatpush.msra.mxu0 %v1273
  %1334 = vmatmul.f32.gmra.mxu0 %v1302
  %v1335 = vpop.f32.mrf.mxu0
  %v1336 = vadd.f32 %v1287, %v1335
  %1337 = vmatmul.f32.gmra.mxu0 %v1305
  %v1338 = vpop.f32.mrf.mxu0
  %v1339 = vadd.f32 %v1289, %v1338
  %1340 = vmatmul.f32.gmra.mxu0 %v1308
  %v1341 = vpop.f32.mrf.mxu0
  %v1342 = vadd.f32 %v1291, %v1341
  %1343 = vmatmul.f32.gmra.mxu0 %v1311
  %v1344 = vpop.f32.mrf.mxu0
  %v1345 = vadd.f32 %v1293, %v1344
  %1346 = vmatmul.f32.gmra.mxu0 %v1314
  %v1347 = vpop.f32.mrf.mxu0
  %v1348 = vadd.f32 %v1295, %v1347
  %1349 = vdwg.mxu0
  %v1351 = vsel %vm405, %v1336, 0
  %v1354 = vsel %vm405, %v1339, 0
  %v1357 = vsel %vm405, %v1342, 0
  %v1360 = vsel %vm405, %v1345, 0
  %v1363 = vsel %vm405, %v1348, 0
  %1365 = vmatpush.msra.mxu0 0.0
  %1366 = vmatpush.msra.mxu0 0.0
  %1367 = vmatpush.msra.mxu0 0.0
  %1368 = vmatpush.msra.mxu0 0.0
  %1369 = vmatpush.msra.mxu0 0.0
  %1370 = vmatpush.msra.mxu0 0.0
  %1371 = vmatpush.msra.mxu0 0.0
  %1372 = vmatpush.msra.mxu0 0.0
  %1373 = vmatpush.msra.mxu0 0.0
  %1374 = vmatpush.msra.mxu0 0.0
  %1375 = vmatpush.msra.mxu0 0.0
  %1376 = vmatpush.msra.mxu0 0.0
  %1377 = vmatpush.msra.mxu0 0.0
  %1378 = vmatpush.msra.mxu0 0.0
  %1379 = vmatpush.msra.mxu0 0.0
  %1380 = vmatpush.msra.mxu0 %v389
  %1381 = vmatmul.f32.gmra.mxu0 %v1351
  %v1382 = vpop.f32.mrf.mxu0
  %v1383 = vadd.f32 0.0, %v1382
  %1384 = vmatmul.f32.gmra.mxu0 %v1354
  %v1385 = vpop.f32.mrf.mxu0
  %v1386 = vadd.f32 0.0, %v1385
  %1387 = vmatmul.f32.gmra.mxu0 %v1357
  %v1388 = vpop.f32.mrf.mxu0
  %v1389 = vadd.f32 0.0, %v1388
  %1390 = vmatmul.f32.gmra.mxu0 %v1360
  %v1391 = vpop.f32.mrf.mxu0
  %v1392 = vadd.f32 0.0, %v1391
  %1393 = vmatmul.f32.gmra.mxu0 %v1363
  %v1394 = vpop.f32.mrf.mxu0
  %v1395 = vadd.f32 0.0, %v1394
  %1396 = vdwg.mxu0
  %v1397 = vadd.f32 %v1140, %v1383
  %v1398 = vadd.f32 %v1141, %v1386
  %v1399 = vadd.f32 %v1142, %v1389
  %v1400 = vadd.f32 %v1143, %v1392
  %v1401 = vadd.f32 %v1144, %v1395
  %vm1406 = vcmask 1046528
  %v1407 = vrot.slane %v351, 1
  %v1408 = vrot.slane %v354, 1
  %v1409 = vsel %vm1406, %v1407, %v1408
  %v1410 = vrot.slane %v357, 1
  %v1411 = vsel %vm1406, %v1408, %v1410
  %v1412 = vrot.slane %v360, 1
  %v1413 = vsel %vm1406, %v1410, %v1412
  %v1414 = vrot.slane %v363, 1
  %v1415 = vsel %vm1406, %v1412, %v1414
  %1416 = vrot.lane.b32.xlu0 %v1409, 96
  %v1417 = vpop.permute.xlu0 %1416
  %1418 = vrot.lane.b32.xlu0 %v1411, 96
  %v1419 = vpop.permute.xlu0 %1418
  %1420 = vrot.lane.b32.xlu0 %v1413, 96
  %v1421 = vpop.permute.xlu0 %1420
  %1422 = vrot.lane.b32.xlu0 %v1415, 96
  %v1423 = vpop.permute.xlu0 %1422
  %1424 = vrot.lane.b32.xlu0 %v1414, 96
  %v1425 = vpop.permute.xlu0 %1424
  %v1426 = vsel %vm405, %v1409, 0
  %v1428 = vsel %vm405, %v1411, 0
  %v1430 = vsel %vm405, %v1413, 0
  %v1432 = vsel %vm405, %v1415, 0
  %v1434 = vsel %vm405, %v1414, 0
  %v1436 = vsel %vm405, %v1417, 0
  %v1438 = vsel %vm405, %v1419, 0
  %v1440 = vsel %vm405, %v1421, 0
  %v1442 = vsel %vm405, %v1423, 0
  %v1444 = vsel %vm405, %v1425, 0
  %1446 = vmatpush.xpose.msra.mxu0 0.0
  %1447 = vmatpush.xpose.msra.mxu0 0.0
  %1448 = vmatpush.xpose.msra.mxu0 0.0
  %1449 = vmatpush.xpose.msra.mxu0 0.0
  %1450 = vmatpush.xpose.msra.mxu0 0.0
  %1451 = vmatpush.xpose.msra.mxu0 0.0
  %1452 = vmatpush.xpose.msra.mxu0 0.0
  %1453 = vmatpush.xpose.msra.mxu0 0.0
  %1454 = vmatpush.xpose.msra.mxu0 0.0
  %1455 = vmatpush.xpose.msra.mxu0 0.0
  %1456 = vmatpush.xpose.msra.mxu0 0.0
  %1457 = vmatpush.xpose.msra.mxu0 %v1444
  %1458 = vmatpush.xpose.msra.mxu0 %v1442
  %1459 = vmatpush.xpose.msra.mxu0 %v1440
  %1460 = vmatpush.xpose.msra.mxu0 %v1438
  %1461 = vmatpush.xpose.msra.mxu0 %v1436
  %1462 = vmatmul.f32.gmra.mxu0 %v1426
  %v1463 = vpop.f32.mrf.mxu0
  %v1464 = vadd.f32 0.0, %v1463
  %1465 = vmatmul.f32.gmra.mxu0 %v1428
  %v1466 = vpop.f32.mrf.mxu0
  %v1467 = vadd.f32 0.0, %v1466
  %1468 = vmatmul.f32.gmra.mxu0 %v1430
  %v1469 = vpop.f32.mrf.mxu0
  %v1470 = vadd.f32 0.0, %v1469
  %1471 = vmatmul.f32.gmra.mxu0 %v1432
  %v1472 = vpop.f32.mrf.mxu0
  %v1473 = vadd.f32 0.0, %v1472
  %1474 = vmatmul.f32.gmra.mxu0 %v1434
  %v1475 = vpop.f32.mrf.mxu0
  %v1476 = vadd.f32 0.0, %v1475
  %1477 = vdwg.mxu0
  %v1478 = vsel %vm458, %v1464, -inf
  %1479 = vmax.xlane.f32.xlu0 %v1478
  %v1480 = vpop.xlane.xlu0 %1479
  %v1481 = vsel %vm458, %v1467, -inf
  %1482 = vmax.xlane.f32.xlu0 %v1481
  %v1483 = vpop.xlane.xlu0 %1482
  %v1484 = vsel %vm458, %v1470, -inf
  %1485 = vmax.xlane.f32.xlu0 %v1484
  %v1486 = vpop.xlane.xlu0 %1485
  %v1487 = vsel %vm458, %v1473, -inf
  %1488 = vmax.xlane.f32.xlu0 %v1487
  %v1489 = vpop.xlane.xlu0 %1488
  %v1490 = vsel %vm471, %v1476, -inf
  %1491 = vmax.xlane.f32.xlu0 %v1490
  %v1492 = vpop.xlane.xlu0 %1491
  %v1493 = vsub.f32 %v1464, %v1480
  %v1494 = vsub.f32 %v1467, %v1483
  %v1495 = vsub.f32 %v1470, %v1486
  %v1496 = vsub.f32 %v1473, %v1489
  %v1497 = vsub.f32 %v1476, %v1492
  %v1498 = vmul.f32 %v1493, 1.442695
  %v1499 = vpow.pop %v1498
  %v1500 = vmul.f32 %v1494, 1.442695
  %v1501 = vpow.pop %v1500
  %v1502 = vmul.f32 %v1495, 1.442695
  %v1503 = vpow.pop %v1502
  %v1504 = vmul.f32 %v1496, 1.442695
  %v1505 = vpow.pop %v1504
  %v1506 = vmul.f32 %v1497, 1.442695
  %v1507 = vpow.pop %v1506
  %v1508 = vsel %vm458, %v1499, 0.0
  %1509 = vadd.xlane.f32.xlu0 %v1508
  %v1510 = vpop.xlane.xlu0 %1509
  %v1511 = vsel %vm458, %v1501, 0.0
  %1512 = vadd.xlane.f32.xlu0 %v1511
  %v1513 = vpop.xlane.xlu0 %1512
  %v1514 = vsel %vm458, %v1503, 0.0
  %1515 = vadd.xlane.f32.xlu0 %v1514
  %v1516 = vpop.xlane.xlu0 %1515
  %v1517 = vsel %vm458, %v1505, 0.0
  %1518 = vadd.xlane.f32.xlu0 %v1517
  %v1519 = vpop.xlane.xlu0 %1518
  %v1520 = vsel %vm471, %v1507, 0.0
  %1521 = vadd.xlane.f32.xlu0 %v1520
  %v1522 = vpop.xlane.xlu0 %1521
  %v1523 = vrcp.pop %v1510
  %v1524 = vrcp.pop %v1513
  %v1525 = vrcp.pop %v1516
  %v1526 = vrcp.pop %v1519
  %v1527 = vrcp.pop %v1522
  %v1528 = vmul.f32 %v1499, %v1523
  %v1529 = vmul.f32 %v1501, %v1524
  %v1530 = vmul.f32 %v1503, %v1525
  %v1531 = vmul.f32 %v1505, %v1526
  %v1532 = vmul.f32 %v1507, %v1527
  %v1538 = vmul.f32 %v381, %v1409
  %v1539 = vmul.f32 %v382, %v1411
  %v1540 = vmul.f32 %v383, %v1413
  %v1541 = vmul.f32 %v384, %v1415
  %v1542 = vmul.f32 %v385, %v1414
  %1543 = vrot.lane.b32.xlu0 %v1409, 64
  %v1544 = vpop.permute.xlu0 %1543
  %1545 = vrot.lane.b32.xlu0 %v1411, 64
  %v1546 = vpop.permute.xlu0 %1545
  %1547 = vrot.lane.b32.xlu0 %v1413, 64
  %v1548 = vpop.permute.xlu0 %1547
  %1549 = vrot.lane.b32.xlu0 %v1415, 64
  %v1550 = vpop.permute.xlu0 %1549
  %1551 = vrot.lane.b32.xlu0 %v1414, 64
  %v1552 = vpop.permute.xlu0 %1551
  %v1558 = vsel %vm458, %v1528, 0
  %v1561 = vsel %vm458, %v1529, 0
  %v1564 = vsel %vm458, %v1530, 0
  %v1567 = vsel %vm458, %v1531, 0
  %v1570 = vsel %vm458, %v1532, 0
  %v1572 = vsel %vm549, %v1552, 0
  %1574 = vmatpush.msra.mxu0 0.0
  %1575 = vmatpush.msra.mxu0 0.0
  %1576 = vmatpush.msra.mxu0 0.0
  %1577 = vmatpush.msra.mxu0 0.0
  %1578 = vmatpush.msra.mxu0 0.0
  %1579 = vmatpush.msra.mxu0 0.0
  %1580 = vmatpush.msra.mxu0 0.0
  %1581 = vmatpush.msra.mxu0 0.0
  %1582 = vmatpush.msra.mxu0 0.0
  %1583 = vmatpush.msra.mxu0 0.0
  %1584 = vmatpush.msra.mxu0 0.0
  %1585 = vmatpush.msra.mxu0 %v1572
  %1586 = vmatpush.msra.mxu0 %v1550
  %1587 = vmatpush.msra.mxu0 %v1548
  %1588 = vmatpush.msra.mxu0 %v1546
  %1589 = vmatpush.msra.mxu0 %v1544
  %1590 = vmatmul.f32.gmra.mxu0 %v1558
  %v1591 = vpop.f32.mrf.mxu0
  %v1592 = vadd.f32 %v1538, %v1591
  %1593 = vmatmul.f32.gmra.mxu0 %v1561
  %v1594 = vpop.f32.mrf.mxu0
  %v1595 = vadd.f32 %v1539, %v1594
  %1596 = vmatmul.f32.gmra.mxu0 %v1564
  %v1597 = vpop.f32.mrf.mxu0
  %v1598 = vadd.f32 %v1540, %v1597
  %1599 = vmatmul.f32.gmra.mxu0 %v1567
  %v1600 = vpop.f32.mrf.mxu0
  %v1601 = vadd.f32 %v1541, %v1600
  %1602 = vmatmul.f32.gmra.mxu0 %v1570
  %v1603 = vpop.f32.mrf.mxu0
  %v1604 = vadd.f32 %v1542, %v1603
  %1605 = vdwg.mxu0
  %1606 = vrot.lane.b32.xlu0 %v1409, 120
  %v1607 = vpop.permute.xlu0 %1606
  %1608 = vrot.lane.b32.xlu0 %v1411, 120
  %v1609 = vpop.permute.xlu0 %1608
  %1610 = vrot.lane.b32.xlu0 %v1413, 120
  %v1611 = vpop.permute.xlu0 %1610
  %1612 = vrot.lane.b32.xlu0 %v1415, 120
  %v1613 = vpop.permute.xlu0 %1612
  %1614 = vrot.lane.b32.xlu0 %v1414, 120
  %v1615 = vpop.permute.xlu0 %1614
  %1616 = vrot.lane.b32.xlu0 %v1409, 88
  %v1617 = vpop.permute.xlu0 %1616
  %1618 = vrot.lane.b32.xlu0 %v1411, 88
  %v1619 = vpop.permute.xlu0 %1618
  %1620 = vrot.lane.b32.xlu0 %v1413, 88
  %v1621 = vpop.permute.xlu0 %1620
  %1622 = vrot.lane.b32.xlu0 %v1415, 88
  %v1623 = vpop.permute.xlu0 %1622
  %1624 = vrot.lane.b32.xlu0 %v1414, 88
  %v1625 = vpop.permute.xlu0 %1624
  %v1626 = vsel %vm405, %v1607, 0
  %v1628 = vsel %vm405, %v1609, 0
  %v1630 = vsel %vm405, %v1611, 0
  %v1632 = vsel %vm405, %v1613, 0
  %v1634 = vsel %vm405, %v1615, 0
  %v1636 = vsel %vm405, %v1617, 0
  %v1638 = vsel %vm405, %v1619, 0
  %v1640 = vsel %vm405, %v1621, 0
  %v1642 = vsel %vm405, %v1623, 0
  %v1644 = vsel %vm405, %v1625, 0
  %1646 = vmatpush.xpose.msra.mxu0 0.0
  %1647 = vmatpush.xpose.msra.mxu0 0.0
  %1648 = vmatpush.xpose.msra.mxu0 0.0
  %1649 = vmatpush.xpose.msra.mxu0 0.0
  %1650 = vmatpush.xpose.msra.mxu0 0.0
  %1651 = vmatpush.xpose.msra.mxu0 0.0
  %1652 = vmatpush.xpose.msra.mxu0 0.0
  %1653 = vmatpush.xpose.msra.mxu0 0.0
  %1654 = vmatpush.xpose.msra.mxu0 0.0
  %1655 = vmatpush.xpose.msra.mxu0 0.0
  %1656 = vmatpush.xpose.msra.mxu0 0.0
  %1657 = vmatpush.xpose.msra.mxu0 %v1644
  %1658 = vmatpush.xpose.msra.mxu0 %v1642
  %1659 = vmatpush.xpose.msra.mxu0 %v1640
  %1660 = vmatpush.xpose.msra.mxu0 %v1638
  %1661 = vmatpush.xpose.msra.mxu0 %v1636
  %1662 = vmatmul.f32.gmra.mxu0 %v1626
  %v1663 = vpop.f32.mrf.mxu0
  %v1664 = vadd.f32 0.0, %v1663
  %1665 = vmatmul.f32.gmra.mxu0 %v1628
  %v1666 = vpop.f32.mrf.mxu0
  %v1667 = vadd.f32 0.0, %v1666
  %1668 = vmatmul.f32.gmra.mxu0 %v1630
  %v1669 = vpop.f32.mrf.mxu0
  %v1670 = vadd.f32 0.0, %v1669
  %1671 = vmatmul.f32.gmra.mxu0 %v1632
  %v1672 = vpop.f32.mrf.mxu0
  %v1673 = vadd.f32 0.0, %v1672
  %1674 = vmatmul.f32.gmra.mxu0 %v1634
  %v1675 = vpop.f32.mrf.mxu0
  %v1676 = vadd.f32 0.0, %v1675
  %1677 = vdwg.mxu0
  %v1678 = vsel %vm458, %v1664, -inf
  %1679 = vmax.xlane.f32.xlu0 %v1678
  %v1680 = vpop.xlane.xlu0 %1679
  %v1681 = vsel %vm458, %v1667, -inf
  %1682 = vmax.xlane.f32.xlu0 %v1681
  %v1683 = vpop.xlane.xlu0 %1682
  %v1684 = vsel %vm458, %v1670, -inf
  %1685 = vmax.xlane.f32.xlu0 %v1684
  %v1686 = vpop.xlane.xlu0 %1685
  %v1687 = vsel %vm458, %v1673, -inf
  %1688 = vmax.xlane.f32.xlu0 %v1687
  %v1689 = vpop.xlane.xlu0 %1688
  %v1690 = vsel %vm471, %v1676, -inf
  %1691 = vmax.xlane.f32.xlu0 %v1690
  %v1692 = vpop.xlane.xlu0 %1691
  %v1693 = vsub.f32 %v1664, %v1680
  %v1694 = vsub.f32 %v1667, %v1683
  %v1695 = vsub.f32 %v1670, %v1686
  %v1696 = vsub.f32 %v1673, %v1689
  %v1697 = vsub.f32 %v1676, %v1692
  %v1698 = vmul.f32 %v1693, 1.442695
  %v1699 = vpow.pop %v1698
  %v1700 = vmul.f32 %v1694, 1.442695
  %v1701 = vpow.pop %v1700
  %v1702 = vmul.f32 %v1695, 1.442695
  %v1703 = vpow.pop %v1702
  %v1704 = vmul.f32 %v1696, 1.442695
  %v1705 = vpow.pop %v1704
  %v1706 = vmul.f32 %v1697, 1.442695
  %v1707 = vpow.pop %v1706
  %v1708 = vsel %vm458, %v1699, 0.0
  %1709 = vadd.xlane.f32.xlu0 %v1708
  %v1710 = vpop.xlane.xlu0 %1709
  %v1711 = vsel %vm458, %v1701, 0.0
  %1712 = vadd.xlane.f32.xlu0 %v1711
  %v1713 = vpop.xlane.xlu0 %1712
  %v1714 = vsel %vm458, %v1703, 0.0
  %1715 = vadd.xlane.f32.xlu0 %v1714
  %v1716 = vpop.xlane.xlu0 %1715
  %v1717 = vsel %vm458, %v1705, 0.0
  %1718 = vadd.xlane.f32.xlu0 %v1717
  %v1719 = vpop.xlane.xlu0 %1718
  %v1720 = vsel %vm471, %v1707, 0.0
  %1721 = vadd.xlane.f32.xlu0 %v1720
  %v1722 = vpop.xlane.xlu0 %1721
  %v1723 = vrcp.pop %v1710
  %v1724 = vrcp.pop %v1713
  %v1725 = vrcp.pop %v1716
  %v1726 = vrcp.pop %v1719
  %v1727 = vrcp.pop %v1722
  %v1728 = vmul.f32 %v1699, %v1723
  %v1729 = vmul.f32 %v1701, %v1724
  %v1730 = vmul.f32 %v1703, %v1725
  %v1731 = vmul.f32 %v1705, %v1726
  %v1732 = vmul.f32 %v1707, %v1727
  %v1738 = vmul.f32 %v381, %v1607
  %v1739 = vmul.f32 %v382, %v1609
  %v1740 = vmul.f32 %v383, %v1611
  %v1741 = vmul.f32 %v384, %v1613
  %v1742 = vmul.f32 %v385, %v1615
  %1743 = vrot.lane.b32.xlu0 %v1409, 56
  %v1744 = vpop.permute.xlu0 %1743
  %1745 = vrot.lane.b32.xlu0 %v1411, 56
  %v1746 = vpop.permute.xlu0 %1745
  %1747 = vrot.lane.b32.xlu0 %v1413, 56
  %v1748 = vpop.permute.xlu0 %1747
  %1749 = vrot.lane.b32.xlu0 %v1415, 56
  %v1750 = vpop.permute.xlu0 %1749
  %1751 = vrot.lane.b32.xlu0 %v1414, 56
  %v1752 = vpop.permute.xlu0 %1751
  %v1758 = vsel %vm458, %v1728, 0
  %v1761 = vsel %vm458, %v1729, 0
  %v1764 = vsel %vm458, %v1730, 0
  %v1767 = vsel %vm458, %v1731, 0
  %v1770 = vsel %vm458, %v1732, 0
  %v1772 = vsel %vm549, %v1752, 0
  %1774 = vmatpush.msra.mxu0 0.0
  %1775 = vmatpush.msra.mxu0 0.0
  %1776 = vmatpush.msra.mxu0 0.0
  %1777 = vmatpush.msra.mxu0 0.0
  %1778 = vmatpush.msra.mxu0 0.0
  %1779 = vmatpush.msra.mxu0 0.0
  %1780 = vmatpush.msra.mxu0 0.0
  %1781 = vmatpush.msra.mxu0 0.0
  %1782 = vmatpush.msra.mxu0 0.0
  %1783 = vmatpush.msra.mxu0 0.0
  %1784 = vmatpush.msra.mxu0 0.0
  %1785 = vmatpush.msra.mxu0 %v1772
  %1786 = vmatpush.msra.mxu0 %v1750
  %1787 = vmatpush.msra.mxu0 %v1748
  %1788 = vmatpush.msra.mxu0 %v1746
  %1789 = vmatpush.msra.mxu0 %v1744
  %1790 = vmatmul.f32.gmra.mxu0 %v1758
  %v1791 = vpop.f32.mrf.mxu0
  %v1792 = vadd.f32 %v1738, %v1791
  %1793 = vmatmul.f32.gmra.mxu0 %v1761
  %v1794 = vpop.f32.mrf.mxu0
  %v1795 = vadd.f32 %v1739, %v1794
  %1796 = vmatmul.f32.gmra.mxu0 %v1764
  %v1797 = vpop.f32.mrf.mxu0
  %v1798 = vadd.f32 %v1740, %v1797
  %1799 = vmatmul.f32.gmra.mxu0 %v1767
  %v1800 = vpop.f32.mrf.mxu0
  %v1801 = vadd.f32 %v1741, %v1800
  %1802 = vmatmul.f32.gmra.mxu0 %v1770
  %v1803 = vpop.f32.mrf.mxu0
  %v1804 = vadd.f32 %v1742, %v1803
  %1805 = vdwg.mxu0
  %v1807 = vsel %vm405, %v1792, 0
  %v1810 = vsel %vm405, %v1795, 0
  %v1813 = vsel %vm405, %v1798, 0
  %v1816 = vsel %vm405, %v1801, 0
  %v1819 = vsel %vm405, %v1804, 0
  %1821 = vmatpush.msra.mxu0 0.0
  %1822 = vmatpush.msra.mxu0 0.0
  %1823 = vmatpush.msra.mxu0 0.0
  %1824 = vmatpush.msra.mxu0 0.0
  %1825 = vmatpush.msra.mxu0 0.0
  %1826 = vmatpush.msra.mxu0 0.0
  %1827 = vmatpush.msra.mxu0 0.0
  %1828 = vmatpush.msra.mxu0 0.0
  %1829 = vmatpush.msra.mxu0 0.0
  %1830 = vmatpush.msra.mxu0 0.0
  %1831 = vmatpush.msra.mxu0 0.0
  %1832 = vmatpush.msra.mxu0 0.0
  %1833 = vmatpush.msra.mxu0 0.0
  %1834 = vmatpush.msra.mxu0 0.0
  %1835 = vmatpush.msra.mxu0 0.0
  %1836 = vmatpush.msra.mxu0 %v387
  %1837 = vmatmul.f32.gmra.mxu0 %v1807
  %v1838 = vpop.f32.mrf.mxu0
  %v1839 = vadd.f32 0.0, %v1838
  %1840 = vmatmul.f32.gmra.mxu0 %v1810
  %v1841 = vpop.f32.mrf.mxu0
  %v1842 = vadd.f32 0.0, %v1841
  %1843 = vmatmul.f32.gmra.mxu0 %v1813
  %v1844 = vpop.f32.mrf.mxu0
  %v1845 = vadd.f32 0.0, %v1844
  %1846 = vmatmul.f32.gmra.mxu0 %v1816
  %v1847 = vpop.f32.mrf.mxu0
  %v1848 = vadd.f32 0.0, %v1847
  %1849 = vmatmul.f32.gmra.mxu0 %v1819
  %v1850 = vpop.f32.mrf.mxu0
  %v1851 = vadd.f32 0.0, %v1850
  %1852 = vdwg.mxu0
  %v1854 = vsel %vm405, %v1592, 0
  %v1857 = vsel %vm405, %v1595, 0
  %v1860 = vsel %vm405, %v1598, 0
  %v1863 = vsel %vm405, %v1601, 0
  %v1866 = vsel %vm405, %v1604, 0
  %1868 = vmatpush.msra.mxu0 0.0
  %1869 = vmatpush.msra.mxu0 0.0
  %1870 = vmatpush.msra.mxu0 0.0
  %1871 = vmatpush.msra.mxu0 0.0
  %1872 = vmatpush.msra.mxu0 0.0
  %1873 = vmatpush.msra.mxu0 0.0
  %1874 = vmatpush.msra.mxu0 0.0
  %1875 = vmatpush.msra.mxu0 0.0
  %1876 = vmatpush.msra.mxu0 0.0
  %1877 = vmatpush.msra.mxu0 0.0
  %1878 = vmatpush.msra.mxu0 0.0
  %1879 = vmatpush.msra.mxu0 0.0
  %1880 = vmatpush.msra.mxu0 0.0
  %1881 = vmatpush.msra.mxu0 0.0
  %1882 = vmatpush.msra.mxu0 0.0
  %1883 = vmatpush.msra.mxu0 %v386
  %1884 = vmatmul.f32.gmra.mxu0 %v1854
  %v1885 = vpop.f32.mrf.mxu0
  %v1886 = vadd.f32 %v1839, %v1885
  %1887 = vmatmul.f32.gmra.mxu0 %v1857
  %v1888 = vpop.f32.mrf.mxu0
  %v1889 = vadd.f32 %v1842, %v1888
  %1890 = vmatmul.f32.gmra.mxu0 %v1860
  %v1891 = vpop.f32.mrf.mxu0
  %v1892 = vadd.f32 %v1845, %v1891
  %1893 = vmatmul.f32.gmra.mxu0 %v1863
  %v1894 = vpop.f32.mrf.mxu0
  %v1895 = vadd.f32 %v1848, %v1894
  %1896 = vmatmul.f32.gmra.mxu0 %v1866
  %v1897 = vpop.f32.mrf.mxu0
  %v1898 = vadd.f32 %v1851, %v1897
  %1899 = vdwg.mxu0
  %1900 = vrot.lane.b32.xlu0 %v1409, 112
  %v1901 = vpop.permute.xlu0 %1900
  %1902 = vrot.lane.b32.xlu0 %v1411, 112
  %v1903 = vpop.permute.xlu0 %1902
  %1904 = vrot.lane.b32.xlu0 %v1413, 112
  %v1905 = vpop.permute.xlu0 %1904
  %1906 = vrot.lane.b32.xlu0 %v1415, 112
  %v1907 = vpop.permute.xlu0 %1906
  %1908 = vrot.lane.b32.xlu0 %v1414, 112
  %v1909 = vpop.permute.xlu0 %1908
  %1910 = vrot.lane.b32.xlu0 %v1409, 80
  %v1911 = vpop.permute.xlu0 %1910
  %1912 = vrot.lane.b32.xlu0 %v1411, 80
  %v1913 = vpop.permute.xlu0 %1912
  %1914 = vrot.lane.b32.xlu0 %v1413, 80
  %v1915 = vpop.permute.xlu0 %1914
  %1916 = vrot.lane.b32.xlu0 %v1415, 80
  %v1917 = vpop.permute.xlu0 %1916
  %1918 = vrot.lane.b32.xlu0 %v1414, 80
  %v1919 = vpop.permute.xlu0 %1918
  %v1920 = vsel %vm405, %v1901, 0
  %v1922 = vsel %vm405, %v1903, 0
  %v1924 = vsel %vm405, %v1905, 0
  %v1926 = vsel %vm405, %v1907, 0
  %v1928 = vsel %vm405, %v1909, 0
  %v1930 = vsel %vm405, %v1911, 0
  %v1932 = vsel %vm405, %v1913, 0
  %v1934 = vsel %vm405, %v1915, 0
  %v1936 = vsel %vm405, %v1917, 0
  %v1938 = vsel %vm405, %v1919, 0
  %1940 = vmatpush.xpose.msra.mxu0 0.0
  %1941 = vmatpush.xpose.msra.mxu0 0.0
  %1942 = vmatpush.xpose.msra.mxu0 0.0
  %1943 = vmatpush.xpose.msra.mxu0 0.0
  %1944 = vmatpush.xpose.msra.mxu0 0.0
  %1945 = vmatpush.xpose.msra.mxu0 0.0
  %1946 = vmatpush.xpose.msra.mxu0 0.0
  %1947 = vmatpush.xpose.msra.mxu0 0.0
  %1948 = vmatpush.xpose.msra.mxu0 0.0
  %1949 = vmatpush.xpose.msra.mxu0 0.0
  %1950 = vmatpush.xpose.msra.mxu0 0.0
  %1951 = vmatpush.xpose.msra.mxu0 %v1938
  %1952 = vmatpush.xpose.msra.mxu0 %v1936
  %1953 = vmatpush.xpose.msra.mxu0 %v1934
  %1954 = vmatpush.xpose.msra.mxu0 %v1932
  %1955 = vmatpush.xpose.msra.mxu0 %v1930
  %1956 = vmatmul.f32.gmra.mxu0 %v1920
  %v1957 = vpop.f32.mrf.mxu0
  %v1958 = vadd.f32 0.0, %v1957
  %1959 = vmatmul.f32.gmra.mxu0 %v1922
  %v1960 = vpop.f32.mrf.mxu0
  %v1961 = vadd.f32 0.0, %v1960
  %1962 = vmatmul.f32.gmra.mxu0 %v1924
  %v1963 = vpop.f32.mrf.mxu0
  %v1964 = vadd.f32 0.0, %v1963
  %1965 = vmatmul.f32.gmra.mxu0 %v1926
  %v1966 = vpop.f32.mrf.mxu0
  %v1967 = vadd.f32 0.0, %v1966
  %1968 = vmatmul.f32.gmra.mxu0 %v1928
  %v1969 = vpop.f32.mrf.mxu0
  %v1970 = vadd.f32 0.0, %v1969
  %1971 = vdwg.mxu0
  %v1972 = vsel %vm458, %v1958, -inf
  %1973 = vmax.xlane.f32.xlu0 %v1972
  %v1974 = vpop.xlane.xlu0 %1973
  %v1975 = vsel %vm458, %v1961, -inf
  %1976 = vmax.xlane.f32.xlu0 %v1975
  %v1977 = vpop.xlane.xlu0 %1976
  %v1978 = vsel %vm458, %v1964, -inf
  %1979 = vmax.xlane.f32.xlu0 %v1978
  %v1980 = vpop.xlane.xlu0 %1979
  %v1981 = vsel %vm458, %v1967, -inf
  %1982 = vmax.xlane.f32.xlu0 %v1981
  %v1983 = vpop.xlane.xlu0 %1982
  %v1984 = vsel %vm471, %v1970, -inf
  %1985 = vmax.xlane.f32.xlu0 %v1984
  %v1986 = vpop.xlane.xlu0 %1985
  %v1987 = vsub.f32 %v1958, %v1974
  %v1988 = vsub.f32 %v1961, %v1977
  %v1989 = vsub.f32 %v1964, %v1980
  %v1990 = vsub.f32 %v1967, %v1983
  %v1991 = vsub.f32 %v1970, %v1986
  %v1992 = vmul.f32 %v1987, 1.442695
  %v1993 = vpow.pop %v1992
  %v1994 = vmul.f32 %v1988, 1.442695
  %v1995 = vpow.pop %v1994
  %v1996 = vmul.f32 %v1989, 1.442695
  %v1997 = vpow.pop %v1996
  %v1998 = vmul.f32 %v1990, 1.442695
  %v1999 = vpow.pop %v1998
  %v2000 = vmul.f32 %v1991, 1.442695
  %v2001 = vpow.pop %v2000
  %v2002 = vsel %vm458, %v1993, 0.0
  %2003 = vadd.xlane.f32.xlu0 %v2002
  %v2004 = vpop.xlane.xlu0 %2003
  %v2005 = vsel %vm458, %v1995, 0.0
  %2006 = vadd.xlane.f32.xlu0 %v2005
  %v2007 = vpop.xlane.xlu0 %2006
  %v2008 = vsel %vm458, %v1997, 0.0
  %2009 = vadd.xlane.f32.xlu0 %v2008
  %v2010 = vpop.xlane.xlu0 %2009
  %v2011 = vsel %vm458, %v1999, 0.0
  %2012 = vadd.xlane.f32.xlu0 %v2011
  %v2013 = vpop.xlane.xlu0 %2012
  %v2014 = vsel %vm471, %v2001, 0.0
  %2015 = vadd.xlane.f32.xlu0 %v2014
  %v2016 = vpop.xlane.xlu0 %2015
  %v2017 = vrcp.pop %v2004
  %v2018 = vrcp.pop %v2007
  %v2019 = vrcp.pop %v2010
  %v2020 = vrcp.pop %v2013
  %v2021 = vrcp.pop %v2016
  %v2022 = vmul.f32 %v1993, %v2017
  %v2023 = vmul.f32 %v1995, %v2018
  %v2024 = vmul.f32 %v1997, %v2019
  %v2025 = vmul.f32 %v1999, %v2020
  %v2026 = vmul.f32 %v2001, %v2021
  %v2032 = vmul.f32 %v381, %v1901
  %v2033 = vmul.f32 %v382, %v1903
  %v2034 = vmul.f32 %v383, %v1905
  %v2035 = vmul.f32 %v384, %v1907
  %v2036 = vmul.f32 %v385, %v1909
  %2037 = vrot.lane.b32.xlu0 %v1409, 48
  %v2038 = vpop.permute.xlu0 %2037
  %2039 = vrot.lane.b32.xlu0 %v1411, 48
  %v2040 = vpop.permute.xlu0 %2039
  %2041 = vrot.lane.b32.xlu0 %v1413, 48
  %v2042 = vpop.permute.xlu0 %2041
  %2043 = vrot.lane.b32.xlu0 %v1415, 48
  %v2044 = vpop.permute.xlu0 %2043
  %2045 = vrot.lane.b32.xlu0 %v1414, 48
  %v2046 = vpop.permute.xlu0 %2045
  %v2052 = vsel %vm458, %v2022, 0
  %v2055 = vsel %vm458, %v2023, 0
  %v2058 = vsel %vm458, %v2024, 0
  %v2061 = vsel %vm458, %v2025, 0
  %v2064 = vsel %vm458, %v2026, 0
  %v2066 = vsel %vm549, %v2046, 0
  %2068 = vmatpush.msra.mxu0 0.0
  %2069 = vmatpush.msra.mxu0 0.0
  %2070 = vmatpush.msra.mxu0 0.0
  %2071 = vmatpush.msra.mxu0 0.0
  %2072 = vmatpush.msra.mxu0 0.0
  %2073 = vmatpush.msra.mxu0 0.0
  %2074 = vmatpush.msra.mxu0 0.0
  %2075 = vmatpush.msra.mxu0 0.0
  %2076 = vmatpush.msra.mxu0 0.0
  %2077 = vmatpush.msra.mxu0 0.0
  %2078 = vmatpush.msra.mxu0 0.0
  %2079 = vmatpush.msra.mxu0 %v2066
  %2080 = vmatpush.msra.mxu0 %v2044
  %2081 = vmatpush.msra.mxu0 %v2042
  %2082 = vmatpush.msra.mxu0 %v2040
  %2083 = vmatpush.msra.mxu0 %v2038
  %2084 = vmatmul.f32.gmra.mxu0 %v2052
  %v2085 = vpop.f32.mrf.mxu0
  %v2086 = vadd.f32 %v2032, %v2085
  %2087 = vmatmul.f32.gmra.mxu0 %v2055
  %v2088 = vpop.f32.mrf.mxu0
  %v2089 = vadd.f32 %v2033, %v2088
  %2090 = vmatmul.f32.gmra.mxu0 %v2058
  %v2091 = vpop.f32.mrf.mxu0
  %v2092 = vadd.f32 %v2034, %v2091
  %2093 = vmatmul.f32.gmra.mxu0 %v2061
  %v2094 = vpop.f32.mrf.mxu0
  %v2095 = vadd.f32 %v2035, %v2094
  %2096 = vmatmul.f32.gmra.mxu0 %v2064
  %v2097 = vpop.f32.mrf.mxu0
  %v2098 = vadd.f32 %v2036, %v2097
  %2099 = vdwg.mxu0
  %v2101 = vsel %vm405, %v2086, 0
  %v2104 = vsel %vm405, %v2089, 0
  %v2107 = vsel %vm405, %v2092, 0
  %v2110 = vsel %vm405, %v2095, 0
  %v2113 = vsel %vm405, %v2098, 0
  %2115 = vmatpush.msra.mxu0 0.0
  %2116 = vmatpush.msra.mxu0 0.0
  %2117 = vmatpush.msra.mxu0 0.0
  %2118 = vmatpush.msra.mxu0 0.0
  %2119 = vmatpush.msra.mxu0 0.0
  %2120 = vmatpush.msra.mxu0 0.0
  %2121 = vmatpush.msra.mxu0 0.0
  %2122 = vmatpush.msra.mxu0 0.0
  %2123 = vmatpush.msra.mxu0 0.0
  %2124 = vmatpush.msra.mxu0 0.0
  %2125 = vmatpush.msra.mxu0 0.0
  %2126 = vmatpush.msra.mxu0 0.0
  %2127 = vmatpush.msra.mxu0 0.0
  %2128 = vmatpush.msra.mxu0 0.0
  %2129 = vmatpush.msra.mxu0 0.0
  %2130 = vmatpush.msra.mxu0 %v388
  %2131 = vmatmul.f32.gmra.mxu0 %v2101
  %v2132 = vpop.f32.mrf.mxu0
  %v2133 = vadd.f32 0.0, %v2132
  %2134 = vmatmul.f32.gmra.mxu0 %v2104
  %v2135 = vpop.f32.mrf.mxu0
  %v2136 = vadd.f32 0.0, %v2135
  %2137 = vmatmul.f32.gmra.mxu0 %v2107
  %v2138 = vpop.f32.mrf.mxu0
  %v2139 = vadd.f32 0.0, %v2138
  %2140 = vmatmul.f32.gmra.mxu0 %v2110
  %v2141 = vpop.f32.mrf.mxu0
  %v2142 = vadd.f32 0.0, %v2141
  %2143 = vmatmul.f32.gmra.mxu0 %v2113
  %v2144 = vpop.f32.mrf.mxu0
  %v2145 = vadd.f32 0.0, %v2144
  %2146 = vdwg.mxu0
  %v2147 = vadd.f32 %v1886, %v2133
  %v2148 = vadd.f32 %v1889, %v2136
  %v2149 = vadd.f32 %v1892, %v2139
  %v2150 = vadd.f32 %v1895, %v2142
  %v2151 = vadd.f32 %v1898, %v2145
  %2152 = vrot.lane.b32.xlu0 %v1409, 104
  %v2153 = vpop.permute.xlu0 %2152
  %2154 = vrot.lane.b32.xlu0 %v1411, 104
  %v2155 = vpop.permute.xlu0 %2154
  %2156 = vrot.lane.b32.xlu0 %v1413, 104
  %v2157 = vpop.permute.xlu0 %2156
  %2158 = vrot.lane.b32.xlu0 %v1415, 104
  %v2159 = vpop.permute.xlu0 %2158
  %2160 = vrot.lane.b32.xlu0 %v1414, 104
  %v2161 = vpop.permute.xlu0 %2160
  %2162 = vrot.lane.b32.xlu0 %v1409, 72
  %v2163 = vpop.permute.xlu0 %2162
  %2164 = vrot.lane.b32.xlu0 %v1411, 72
  %v2165 = vpop.permute.xlu0 %2164
  %2166 = vrot.lane.b32.xlu0 %v1413, 72
  %v2167 = vpop.permute.xlu0 %2166
  %2168 = vrot.lane.b32.xlu0 %v1415, 72
  %v2169 = vpop.permute.xlu0 %2168
  %2170 = vrot.lane.b32.xlu0 %v1414, 72
  %v2171 = vpop.permute.xlu0 %2170
  %v2172 = vsel %vm405, %v2153, 0
  %v2174 = vsel %vm405, %v2155, 0
  %v2176 = vsel %vm405, %v2157, 0
  %v2178 = vsel %vm405, %v2159, 0
  %v2180 = vsel %vm405, %v2161, 0
  %v2182 = vsel %vm405, %v2163, 0
  %v2184 = vsel %vm405, %v2165, 0
  %v2186 = vsel %vm405, %v2167, 0
  %v2188 = vsel %vm405, %v2169, 0
  %v2190 = vsel %vm405, %v2171, 0
  %2192 = vmatpush.xpose.msra.mxu0 0.0
  %2193 = vmatpush.xpose.msra.mxu0 0.0
  %2194 = vmatpush.xpose.msra.mxu0 0.0
  %2195 = vmatpush.xpose.msra.mxu0 0.0
  %2196 = vmatpush.xpose.msra.mxu0 0.0
  %2197 = vmatpush.xpose.msra.mxu0 0.0
  %2198 = vmatpush.xpose.msra.mxu0 0.0
  %2199 = vmatpush.xpose.msra.mxu0 0.0
  %2200 = vmatpush.xpose.msra.mxu0 0.0
  %2201 = vmatpush.xpose.msra.mxu0 0.0
  %2202 = vmatpush.xpose.msra.mxu0 0.0
  %2203 = vmatpush.xpose.msra.mxu0 %v2190
  %2204 = vmatpush.xpose.msra.mxu0 %v2188
  %2205 = vmatpush.xpose.msra.mxu0 %v2186
  %2206 = vmatpush.xpose.msra.mxu0 %v2184
  %2207 = vmatpush.xpose.msra.mxu0 %v2182
  %2208 = vmatmul.f32.gmra.mxu0 %v2172
  %v2209 = vpop.f32.mrf.mxu0
  %v2210 = vadd.f32 0.0, %v2209
  %2211 = vmatmul.f32.gmra.mxu0 %v2174
  %v2212 = vpop.f32.mrf.mxu0
  %v2213 = vadd.f32 0.0, %v2212
  %2214 = vmatmul.f32.gmra.mxu0 %v2176
  %v2215 = vpop.f32.mrf.mxu0
  %v2216 = vadd.f32 0.0, %v2215
  %2217 = vmatmul.f32.gmra.mxu0 %v2178
  %v2218 = vpop.f32.mrf.mxu0
  %v2219 = vadd.f32 0.0, %v2218
  %2220 = vmatmul.f32.gmra.mxu0 %v2180
  %v2221 = vpop.f32.mrf.mxu0
  %v2222 = vadd.f32 0.0, %v2221
  %2223 = vdwg.mxu0
  %v2224 = vsel %vm458, %v2210, -inf
  %2225 = vmax.xlane.f32.xlu0 %v2224
  %v2226 = vpop.xlane.xlu0 %2225
  %v2227 = vsel %vm458, %v2213, -inf
  %2228 = vmax.xlane.f32.xlu0 %v2227
  %v2229 = vpop.xlane.xlu0 %2228
  %v2230 = vsel %vm458, %v2216, -inf
  %2231 = vmax.xlane.f32.xlu0 %v2230
  %v2232 = vpop.xlane.xlu0 %2231
  %v2233 = vsel %vm458, %v2219, -inf
  %2234 = vmax.xlane.f32.xlu0 %v2233
  %v2235 = vpop.xlane.xlu0 %2234
  %v2236 = vsel %vm471, %v2222, -inf
  %2237 = vmax.xlane.f32.xlu0 %v2236
  %v2238 = vpop.xlane.xlu0 %2237
  %v2239 = vsub.f32 %v2210, %v2226
  %v2240 = vsub.f32 %v2213, %v2229
  %v2241 = vsub.f32 %v2216, %v2232
  %v2242 = vsub.f32 %v2219, %v2235
  %v2243 = vsub.f32 %v2222, %v2238
  %v2244 = vmul.f32 %v2239, 1.442695
  %v2245 = vpow.pop %v2244
  %v2246 = vmul.f32 %v2240, 1.442695
  %v2247 = vpow.pop %v2246
  %v2248 = vmul.f32 %v2241, 1.442695
  %v2249 = vpow.pop %v2248
  %v2250 = vmul.f32 %v2242, 1.442695
  %v2251 = vpow.pop %v2250
  %v2252 = vmul.f32 %v2243, 1.442695
  %v2253 = vpow.pop %v2252
  %v2254 = vsel %vm458, %v2245, 0.0
  %2255 = vadd.xlane.f32.xlu0 %v2254
  %v2256 = vpop.xlane.xlu0 %2255
  %v2257 = vsel %vm458, %v2247, 0.0
  %2258 = vadd.xlane.f32.xlu0 %v2257
  %v2259 = vpop.xlane.xlu0 %2258
  %v2260 = vsel %vm458, %v2249, 0.0
  %2261 = vadd.xlane.f32.xlu0 %v2260
  %v2262 = vpop.xlane.xlu0 %2261
  %v2263 = vsel %vm458, %v2251, 0.0
  %2264 = vadd.xlane.f32.xlu0 %v2263
  %v2265 = vpop.xlane.xlu0 %2264
  %v2266 = vsel %vm471, %v2253, 0.0
  %2267 = vadd.xlane.f32.xlu0 %v2266
  %v2268 = vpop.xlane.xlu0 %2267
  %v2269 = vrcp.pop %v2256
  %v2270 = vrcp.pop %v2259
  %v2271 = vrcp.pop %v2262
  %v2272 = vrcp.pop %v2265
  %v2273 = vrcp.pop %v2268
  %v2274 = vmul.f32 %v2245, %v2269
  %v2275 = vmul.f32 %v2247, %v2270
  %v2276 = vmul.f32 %v2249, %v2271
  %v2277 = vmul.f32 %v2251, %v2272
  %v2278 = vmul.f32 %v2253, %v2273
  %v2284 = vmul.f32 %v381, %v2153
  %v2285 = vmul.f32 %v382, %v2155
  %v2286 = vmul.f32 %v383, %v2157
  %v2287 = vmul.f32 %v384, %v2159
  %v2288 = vmul.f32 %v385, %v2161
  %2289 = vrot.lane.b32.xlu0 %v1409, 40
  %v2290 = vpop.permute.xlu0 %2289
  %2291 = vrot.lane.b32.xlu0 %v1411, 40
  %v2292 = vpop.permute.xlu0 %2291
  %2293 = vrot.lane.b32.xlu0 %v1413, 40
  %v2294 = vpop.permute.xlu0 %2293
  %2295 = vrot.lane.b32.xlu0 %v1415, 40
  %v2296 = vpop.permute.xlu0 %2295
  %2297 = vrot.lane.b32.xlu0 %v1414, 40
  %v2298 = vpop.permute.xlu0 %2297
  %v2304 = vsel %vm458, %v2274, 0
  %v2307 = vsel %vm458, %v2275, 0
  %v2310 = vsel %vm458, %v2276, 0
  %v2313 = vsel %vm458, %v2277, 0
  %v2316 = vsel %vm458, %v2278, 0
  %v2318 = vsel %vm549, %v2298, 0
  %2320 = vmatpush.msra.mxu0 0.0
  %2321 = vmatpush.msra.mxu0 0.0
  %2322 = vmatpush.msra.mxu0 0.0
  %2323 = vmatpush.msra.mxu0 0.0
  %2324 = vmatpush.msra.mxu0 0.0
  %2325 = vmatpush.msra.mxu0 0.0
  %2326 = vmatpush.msra.mxu0 0.0
  %2327 = vmatpush.msra.mxu0 0.0
  %2328 = vmatpush.msra.mxu0 0.0
  %2329 = vmatpush.msra.mxu0 0.0
  %2330 = vmatpush.msra.mxu0 0.0
  %2331 = vmatpush.msra.mxu0 %v2318
  %2332 = vmatpush.msra.mxu0 %v2296
  %2333 = vmatpush.msra.mxu0 %v2294
  %2334 = vmatpush.msra.mxu0 %v2292
  %2335 = vmatpush.msra.mxu0 %v2290
  %2336 = vmatmul.f32.gmra.mxu0 %v2304
  %v2337 = vpop.f32.mrf.mxu0
  %v2338 = vadd.f32 %v2284, %v2337
  %2339 = vmatmul.f32.gmra.mxu0 %v2307
  %v2340 = vpop.f32.mrf.mxu0
  %v2341 = vadd.f32 %v2285, %v2340
  %2342 = vmatmul.f32.gmra.mxu0 %v2310
  %v2343 = vpop.f32.mrf.mxu0
  %v2344 = vadd.f32 %v2286, %v2343
  %2345 = vmatmul.f32.gmra.mxu0 %v2313
  %v2346 = vpop.f32.mrf.mxu0
  %v2347 = vadd.f32 %v2287, %v2346
  %2348 = vmatmul.f32.gmra.mxu0 %v2316
  %v2349 = vpop.f32.mrf.mxu0
  %v2350 = vadd.f32 %v2288, %v2349
  %2351 = vdwg.mxu0
  %v2353 = vsel %vm405, %v2338, 0
  %v2356 = vsel %vm405, %v2341, 0
  %v2359 = vsel %vm405, %v2344, 0
  %v2362 = vsel %vm405, %v2347, 0
  %v2365 = vsel %vm405, %v2350, 0
  %2367 = vmatpush.msra.mxu0 0.0
  %2368 = vmatpush.msra.mxu0 0.0
  %2369 = vmatpush.msra.mxu0 0.0
  %2370 = vmatpush.msra.mxu0 0.0
  %2371 = vmatpush.msra.mxu0 0.0
  %2372 = vmatpush.msra.mxu0 0.0
  %2373 = vmatpush.msra.mxu0 0.0
  %2374 = vmatpush.msra.mxu0 0.0
  %2375 = vmatpush.msra.mxu0 0.0
  %2376 = vmatpush.msra.mxu0 0.0
  %2377 = vmatpush.msra.mxu0 0.0
  %2378 = vmatpush.msra.mxu0 0.0
  %2379 = vmatpush.msra.mxu0 0.0
  %2380 = vmatpush.msra.mxu0 0.0
  %2381 = vmatpush.msra.mxu0 0.0
  %2382 = vmatpush.msra.mxu0 %v389
  %2383 = vmatmul.f32.gmra.mxu0 %v2353
  %v2384 = vpop.f32.mrf.mxu0
  %v2385 = vadd.f32 0.0, %v2384
  %2386 = vmatmul.f32.gmra.mxu0 %v2356
  %v2387 = vpop.f32.mrf.mxu0
  %v2388 = vadd.f32 0.0, %v2387
  %2389 = vmatmul.f32.gmra.mxu0 %v2359
  %v2390 = vpop.f32.mrf.mxu0
  %v2391 = vadd.f32 0.0, %v2390
  %2392 = vmatmul.f32.gmra.mxu0 %v2362
  %v2393 = vpop.f32.mrf.mxu0
  %v2394 = vadd.f32 0.0, %v2393
  %2395 = vmatmul.f32.gmra.mxu0 %v2365
  %v2396 = vpop.f32.mrf.mxu0
  %v2397 = vadd.f32 0.0, %v2396
  %2398 = vdwg.mxu0
  %v2399 = vadd.f32 %v2147, %v2385
  %v2400 = vadd.f32 %v2148, %v2388
  %v2401 = vadd.f32 %v2149, %v2391
  %v2402 = vadd.f32 %v2150, %v2394
  %v2403 = vadd.f32 %v2151, %v2397
  %v2409 = vrot.slane %v2399, 7
  %v2410 = vrot.slane %v2400, 7
  %v2411 = vsel %vm549, %v2409, %v2410
  %v2412 = vrot.slane %v2401, 7
  %v2413 = vsel %vm549, %v2410, %v2412
  %v2414 = vrot.slane %v2402, 7
  %v2415 = vsel %vm549, %v2412, %v2414
  %v2416 = vrot.slane %v2403, 7
  %v2417 = vsel %vm549, %v2414, %v2416
  %v2423 = vsel %vm549, %v1401, %v2409
  %v2424 = vld [vmem:[%s6] sm:$0x1]
  %v2426 = vperm.slane %v2424, 0
  %v2428 = vadd.f32 %v1397, %v2426
  %v2429 = vadd.f32 %v1398, %v2426
  %v2430 = vadd.f32 %v1399, %v2426
  %v2431 = vadd.f32 %v1400, %v2426
  %v2432 = vadd.f32 %v2423, %v2426
  %v2433 = vadd.f32 %v2411, %v2426
  %v2434 = vadd.f32 %v2413, %v2426
  %v2435 = vadd.f32 %v2415, %v2426
  %v2436 = vadd.f32 %v2417, %v2426
  %v2437 = vadd.f32 %v44, %v2428
  %v2438 = vadd.f32 %v45, %v2429
  %v2439 = vadd.f32 %v46, %v2430
  %v2440 = vadd.f32 %v47, %v2431
  %v2441 = vadd.f32 %v48, %v2432
  %v2442 = vadd.f32 %v49, %v2433
  %v2443 = vadd.f32 %v50, %v2434
  %v2444 = vadd.f32 %v51, %v2435
  %v2445 = vadd.f32 %v52, %v2436
  %v2446 = vld [vmem:[%s7] sm:$0x1]
  %v2447 = vld [vmem:[%s8] sm:$0x1]
  %v2448 = vsel %vm55, %v2437, 0.0
  %2449 = vadd.xlane.f32.xlu0 %v2448
  %v2450 = vpop.xlane.xlu0 %2449
  %v2451 = vsel %vm55, %v2438, 0.0
  %2452 = vadd.xlane.f32.xlu0 %v2451
  %v2453 = vpop.xlane.xlu0 %2452
  %v2454 = vsel %vm55, %v2439, 0.0
  %2455 = vadd.xlane.f32.xlu0 %v2454
  %v2456 = vpop.xlane.xlu0 %2455
  %v2457 = vsel %vm55, %v2440, 0.0
  %2458 = vadd.xlane.f32.xlu0 %v2457
  %v2459 = vpop.xlane.xlu0 %2458
  %v2460 = vsel %vm55, %v2441, 0.0
  %2461 = vadd.xlane.f32.xlu0 %v2460
  %v2462 = vpop.xlane.xlu0 %2461
  %v2463 = vsel %vm55, %v2442, 0.0
  %2464 = vadd.xlane.f32.xlu0 %v2463
  %v2465 = vpop.xlane.xlu0 %2464
  %v2466 = vsel %vm55, %v2443, 0.0
  %2467 = vadd.xlane.f32.xlu0 %v2466
  %v2468 = vpop.xlane.xlu0 %2467
  %v2469 = vsel %vm55, %v2444, 0.0
  %2470 = vadd.xlane.f32.xlu0 %v2469
  %v2471 = vpop.xlane.xlu0 %2470
  %v2472 = vsel %vm80, %v2445, 0.0
  %2473 = vadd.xlane.f32.xlu0 %v2472
  %v2474 = vpop.xlane.xlu0 %2473
  %v2475 = vmul.f32 %v2450, %v90
  %v2476 = vmul.f32 %v2453, %v90
  %v2477 = vmul.f32 %v2456, %v90
  %v2478 = vmul.f32 %v2459, %v90
  %v2479 = vmul.f32 %v2462, %v90
  %v2480 = vmul.f32 %v2465, %v90
  %v2481 = vmul.f32 %v2468, %v90
  %v2482 = vmul.f32 %v2471, %v90
  %v2483 = vmul.f32 %v2474, %v90
  %v2484 = vsub.f32 %v2437, %v2475
  %v2485 = vsub.f32 %v2438, %v2476
  %v2486 = vsub.f32 %v2439, %v2477
  %v2487 = vsub.f32 %v2440, %v2478
  %v2488 = vsub.f32 %v2441, %v2479
  %v2489 = vsub.f32 %v2442, %v2480
  %v2490 = vsub.f32 %v2443, %v2481
  %v2491 = vsub.f32 %v2444, %v2482
  %v2492 = vsub.f32 %v2445, %v2483
  %v2493 = vmul.f32 %v2484, %v2484
  %v2494 = vmul.f32 %v2485, %v2485
  %v2495 = vmul.f32 %v2486, %v2486
  %v2496 = vmul.f32 %v2487, %v2487
  %v2497 = vmul.f32 %v2488, %v2488
  %v2498 = vmul.f32 %v2489, %v2489
  %v2499 = vmul.f32 %v2490, %v2490
  %v2500 = vmul.f32 %v2491, %v2491
  %v2501 = vmul.f32 %v2492, %v2492
  %v2502 = vsel %vm55, %v2493, 0.0
  %2503 = vadd.xlane.f32.xlu0 %v2502
  %v2504 = vpop.xlane.xlu0 %2503
  %v2505 = vsel %vm55, %v2494, 0.0
  %2506 = vadd.xlane.f32.xlu0 %v2505
  %v2507 = vpop.xlane.xlu0 %2506
  %v2508 = vsel %vm55, %v2495, 0.0
  %2509 = vadd.xlane.f32.xlu0 %v2508
  %v2510 = vpop.xlane.xlu0 %2509
  %v2511 = vsel %vm55, %v2496, 0.0
  %2512 = vadd.xlane.f32.xlu0 %v2511
  %v2513 = vpop.xlane.xlu0 %2512
  %v2514 = vsel %vm55, %v2497, 0.0
  %2515 = vadd.xlane.f32.xlu0 %v2514
  %v2516 = vpop.xlane.xlu0 %2515
  %v2517 = vsel %vm55, %v2498, 0.0
  %2518 = vadd.xlane.f32.xlu0 %v2517
  %v2519 = vpop.xlane.xlu0 %2518
  %v2520 = vsel %vm55, %v2499, 0.0
  %2521 = vadd.xlane.f32.xlu0 %v2520
  %v2522 = vpop.xlane.xlu0 %2521
  %v2523 = vsel %vm55, %v2500, 0.0
  %2524 = vadd.xlane.f32.xlu0 %v2523
  %v2525 = vpop.xlane.xlu0 %2524
  %v2526 = vsel %vm80, %v2501, 0.0
  %2527 = vadd.xlane.f32.xlu0 %v2526
  %v2528 = vpop.xlane.xlu0 %2527
  %v2529 = vmul.f32 %v2504, %v90
  %v2530 = vmul.f32 %v2507, %v90
  %v2531 = vmul.f32 %v2510, %v90
  %v2532 = vmul.f32 %v2513, %v90
  %v2533 = vmul.f32 %v2516, %v90
  %v2534 = vmul.f32 %v2519, %v90
  %v2535 = vmul.f32 %v2522, %v90
  %v2536 = vmul.f32 %v2525, %v90
  %v2537 = vmul.f32 %v2528, %v90
  %v2538 = vadd.f32 %v2529, 1e-05
  %v2539 = vadd.f32 %v2530, 1e-05
  %v2540 = vadd.f32 %v2531, 1e-05
  %v2541 = vadd.f32 %v2532, 1e-05
  %v2542 = vadd.f32 %v2533, 1e-05
  %v2543 = vadd.f32 %v2534, 1e-05
  %v2544 = vadd.f32 %v2535, 1e-05
  %v2545 = vadd.f32 %v2536, 1e-05
  %v2546 = vadd.f32 %v2537, 1e-05
  %v2547 = vrsqrt.pop %v2538
  %v2548 = vmul.f32 %v2547, %v2538
  %v2549 = vmul.f32 %v2548, %v2547
  %v2550 = vmul.f32 0.5, %v2549
  %v2551 = vsub.f32 1.5, %v2550
  %v2552 = vmul.f32 %v2547, %v2551
  %vm2553 = vweird.f32 %v2538
  %vm2554 = vweird.f32 %v2547
  %vm2555 = vmor %vm2553, %vm2554
  %v2556 = vsel %vm2555, %v2547, %v2552
  %v2557 = vrsqrt.pop %v2539
  %v2558 = vmul.f32 %v2557, %v2539
  %v2559 = vmul.f32 %v2558, %v2557
  %v2560 = vmul.f32 0.5, %v2559
  %v2561 = vsub.f32 1.5, %v2560
  %v2562 = vmul.f32 %v2557, %v2561
  %vm2563 = vweird.f32 %v2539
  %vm2564 = vweird.f32 %v2557
  %vm2565 = vmor %vm2563, %vm2564
  %v2566 = vsel %vm2565, %v2557, %v2562
  %v2567 = vrsqrt.pop %v2540
  %v2568 = vmul.f32 %v2567, %v2540
  %v2569 = vmul.f32 %v2568, %v2567
  %v2570 = vmul.f32 0.5, %v2569
  %v2571 = vsub.f32 1.5, %v2570
  %v2572 = vmul.f32 %v2567, %v2571
  %vm2573 = vweird.f32 %v2540
  %vm2574 = vweird.f32 %v2567
  %vm2575 = vmor %vm2573, %vm2574
  %v2576 = vsel %vm2575, %v2567, %v2572
  %v2577 = vrsqrt.pop %v2541
  %v2578 = vmul.f32 %v2577, %v2541
  %v2579 = vmul.f32 %v2578, %v2577
  %v2580 = vmul.f32 0.5, %v2579
  %v2581 = vsub.f32 1.5, %v2580
  %v2582 = vmul.f32 %v2577, %v2581
  %vm2583 = vweird.f32 %v2541
  %vm2584 = vweird.f32 %v2577
  %vm2585 = vmor %vm2583, %vm2584
  %v2586 = vsel %vm2585, %v2577, %v2582
  %v2587 = vrsqrt.pop %v2542
  %v2588 = vmul.f32 %v2587, %v2542
  %v2589 = vmul.f32 %v2588, %v2587
  %v2590 = vmul.f32 0.5, %v2589
  %v2591 = vsub.f32 1.5, %v2590
  %v2592 = vmul.f32 %v2587, %v2591
  %vm2593 = vweird.f32 %v2542
  %vm2594 = vweird.f32 %v2587
  %vm2595 = vmor %vm2593, %vm2594
  %v2596 = vsel %vm2595, %v2587, %v2592
  %v2597 = vrsqrt.pop %v2543
  %v2598 = vmul.f32 %v2597, %v2543
  %v2599 = vmul.f32 %v2598, %v2597
  %v2600 = vmul.f32 0.5, %v2599
  %v2601 = vsub.f32 1.5, %v2600
  %v2602 = vmul.f32 %v2597, %v2601
  %vm2603 = vweird.f32 %v2543
  %vm2604 = vweird.f32 %v2597
  %vm2605 = vmor %vm2603, %vm2604
  %v2606 = vsel %vm2605, %v2597, %v2602
  %v2607 = vrsqrt.pop %v2544
  %v2608 = vmul.f32 %v2607, %v2544
  %v2609 = vmul.f32 %v2608, %v2607
  %v2610 = vmul.f32 0.5, %v2609
  %v2611 = vsub.f32 1.5, %v2610
  %v2612 = vmul.f32 %v2607, %v2611
  %vm2613 = vweird.f32 %v2544
  %vm2614 = vweird.f32 %v2607
  %vm2615 = vmor %vm2613, %vm2614
  %v2616 = vsel %vm2615, %v2607, %v2612
  %v2617 = vrsqrt.pop %v2545
  %v2618 = vmul.f32 %v2617, %v2545
  %v2619 = vmul.f32 %v2618, %v2617
  %v2620 = vmul.f32 0.5, %v2619
  %v2621 = vsub.f32 1.5, %v2620
  %v2622 = vmul.f32 %v2617, %v2621
  %vm2623 = vweird.f32 %v2545
  %vm2624 = vweird.f32 %v2617
  %vm2625 = vmor %vm2623, %vm2624
  %v2626 = vsel %vm2625, %v2617, %v2622
  %v2627 = vrsqrt.pop %v2546
  %v2628 = vmul.f32 %v2627, %v2546
  %v2629 = vmul.f32 %v2628, %v2627
  %v2630 = vmul.f32 0.5, %v2629
  %v2631 = vsub.f32 1.5, %v2630
  %v2632 = vmul.f32 %v2627, %v2631
  %vm2633 = vweird.f32 %v2546
  %vm2634 = vweird.f32 %v2627
  %vm2635 = vmor %vm2633, %vm2634
  %v2636 = vsel %vm2635, %v2627, %v2632
  %v2637 = vmul.f32 %v2484, %v2556
  %v2638 = vmul.f32 %v2485, %v2566
  %v2639 = vmul.f32 %v2486, %v2576
  %v2640 = vmul.f32 %v2487, %v2586
  %v2641 = vmul.f32 %v2488, %v2596
  %v2642 = vmul.f32 %v2489, %v2606
  %v2643 = vmul.f32 %v2490, %v2616
  %v2644 = vmul.f32 %v2491, %v2626
  %v2645 = vmul.f32 %v2492, %v2636
  %v2647 = vperm.slane %v2446, 0
  %v2649 = vmul.f32 %v2637, %v2647
  %v2650 = vmul.f32 %v2638, %v2647
  %v2651 = vmul.f32 %v2639, %v2647
  %v2652 = vmul.f32 %v2640, %v2647
  %v2653 = vmul.f32 %v2641, %v2647
  %v2654 = vmul.f32 %v2642, %v2647
  %v2655 = vmul.f32 %v2643, %v2647
  %v2656 = vmul.f32 %v2644, %v2647
  %v2657 = vmul.f32 %v2645, %v2647
  %v2659 = vperm.slane %v2447, 0
  %v2661 = vadd.f32 %v2649, %v2659
  %v2662 = vadd.f32 %v2650, %v2659
  %v2663 = vadd.f32 %v2651, %v2659
  %v2664 = vadd.f32 %v2652, %v2659
  %v2665 = vadd.f32 %v2653, %v2659
  %v2666 = vadd.f32 %v2654, %v2659
  %v2667 = vadd.f32 %v2655, %v2659
  %v2668 = vadd.f32 %v2656, %v2659
  %v2669 = vadd.f32 %v2657, %v2659
  %v2670 = vld [vmem:[%s9] sm:$0xff]
  %v2671 = vld [vmem:[%s9 + $0x8] sm:$0xff]
  %v2672 = vld [vmem:[%s9 + $0x10] sm:$0xff]
  %v2673 = vld [vmem:[%s9 + $0x18] sm:$0xff]
  %v2674 = vld [vmem:[%s10] sm:$0x1]
  %v2676 = vperm.slane %v2674, 0
  %v2679 = vsel %vm55, %v2661, 0
  %v2682 = vsel %vm55, %v2662, 0
  %v2685 = vsel %vm55, %v2663, 0
  %v2688 = vsel %vm55, %v2664, 0
  %v2691 = vsel %vm55, %v2665, 0
  %v2694 = vsel %vm55, %v2666, 0
  %v2697 = vsel %vm55, %v2667, 0
  %v2700 = vsel %vm55, %v2668, 0
  %v2703 = vsel %vm55, %v2669, 0
  %2705 = vmatpush.msra.mxu0 0.0
  %2706 = vmatpush.msra.mxu0 0.0
  %2707 = vmatpush.msra.mxu0 0.0
  %2708 = vmatpush.msra.mxu0 0.0
  %2709 = vmatpush.msra.mxu0 0.0
  %2710 = vmatpush.msra.mxu0 0.0
  %2711 = vmatpush.msra.mxu0 0.0
  %2712 = vmatpush.msra.mxu0 0.0
  %2713 = vmatpush.msra.mxu0 0.0
  %2714 = vmatpush.msra.mxu0 0.0
  %2715 = vmatpush.msra.mxu0 0.0
  %2716 = vmatpush.msra.mxu0 0.0
  %2717 = vmatpush.msra.mxu0 %v2673
  %2718 = vmatpush.msra.mxu0 %v2672
  %2719 = vmatpush.msra.mxu0 %v2671
  %2720 = vmatpush.msra.mxu0 %v2670
  %2721 = vmatmul.f32.gmra.mxu0 %v2679
  %v2722 = vpop.f32.mrf.mxu0
  %v2723 = vadd.f32 %v2676, %v2722
  %2724 = vmatmul.f32.gmra.mxu0 %v2682
  %v2725 = vpop.f32.mrf.mxu0
  %v2726 = vadd.f32 %v2676, %v2725
  %2727 = vmatmul.f32.gmra.mxu0 %v2685
  %v2728 = vpop.f32.mrf.mxu0
  %v2729 = vadd.f32 %v2676, %v2728
  %2730 = vmatmul.f32.gmra.mxu0 %v2688
  %v2731 = vpop.f32.mrf.mxu0
  %v2732 = vadd.f32 %v2676, %v2731
  %2733 = vmatmul.f32.gmra.mxu0 %v2691
  %v2734 = vpop.f32.mrf.mxu0
  %v2735 = vadd.f32 %v2676, %v2734
  %2736 = vmatmul.f32.gmra.mxu0 %v2694
  %v2737 = vpop.f32.mrf.mxu0
  %v2738 = vadd.f32 %v2676, %v2737
  %2739 = vmatmul.f32.gmra.mxu0 %v2697
  %v2740 = vpop.f32.mrf.mxu0
  %v2741 = vadd.f32 %v2676, %v2740
  %2742 = vmatmul.f32.gmra.mxu0 %v2700
  %v2743 = vpop.f32.mrf.mxu0
  %v2744 = vadd.f32 %v2676, %v2743
  %2745 = vmatmul.f32.gmra.mxu0 %v2703
  %v2746 = vpop.f32.mrf.mxu0
  %v2747 = vadd.f32 %v2676, %v2746
  %2748 = vdwg.mxu0
  %v2749 = vmul.f32 %v2723, 0.5
  %v2750 = vmul.f32 %v2726, 0.5
  %v2751 = vmul.f32 %v2729, 0.5
  %v2752 = vmul.f32 %v2732, 0.5
  %v2753 = vmul.f32 %v2735, 0.5
  %v2754 = vmul.f32 %v2738, 0.5
  %v2755 = vmul.f32 %v2741, 0.5
  %v2756 = vmul.f32 %v2744, 0.5
  %v2757 = vmul.f32 %v2747, 0.5
  %v2758 = vmul.f32 %v2723, 0.044715
  %v2759 = vmul.f32 %v2726, 0.044715
  %v2760 = vmul.f32 %v2729, 0.044715
  %v2761 = vmul.f32 %v2732, 0.044715
  %v2762 = vmul.f32 %v2735, 0.044715
  %v2763 = vmul.f32 %v2738, 0.044715
  %v2764 = vmul.f32 %v2741, 0.044715
  %v2765 = vmul.f32 %v2744, 0.044715
  %v2766 = vmul.f32 %v2747, 0.044715
  %v2767 = vmul.f32 %v2758, %v2723
  %v2768 = vmul.f32 %v2759, %v2726
  %v2769 = vmul.f32 %v2760, %v2729
  %v2770 = vmul.f32 %v2761, %v2732
  %v2771 = vmul.f32 %v2762, %v2735
  %v2772 = vmul.f32 %v2763, %v2738
  %v2773 = vmul.f32 %v2764, %v2741
  %v2774 = vmul.f32 %v2765, %v2744
  %v2775 = vmul.f32 %v2766, %v2747
  %v2776 = vmul.f32 %v2767, %v2723
  %v2777 = vmul.f32 %v2768, %v2726
  %v2778 = vmul.f32 %v2769, %v2729
  %v2779 = vmul.f32 %v2770, %v2732
  %v2780 = vmul.f32 %v2771, %v2735
  %v2781 = vmul.f32 %v2772, %v2738
  %v2782 = vmul.f32 %v2773, %v2741
  %v2783 = vmul.f32 %v2774, %v2744
  %v2784 = vmul.f32 %v2775, %v2747
  %v2785 = vadd.f32 %v2723, %v2776
  %v2786 = vadd.f32 %v2726, %v2777
  %v2787 = vadd.f32 %v2729, %v2778
  %v2788 = vadd.f32 %v2732, %v2779
  %v2789 = vadd.f32 %v2735, %v2780
  %v2790 = vadd.f32 %v2738, %v2781
  %v2791 = vadd.f32 %v2741, %v2782
  %v2792 = vadd.f32 %v2744, %v2783
  %v2793 = vadd.f32 %v2747, %v2784
  %v2794 = vmul.f32 %v2785, 0.7978846
  %v2795 = vmul.f32 %v2786, 0.7978846
  %v2796 = vmul.f32 %v2787, 0.7978846
  %v2797 = vmul.f32 %v2788, 0.7978846
  %v2798 = vmul.f32 %v2789, 0.7978846
  %v2799 = vmul.f32 %v2790, 0.7978846
  %v2800 = vmul.f32 %v2791, 0.7978846
  %v2801 = vmul.f32 %v2792, 0.7978846
  %v2802 = vmul.f32 %v2793, 0.7978846
  %v2803 = vtanh.pop %v2794
  %v2804 = vtanh.pop %v2795
  %v2805 = vtanh.pop %v2796
  %v2806 = vtanh.pop %v2797
  %v2807 = vtanh.pop %v2798
  %v2808 = vtanh.pop %v2799
  %v2809 = vtanh.pop %v2800
  %v2810 = vtanh.pop %v2801
  %v2811 = vtanh.pop %v2802
  %v2812 = vadd.f32 %v2803, 1.0
  %v2813 = vadd.f32 %v2804, 1.0
  %v2814 = vadd.f32 %v2805, 1.0
  %v2815 = vadd.f32 %v2806, 1.0
  %v2816 = vadd.f32 %v2807, 1.0
  %v2817 = vadd.f32 %v2808, 1.0
  %v2818 = vadd.f32 %v2809, 1.0
  %v2819 = vadd.f32 %v2810, 1.0
  %v2820 = vadd.f32 %v2811, 1.0
  %v2821 = vmul.f32 %v2749, %v2812
  %v2822 = vmul.f32 %v2750, %v2813
  %v2823 = vmul.f32 %v2751, %v2814
  %v2824 = vmul.f32 %v2752, %v2815
  %v2825 = vmul.f32 %v2753, %v2816
  %v2826 = vmul.f32 %v2754, %v2817
  %v2827 = vmul.f32 %v2755, %v2818
  %v2828 = vmul.f32 %v2756, %v2819
  %v2829 = vmul.f32 %v2757, %v2820
  %v2830 = vld [vmem:[%s11] sm:$0xff]
  %v2831 = vld [vmem:[%s11 + $0x8] sm:$0xff]
  %v2832 = vld [vmem:[%s11 + $0x10] sm:$0xff]
  %v2833 = vld [vmem:[%s11 + $0x18] sm:$0xff]
  %v2834 = vld [vmem:[%s11 + $0x20] sm:$0xff]
  %v2835 = vld [vmem:[%s11 + $0x28] sm:$0xff]
  %v2836 = vld [vmem:[%s11 + $0x30] sm:$0xff]
  %v2837 = vld [vmem:[%s11 + $0x38] sm:$0xff]
  %v2838 = vld [vmem:[%s11 + $0x40] sm:$0xff]
  %v2839 = vld [vmem:[%s11 + $0x48] sm:$0xff]
  %v2840 = vld [vmem:[%s11 + $0x50] sm:$0xff]
  %v2841 = vld [vmem:[%s11 + $0x58] sm:$0xff]
  %v2842 = vld [vmem:[%s11 + $0x60] sm:$0xff]
  %v2843 = vld [vmem:[%s11 + $0x68] sm:$0xff]
  %v2844 = vld [vmem:[%s11 + $0x70] sm:$0xff]
  %v2845 = vld [vmem:[%s11 + $0x78] sm:$0xff]
  %v2846 = vld [vmem:[%s12] sm:$0x1]
  %v2848 = vperm.slane %v2846, 0
  %2850 = vmatpush.msra.mxu0 %v2845
  %2851 = vmatpush.msra.mxu0 %v2844
  %2852 = vmatpush.msra.mxu0 %v2843
  %2853 = vmatpush.msra.mxu0 %v2842
  %2854 = vmatpush.msra.mxu0 %v2841
  %2855 = vmatpush.msra.mxu0 %v2840
  %2856 = vmatpush.msra.mxu0 %v2839
  %2857 = vmatpush.msra.mxu0 %v2838
  %2858 = vmatpush.msra.mxu0 %v2837
  %2859 = vmatpush.msra.mxu0 %v2836
  %2860 = vmatpush.msra.mxu0 %v2835
  %2861 = vmatpush.msra.mxu0 %v2834
  %2862 = vmatpush.msra.mxu0 %v2833
  %2863 = vmatpush.msra.mxu0 %v2832
  %2864 = vmatpush.msra.mxu0 %v2831
  %2865 = vmatpush.msra.mxu0 %v2830
  %2866 = vmatmul.f32.gmra.mxu0 %v2821
  %v2867 = vpop.f32.mrf.mxu0
  %v2868 = vadd.f32 %v2848, %v2867
  %2869 = vmatmul.f32.gmra.mxu0 %v2822
  %v2870 = vpop.f32.mrf.mxu0
  %v2871 = vadd.f32 %v2848, %v2870
  %2872 = vmatmul.f32.gmra.mxu0 %v2823
  %v2873 = vpop.f32.mrf.mxu0
  %v2874 = vadd.f32 %v2848, %v2873
  %2875 = vmatmul.f32.gmra.mxu0 %v2824
  %v2876 = vpop.f32.mrf.mxu0
  %v2877 = vadd.f32 %v2848, %v2876
  %2878 = vmatmul.f32.gmra.mxu0 %v2825
  %v2879 = vpop.f32.mrf.mxu0
  %v2880 = vadd.f32 %v2848, %v2879
  %2881 = vmatmul.f32.gmra.mxu0 %v2826
  %v2882 = vpop.f32.mrf.mxu0
  %v2883 = vadd.f32 %v2848, %v2882
  %2884 = vmatmul.f32.gmra.mxu0 %v2827
  %v2885 = vpop.f32.mrf.mxu0
  %v2886 = vadd.f32 %v2848, %v2885
  %2887 = vmatmul.f32.gmra.mxu0 %v2828
  %v2888 = vpop.f32.mrf.mxu0
  %v2889 = vadd.f32 %v2848, %v2888
  %2890 = vmatmul.f32.gmra.mxu0 %v2829
  %v2891 = vpop.f32.mrf.mxu0
  %v2892 = vadd.f32 %v2848, %v2891
  %2893 = vdwg.mxu0
  %v2894 = vadd.f32 %v2437, %v2868
  %v2895 = vadd.f32 %v2438, %v2871
  %v2896 = vadd.f32 %v2439, %v2874
  %v2897 = vadd.f32 %v2440, %v2877
  %v2898 = vadd.f32 %v2441, %v2880
  %v2899 = vadd.f32 %v2442, %v2883
  %v2900 = vadd.f32 %v2443, %v2886
  %v2901 = vadd.f32 %v2444, %v2889
  %v2902 = vadd.f32 %v2445, %v2892
  %2903 = vst.msk [vmem:[%s13] sm:$0xff] %vm55, %v2894
  %2904 = vst.msk [vmem:[%s13 + $0x8] sm:$0xff] %vm55, %v2895
  %2905 = vst.msk [vmem:[%s13 + $0x10] sm:$0xff] %vm55, %v2896
  %2906 = vst.msk [vmem:[%s13 + $0x18] sm:$0xff] %vm55, %v2897
  %2907 = vst.msk [vmem:[%s13 + $0x20] sm:$0xff] %vm55, %v2898
  %2908 = vst.msk [vmem:[%s13 + $0x28] sm:$0xff] %vm55, %v2899
  %2909 = vst.msk [vmem:[%s13 + $0x30] sm:$0xff] %vm55, %v2900
  %2910 = vst.msk [vmem:[%s13 + $0x38] sm:$0xff] %vm55, %v2901
  %2911 = vst.msk [vmem:[%s13 + $0x40] sm:$0x3] %vm80, %v2902
  // Predicated region
  $region54: #{tpu_custom_call.1} parent=0 // pred_check
    _
  $region55: #{tpu_custom_call.1} parent=0 // pred_check_branch
    %2913 = sbr.rel (0) target = $region57
  $region56: #{tpu_custom_call.1} parent=0 // pred_region
    _
  $region57: #{tpu_custom_call.1} parent=0 // pred_fallthru
    _
  // Predicated region
  $region58: #{tpu_custom_call.1} parent=0 // pred_check
    _
  $region59: #{tpu_custom_call.1} parent=0 // pred_check_branch
    %2915 = sbr.rel (0) target = $region61
  $region60: #{tpu_custom_call.1} parent=0 // pred_region
    _
  $region61: #{tpu_custom_call.1} parent=0 // pred_fallthru
    _

</llo_original>
